<compile_context>
chip_gen: v7x
topology: tpu7x:2x2x1
jax: 0.10.0
libtpu: 0.0.40
codegen_flags: <defaults>
</compile_context>

<pallas_src>
import functools

import jax
import jax.numpy as jnp
from jax import lax
from jax.experimental import pallas as pl
from jax.experimental.pallas import tpu as pltpu


def _num_tensorcores():
    """Best-effort TensorCore count (2 on v7x, 1 on v5e/v6e). Defaults to 1."""
    try:
        info = pltpu.get_tpu_info()
        for attr in ("num_tensorcores", "tensorcores_per_chip", "num_cores",
                     "core_count"):
            v = getattr(info, attr, None)
            if isinstance(v, int) and v > 0:
                return v
    except Exception:
        pass
    try:
        v = getattr(jax.devices()[0], "num_cores", None)
        if isinstance(v, int) and v > 0:
            return v
    except Exception:
        pass
    return 1


def _adain_kernel(x_ref, t_ref, ws_ref, wh_ref, b_ref, o_ref, *,
                  latent_dim, pack):
    """One lane-dense tile.

    x_ref : (tn, pack*latent_dim)  `pack` original rows packed per kernel row
    t_ref : (tn, pack*style_dim)   style vectors packed the same way
    ws_ref: (pack*style_dim, pack) kron(I_pack, w[:, 0:1])  -> per-row scale
    wh_ref: (pack*style_dim, pack) kron(I_pack, w[:, 1:2])  -> per-row shift
    b_ref : (2,) f32 in SMEM       linear bias
    o_ref : (tn, pack*latent_dim)
    """
    hi = lax.Precision.HIGHEST
    width = pack * latent_dim

    x = x_ref[...].astype(jnp.float32)                           # (tn, W)

    # 0/1 segment-sum (W, pack) and segment-broadcast (pack, W) matrices,
    # built from 2-D iota (exact values, negligible VPU cost, loop-invariant).
    lane = lax.broadcasted_iota(jnp.int32, (width, pack), 0)
    col = lax.broadcasted_iota(jnp.int32, (width, pack), 1)
    lo = col * latent_dim
    seg_sum = ((lane >= lo) & (lane < lo + latent_dim)).astype(jnp.float32)

    row = lax.broadcasted_iota(jnp.int32, (pack, width), 0)
    lane2 = lax.broadcasted_iota(jnp.int32, (pack, width), 1)
    lo2 = row * latent_dim
    seg_bcast = ((lane2 >= lo2) & (lane2 < lo2 + latent_dim)).astype(jnp.float32)

    # Two-pass row statistics on the idle MXU (unbiased variance, like torch).
    mean = jnp.dot(x, seg_sum, precision=hi) * (1.0 / latent_dim)        # (tn, pack)
    mean_full = jnp.dot(mean, seg_bcast, precision=hi)                   # (tn, W)
    xc = x - mean_full
    var = jnp.dot(xc * xc, seg_sum, precision=hi) * (1.0 / max(latent_dim - 1, 1))
    std = jnp.sqrt(var) + 1e-6                                           # (tn, pack)

    # Fused 2-wide style projection: scale/shift per packed row.
    ts = t_ref[...].astype(jnp.float32)                                  # (tn, pack*S)
    scale = jnp.dot(ts, ws_ref[...], precision=hi) + b_ref[0]            # (tn, pack)
    shift = jnp.dot(ts, wh_ref[...], precision=hi) + b_ref[1]            # (tn, pack)

    # Fold 1/std into scale on the narrow (tn, pack) path, broadcast, and keep
    # the wide path to a single multiply-add.
    # (pl.reciprocal(..., approx=True) would move this to the EUP slot; kept
    #  exact to stay well inside the 1e-4 tolerance.)
    g = scale * pl.reciprocal(std, approx=False)                         # (tn, pack)
    g_full = jnp.dot(g, seg_bcast, precision=hi)                         # (tn, W)
    shift_full = jnp.dot(shift, seg_bcast, precision=hi)                 # (tn, W)

    o_ref[...] = (xc * g_full + shift_full).astype(o_ref.dtype)


def adain(x, t, w, b, *, tile_rows=4096):
    """AdaIN forward.

    x: (N, latent_dim)   t: (N, style_dim)
    w: (style_dim, 2)    nn.Linear weight stored as (in_dim, out_dim)
    b: (2,)              linear bias
    """
    n, latent_dim = x.shape
    _, style_dim = t.shape
    assert t.shape[0] == n

    # Lane-dense packing factor.
    if latent_dim <= 128 and 128 % latent_dim == 0:
        pack = 128 // latent_dim
    else:
        pack = 1   # TODO(synk): latent dims not dividing 128 stay lane-sparse.

    # Rare ragged path: the free reshape needs N % pack == 0.  Pads at most
    # pack-1 (<8) rows; padded rows compute garbage (they evaluate to the
    # shift value) and are sliced off below.  Common path: zero extra copies.
    n_pad = pl.cdiv(n, pack) * pack
    if n_pad != n:
        x = jnp.pad(x, ((0, n_pad - n), (0, 0)))
        t = jnp.pad(t, ((0, n_pad - n), (0, 0)))

    n_rows = n_pad // pack
    width = pack * latent_dim
    t_width = pack * style_dim

    x_r = x.reshape(n_rows, width)      # free: contiguous row-major reshape
    t_r = t.reshape(n_rows, t_width)    # free

    # Block-diagonal replication of the 2-wide linear across the packed rows,
    # so the style projection runs inside the kernel on the idle MXU.
    eye = jnp.eye(pack, dtype=jnp.float32)
    w_f = w.astype(jnp.float32)
    w_scale = jnp.kron(eye, w_f[:, 0:1])            # (pack*style_dim, pack)
    w_shift = jnp.kron(eye, w_f[:, 1:2])            # (pack*style_dim, pack)
    b_f = b.astype(jnp.float32).reshape(2)

    # Tile selection: big tiles (amortize ~0.35us/step), rows a multiple of 8
    # rounded UP (not down), forced 2-step split only on 2-TensorCore chips.
    # Ragged last blocks are masked by Pallas, never physically padded.
    if n_rows > 8:
        tn = int(min(tile_rows, n_rows))
        if _num_tensorcores() >= 2 and tn >= n_rows:
            tn = (n_rows + 1) // 2
        tn_up = ((tn + 7) // 8) * 8
        tn = tn_up if tn_up <= n_rows else (n_rows // 8) * 8
        tn = max(tn, 8)
    else:
        tn = n_rows
    num_steps = pl.cdiv(n_rows, tn)

    out_r = pl.pallas_call(
        functools.partial(_adain_kernel, latent_dim=latent_dim, pack=pack),
        out_shape=jax.ShapeDtypeStruct((n_rows, width), x.dtype),
        grid_spec=pltpu.PrefetchScalarGridSpec(
            num_scalar_prefetch=0,
            grid=(num_steps,),
            in_specs=[
                pl.BlockSpec((tn, width), lambda i: (i, 0)),
                pl.BlockSpec((tn, t_width), lambda i: (i, 0)),
                pl.BlockSpec((t_width, pack), lambda i: (0, 0)),
                pl.BlockSpec((t_width, pack), lambda i: (0, 0)),
                pl.BlockSpec(memory_space=pltpu.MemorySpace.SMEM),
            ],
            out_specs=pl.BlockSpec((tn, width), lambda i: (i, 0)),
        ),
        compiler_params=pltpu.CompilerParams(
            dimension_semantics=("parallel",)),
    )(x_r, t_r, w_scale, w_shift, b_f)

    out = out_r.reshape(n_pad, latent_dim)
    return out[:n] if n_pad != n else out


def adain_ref(x, t, w, b):
    """Pure-JAX reference matching the PyTorch module exactly."""
    style = t @ w + b.reshape(1, 2)
    scale = style[:, 0:1]
    shift = style[:, 1:2]
    mean = jnp.mean(x, axis=-1, keepdims=True)
    d = x.shape[-1]
    var = jnp.sum((x - mean) ** 2, axis=-1, keepdims=True) / (d - 1)
    std = jnp.sqrt(var) + 1e-6
    return (x - mean) / std * scale + shift


if __name__ == "__main__":
    N, latent_dim, style_dim = 256, 32, 16

    key = jax.random.PRNGKey(0)
    kx, kt, kw, kb = jax.random.split(key, 4)
    x = jax.random.normal(kx, (N, latent_dim), dtype=jnp.float32)
    t = jax.random.normal(kt, (N, style_dim), dtype=jnp.float32)
    # deterministic "Linear(style_dim, 2)" params stored as (in_dim, out_dim)
    bound = 1.0 / (style_dim ** 0.5)
    w = jax.random.uniform(kw, (style_dim, 2), jnp.float32, -bound, bound)
    b = jax.random.uniform(kb, (2,), jnp.float32, -bound, bound)

    out = jax.block_until_ready(adain(x, t, w, b))
    ref = adain_ref(x, t, w, b)

    assert out.shape == (N, latent_dim), out.shape
    err = jnp.max(jnp.abs(out - ref))
    assert jnp.allclose(out, ref, atol=1e-4, rtol=1e-4), f"max err {err}"
    print("KERNEL_OK")
</pallas_src>

<mosaic_0001>
module attributes {stable_mosaic.version = 11 : i64} {
  func.func @_adain_kernel(%arg0: i32, %arg1: memref<64x128xf32, #tpu.memory_space<vmem>>, %arg2: memref<64x64xf32, #tpu.memory_space<vmem>>, %arg3: memref<64x4xf32, #tpu.memory_space<vmem>>, %arg4: memref<64x4xf32, #tpu.memory_space<vmem>>, %arg5: memref<2xf32, #tpu.memory_space<smem>>, %arg6: memref<64x128xf32, #tpu.memory_space<vmem>>) attributes {dimension_semantics = [#tpu.dimension_semantics<parallel>], iteration_bounds = array<i64: 1>, scalar_prefetch = 0 : i64, scratch_operands = 0 : i64, tpu.core_type = #tpu.core_type<tc>, window_params = [{transform_indices = @transform_0, window_bounds = array<i64: 64, 128>}, {transform_indices = @transform_1, window_bounds = array<i64: 64, 64>}, {pipeline_mode = #tpu.pipeline_mode<synchronous>, transform_indices = @transform_2, window_bounds = array<i64: 64, 4>}, {pipeline_mode = #tpu.pipeline_mode<synchronous>, transform_indices = @transform_3, window_bounds = array<i64: 64, 4>}, {transform_indices = @transform_4, window_bounds = array<i64: 2>}, {transform_indices = @transform_5, window_bounds = array<i64: 64, 128>}]} {
    %c0 = arith.constant 0 : index
    %c0_0 = arith.constant 0 : index
    %0 = vector.load %arg1[%c0, %c0_0] : memref<64x128xf32, #tpu.memory_space<vmem>>, vector<64x128xf32>
    %1 = tpu.iota {dimensions = array<i32: 0>} : vector<128x4xi32>
    %2 = tpu.iota {dimensions = array<i32: 1>} : vector<128x4xi32>
    %c32_i32 = arith.constant 32 : i32
    %3 = vector.broadcast %c32_i32 : i32 to vector<128x4xi32>
    %4 = arith.muli %2, %3 : vector<128x4xi32>
    %5 = arith.cmpi sge, %1, %4 : vector<128x4xi32>
    %c32_i32_1 = arith.constant 32 : i32
    %6 = vector.broadcast %c32_i32_1 : i32 to vector<128x4xi32>
    %7 = arith.addi %4, %6 : vector<128x4xi32>
    %8 = arith.cmpi slt, %1, %7 : vector<128x4xi32>
    %9 = arith.andi %5, %8 : vector<128x4xi1>
    %10 = arith.extui %9 : vector<128x4xi1> to vector<128x4xi32>
    %11 = arith.sitofp %10 : vector<128x4xi32> to vector<128x4xf32>
    %12 = tpu.iota {dimensions = array<i32: 0>} : vector<4x128xi32>
    %13 = tpu.iota {dimensions = array<i32: 1>} : vector<4x128xi32>
    %c32_i32_2 = arith.constant 32 : i32
    %14 = vector.broadcast %c32_i32_2 : i32 to vector<4x128xi32>
    %15 = arith.muli %12, %14 : vector<4x128xi32>
    %16 = arith.cmpi sge, %13, %15 : vector<4x128xi32>
    %c32_i32_3 = arith.constant 32 : i32
    %17 = vector.broadcast %c32_i32_3 : i32 to vector<4x128xi32>
    %18 = arith.addi %15, %17 : vector<4x128xi32>
    %19 = arith.cmpi slt, %13, %18 : vector<4x128xi32>
    %20 = arith.andi %16, %19 : vector<4x128xi1>
    %21 = arith.extui %20 : vector<4x128xi1> to vector<4x128xi32>
    %22 = arith.sitofp %21 : vector<4x128xi32> to vector<4x128xf32>
    %cst = arith.constant dense<0.000000e+00> : vector<64x4xf32>
    %23 = tpu.matmul %0, %11, %cst {dimension_numbers = #tpu.dot_dimension_numbers<[1], [0], [0], [1], [0, 0, 1, 1], [], []>, precision = #tpu.contract_precision<fp32>} : vector<64x128xf32>, vector<128x4xf32>, vector<64x4xf32> -> vector<64x4xf32>
    %cst_4 = arith.constant 3.125000e-02 : f32
    %24 = vector.broadcast %cst_4 : f32 to vector<64x4xf32>
    %25 = arith.mulf %23, %24 : vector<64x4xf32>
    %cst_5 = arith.constant dense<0.000000e+00> : vector<64x128xf32>
    %26 = tpu.matmul %25, %22, %cst_5 {dimension_numbers = #tpu.dot_dimension_numbers<[1], [0], [0], [1], [0, 0, 1, 1], [], []>, precision = #tpu.contract_precision<fp32>} : vector<64x4xf32>, vector<4x128xf32>, vector<64x128xf32> -> vector<64x128xf32>
    %27 = arith.subf %0, %26 : vector<64x128xf32>
    %28 = arith.mulf %27, %27 : vector<64x128xf32>
    %cst_6 = arith.constant dense<0.000000e+00> : vector<64x4xf32>
    %29 = tpu.matmul %28, %11, %cst_6 {dimension_numbers = #tpu.dot_dimension_numbers<[1], [0], [0], [1], [0, 0, 1, 1], [], []>, precision = #tpu.contract_precision<fp32>} : vector<64x128xf32>, vector<128x4xf32>, vector<64x4xf32> -> vector<64x4xf32>
    %cst_7 = arith.constant 0.0322580636 : f32
    %30 = vector.broadcast %cst_7 : f32 to vector<64x4xf32>
    %31 = arith.mulf %29, %30 : vector<64x4xf32>
    %32 = math.sqrt %31 : vector<64x4xf32>
    %cst_8 = arith.constant 9.99999997E-7 : f32
    %33 = vector.broadcast %cst_8 : f32 to vector<64x4xf32>
    %34 = arith.addf %32, %33 : vector<64x4xf32>
    %c0_9 = arith.constant 0 : index
    %c0_10 = arith.constant 0 : index
    %35 = vector.load %arg2[%c0_9, %c0_10] : memref<64x64xf32, #tpu.memory_space<vmem>>, vector<64x64xf32>
    %c0_11 = arith.constant 0 : index
    %c0_12 = arith.constant 0 : index
    %36 = vector.load %arg3[%c0_11, %c0_12] : memref<64x4xf32, #tpu.memory_space<vmem>>, vector<64x4xf32>
    %cst_13 = arith.constant dense<0.000000e+00> : vector<64x4xf32>
    %37 = tpu.matmul %35, %36, %cst_13 {dimension_numbers = #tpu.dot_dimension_numbers<[1], [0], [0], [1], [0, 0, 1, 1], [], []>, precision = #tpu.contract_precision<fp32>} : vector<64x64xf32>, vector<64x4xf32>, vector<64x4xf32> -> vector<64x4xf32>
    %c0_14 = arith.constant 0 : index
    %38 = memref.load %arg5[%c0_14] : memref<2xf32, #tpu.memory_space<smem>>
    %39 = vector.broadcast %38 : f32 to vector<64x4xf32>
    %40 = arith.addf %37, %39 : vector<64x4xf32>
    %c0_15 = arith.constant 0 : index
    %c0_16 = arith.constant 0 : index
    %41 = vector.load %arg4[%c0_15, %c0_16] : memref<64x4xf32, #tpu.memory_space<vmem>>, vector<64x4xf32>
    %cst_17 = arith.constant dense<0.000000e+00> : vector<64x4xf32>
    %42 = tpu.matmul %35, %41, %cst_17 {dimension_numbers = #tpu.dot_dimension_numbers<[1], [0], [0], [1], [0, 0, 1, 1], [], []>, precision = #tpu.contract_precision<fp32>} : vector<64x64xf32>, vector<64x4xf32>, vector<64x4xf32> -> vector<64x4xf32>
    %c1 = arith.constant 1 : index
    %43 = memref.load %arg5[%c1] : memref<2xf32, #tpu.memory_space<smem>>
    %44 = vector.broadcast %43 : f32 to vector<64x4xf32>
    %45 = arith.addf %42, %44 : vector<64x4xf32>
    %46 = tpu.reciprocal %34 : vector<64x4xf32> -> vector<64x4xf32>
    %47 = arith.mulf %40, %46 : vector<64x4xf32>
    %cst_18 = arith.constant dense<0.000000e+00> : vector<64x128xf32>
    %48 = tpu.matmul %47, %22, %cst_18 {dimension_numbers = #tpu.dot_dimension_numbers<[1], [0], [0], [1], [0, 0, 1, 1], [], []>, precision = #tpu.contract_precision<fp32>} : vector<64x4xf32>, vector<4x128xf32>, vector<64x128xf32> -> vector<64x128xf32>
    %cst_19 = arith.constant dense<0.000000e+00> : vector<64x128xf32>
    %49 = tpu.matmul %45, %22, %cst_19 {dimension_numbers = #tpu.dot_dimension_numbers<[1], [0], [0], [1], [0, 0, 1, 1], [], []>, precision = #tpu.contract_precision<fp32>} : vector<64x4xf32>, vector<4x128xf32>, vector<64x128xf32> -> vector<64x128xf32>
    %50 = arith.mulf %27, %48 : vector<64x128xf32>
    %51 = arith.addf %50, %49 : vector<64x128xf32>
    %c0_20 = arith.constant 0 : index
    %c0_21 = arith.constant 0 : index
    %52 = vector.load %arg6[%c0_20, %c0_21] : memref<64x128xf32, #tpu.memory_space<vmem>>, vector<64x128xf32>
    tpu.vector_store %arg6[%c0_20, %c0_21], %51 {strides = array<i32>} : memref<64x128xf32, #tpu.memory_space<vmem>>, vector<64x128xf32>,
    return
  }
  func.func @transform_0(%arg0: i32) -> (i32, i32) {
    %c0_i32 = arith.constant 0 : i32
    %c0_i32_0 = arith.constant 0 : i32
    return %arg0, %c0_i32 : i32, i32
  }
  func.func @transform_1(%arg0: i32) -> (i32, i32) {
    %c0_i32 = arith.constant 0 : i32
    %c0_i32_0 = arith.constant 0 : i32
    return %arg0, %c0_i32 : i32, i32
  }
  func.func @transform_2(%arg0: i32) -> (i32, i32) {
    %c0_i32 = arith.constant 0 : i32
    %c0_i32_0 = arith.constant 0 : i32
    %c0_i32_1 = arith.constant 0 : i32
    return %c0_i32, %c0_i32_0 : i32, i32
  }
  func.func @transform_3(%arg0: i32) -> (i32, i32) {
    %c0_i32 = arith.constant 0 : i32
    %c0_i32_0 = arith.constant 0 : i32
    %c0_i32_1 = arith.constant 0 : i32
    return %c0_i32, %c0_i32_0 : i32, i32
  }
  func.func @transform_4(%arg0: i32) -> i32 {
    %c0_i32 = arith.constant 0 : i32
    %c0_i32_0 = arith.constant 0 : i32
    return %c0_i32 : i32
  }
  func.func @transform_5(%arg0: i32) -> (i32, i32) {
    %c0_i32 = arith.constant 0 : i32
    %c0_i32_0 = arith.constant 0 : i32
    return %arg0, %c0_i32 : i32, i32
  }
}

</mosaic_0001>

<llo_original>
// kernel: tpu_custom_call.1
$region0: #{tpu_custom_call.1}
  #allocation0 [shape = 'u32[]', space=smem, size = 0x4, offset = 0x4, fixed_abs, tag = 'smem constant byte address 0x4 - core index']
  #allocation1 [shape = 'u32[144,128]{1,0:T(1,128)}', space=vmem, size = 0x12000, scoped, tag = 'internal scratch']
  %s0 = inlined_call_operand.vmem [shape: f32[64,128], index: 0, kind: input, shape index: {}]
  %s1 = inlined_call_operand.vmem [shape: f32[64,64], index: 1, kind: input, shape index: {}]
  %s2 = inlined_call_operand.vmem [shape: f32[64,4], index: 2, kind: input, shape index: {}]
  %s3 = inlined_call_operand.vmem [shape: f32[64,4], index: 3, kind: input, shape index: {}]
  %s4 = inlined_call_operand.vmem [shape: f32[2], index: 4, kind: input, shape index: {}]
  %s5 = inlined_call_operand.hbm [shape: f32[64,128], index: 5, kind: output, shape index: {}]
  %s6 = sld [smem:[#allocation0]]
  $region34: #{tpu_custom_call.1} parent=0
    _
  %s8 = ssub.s32 1, %s6
  %s9 = scalar_select 0, %s8, %s6
  $region1: #{tpu_custom_call.1} parent=0
    #allocation2 [shape = 'u8[512]{0}', space=smem, size = 0x200, scoped, tag = 'input window, operand 4, single buffered']
    #allocation3 [shape = 's32[1]{0}', space=sflag, size = 0x4, scoped, tag = 'scoped memory for tpu_custom_call.1']
    #allocation4 [shape = 's32[1]{0}', space=sflag, size = 0x4, scoped, tag = 'scoped memory for tpu_custom_call.1']
    #allocation5 [shape = 'u8[32768]{0}', space=vmem, size = 0x8000, scoped, tag = 'output window, operand 0, single buffered']
    %10 = vsyncpa [#allocation4], 0
    %11 = vsyncpa [#allocation3], 0
    // Predicated region
    $region2: #{tpu_custom_call.1} parent=1 // pred_check
      _
    $region3: #{tpu_custom_call.1} parent=1 // pred_check_branch
      %13 = sbr.rel (0) target = $region5
    $region4: #{tpu_custom_call.1} parent=1 // pred_region
      _
    $region5: #{tpu_custom_call.1} parent=1 // pred_fallthru
      _
    // Predicated region
    $region6: #{tpu_custom_call.1} parent=1 // pred_check
      _
    $region7: #{tpu_custom_call.1} parent=1 // pred_check_branch
      %15 = sbr.rel (0) target = $region9
    $region8: #{tpu_custom_call.1} parent=1 // pred_region
      _
    $region9: #{tpu_custom_call.1} parent=1 // pred_fallthru
      _
    // Predicated region
    $region10: #{tpu_custom_call.1} parent=1 // pred_check
      _
    $region11: #{tpu_custom_call.1} parent=1 // pred_check_branch
      %17 = sbr.rel (0) target = $region13
    $region12: #{tpu_custom_call.1} parent=1 // pred_region
      _
    $region13: #{tpu_custom_call.1} parent=1 // pred_fallthru
      _
    // Predicated region
    $region14: #{tpu_custom_call.1} parent=1 // pred_check
      _
    $region15: #{tpu_custom_call.1} parent=1 // pred_check_branch
      %19 = sbr.rel (0) target = $region17
    $region16: #{tpu_custom_call.1} parent=1 // pred_region
      _
    $region17: #{tpu_custom_call.1} parent=1 // pred_fallthru
      _
    // Predicated region
    $region18: #{tpu_custom_call.1} parent=1 // pred_check
      _
    $region19: #{tpu_custom_call.1} parent=1 // pred_check_branch
      %21 = sbr.rel (0) target = $region21
    $region20: #{tpu_custom_call.1} parent=1 // pred_region
      %s23 = ssub.s32 16, 16
      %24 = vsyncadd [#allocation4], %s23
      %s26 = sshll.u32 %s4, 4
      %s27 = int_to_ptr.vmem [resolvable:$true] %s26
      %29 = dma.vmem_to_smem %s27, 16, [#allocation2], [#allocation4]
    $region21: #{tpu_custom_call.1} parent=1 // pred_fallthru
      _
    // Predicated region
    $region22: #{tpu_custom_call.1} parent=1 // pred_check
      _
    $region23: #{tpu_custom_call.1} parent=1 // pred_check_branch
      %31 = sbr.rel (0) target = $region25
    $region24: #{tpu_custom_call.1} parent=1 // pred_region
      %32 = dma.done [#allocation4], 16
    $region25: #{tpu_custom_call.1} parent=1 // pred_fallthru
      _
    %33 = sfence
    %v34 = vld [vmem:[%s0] sm:$0xff]
    %v35 = vld [vmem:[%s0 + $0x8] sm:$0xff]
    %v36 = vld [vmem:[%s0 + $0x10] sm:$0xff]
    %v37 = vld [vmem:[%s0 + $0x18] sm:$0xff]
    %v38 = vld [vmem:[%s0 + $0x20] sm:$0xff]
    %v39 = vld [vmem:[%s0 + $0x28] sm:$0xff]
    %v40 = vld [vmem:[%s0 + $0x30] sm:$0xff]
    %v41 = vld [vmem:[%s0 + $0x38] sm:$0xff]
    %v42 = vlaneseq
    %v43 = vshrl.u32 %v42, 7
    %v44 = vadd.s32 %v43, 8
    %v45 = vadd.s32 %v43, 16
    %v46 = vadd.s32 %v43, 24
    %v47 = vadd.s32 %v43, 32
    %v48 = vadd.s32 %v43, 40
    %v49 = vadd.s32 %v43, 48
    %v50 = vadd.s32 %v43, 56
    %v51 = vadd.s32 %v43, 64
    %v52 = vadd.s32 %v43, 72
    %v53 = vadd.s32 %v43, 80
    %v54 = vadd.s32 %v43, 88
    %v55 = vadd.s32 %v43, 96
    %v56 = vadd.s32 %v43, 104
    %v57 = vadd.s32 %v43, 112
    %v58 = vadd.s32 %v43, 120
    %v59 = vlaneseq
    %v60 = vand.u32 %v59, 127
    %v61 = vmul.u32 %v60, 32
    %vm62 = vcmp.ge.s32.totalorder %v43, %v61
    %vm63 = vcmp.ge.s32.totalorder %v44, %v61
    %vm64 = vcmp.ge.s32.totalorder %v45, %v61
    %vm65 = vcmp.ge.s32.totalorder %v46, %v61
    %vm66 = vcmp.ge.s32.totalorder %v47, %v61
    %vm67 = vcmp.ge.s32.totalorder %v48, %v61
    %vm68 = vcmp.ge.s32.totalorder %v49, %v61
    %vm69 = vcmp.ge.s32.totalorder %v50, %v61
    %vm70 = vcmp.ge.s32.totalorder %v51, %v61
    %vm71 = vcmp.ge.s32.totalorder %v52, %v61
    %vm72 = vcmp.ge.s32.totalorder %v53, %v61
    %vm73 = vcmp.ge.s32.totalorder %v54, %v61
    %vm74 = vcmp.ge.s32.totalorder %v55, %v61
    %vm75 = vcmp.ge.s32.totalorder %v56, %v61
    %vm76 = vcmp.ge.s32.totalorder %v57, %v61
    %vm77 = vcmp.ge.s32.totalorder %v58, %v61
    %v78 = vadd.s32 %v61, 32
    %vm79 = vcmp.lt.s32.totalorder %v43, %v78
    %vm80 = vcmp.lt.s32.totalorder %v44, %v78
    %vm81 = vcmp.lt.s32.totalorder %v45, %v78
    %vm82 = vcmp.lt.s32.totalorder %v46, %v78
    %vm83 = vcmp.lt.s32.totalorder %v47, %v78
    %vm84 = vcmp.lt.s32.totalorder %v48, %v78
    %vm85 = vcmp.lt.s32.totalorder %v49, %v78
    %vm86 = vcmp.lt.s32.totalorder %v50, %v78
    %vm87 = vcmp.lt.s32.totalorder %v51, %v78
    %vm88 = vcmp.lt.s32.totalorder %v52, %v78
    %vm89 = vcmp.lt.s32.totalorder %v53, %v78
    %vm90 = vcmp.lt.s32.totalorder %v54, %v78
    %vm91 = vcmp.lt.s32.totalorder %v55, %v78
    %vm92 = vcmp.lt.s32.totalorder %v56, %v78
    %vm93 = vcmp.lt.s32.totalorder %v57, %v78
    %vm94 = vcmp.lt.s32.totalorder %v58, %v78
    %vm95 = vmand %vm62, %vm79
    %vm96 = vmand %vm63, %vm80
    %vm97 = vmand %vm64, %vm81
    %vm98 = vmand %vm65, %vm82
    %vm99 = vmand %vm66, %vm83
    %vm100 = vmand %vm67, %vm84
    %vm101 = vmand %vm68, %vm85
    %vm102 = vmand %vm69, %vm86
    %vm103 = vmand %vm70, %vm87
    %vm104 = vmand %vm71, %vm88
    %vm105 = vmand %vm72, %vm89
    %vm106 = vmand %vm73, %vm90
    %vm107 = vmand %vm74, %vm91
    %vm108 = vmand %vm75, %vm92
    %vm109 = vmand %vm76, %vm93
    %vm110 = vmand %vm77, %vm94
    %v111 = vsel %vm95, 1, 0
    %v112 = vsel %vm96, 1, 0
    %v113 = vsel %vm97, 1, 0
    %v114 = vsel %vm98, 1, 0
    %v115 = vsel %vm99, 1, 0
    %v116 = vsel %vm100, 1, 0
    %v117 = vsel %vm101, 1, 0
    %v118 = vsel %vm102, 1, 0
    %v119 = vsel %vm103, 1, 0
    %v120 = vsel %vm104, 1, 0
    %v121 = vsel %vm105, 1, 0
    %v122 = vsel %vm106, 1, 0
    %v123 = vsel %vm107, 1, 0
    %v124 = vsel %vm108, 1, 0
    %v125 = vsel %vm109, 1, 0
    %v126 = vsel %vm110, 1, 0
    %v127 = vcvt.s32.f32 %v111
    %v128 = vcvt.s32.f32 %v112
    %v129 = vcvt.s32.f32 %v113
    %v130 = vcvt.s32.f32 %v114
    %v131 = vcvt.s32.f32 %v115
    %v132 = vcvt.s32.f32 %v116
    %v133 = vcvt.s32.f32 %v117
    %v134 = vcvt.s32.f32 %v118
    %v135 = vcvt.s32.f32 %v119
    %v136 = vcvt.s32.f32 %v120
    %v137 = vcvt.s32.f32 %v121
    %v138 = vcvt.s32.f32 %v122
    %v139 = vcvt.s32.f32 %v123
    %v140 = vcvt.s32.f32 %v124
    %v141 = vcvt.s32.f32 %v125
    %v142 = vcvt.s32.f32 %v126
    %v143 = vmul.u32 %v43, 32
    %vm144 = vcmp.ge.s32.totalorder %v60, %v143
    %v145 = vadd.s32 %v143, 32
    %vm146 = vcmp.lt.s32.totalorder %v60, %v145
    %vm147 = vmand %vm144, %vm146
    %v148 = vsel %vm147, 1, 0
    %v149 = vcvt.s32.f32 %v148
    %150 = vmatprep.subr.mxu0 0.0
    %v151 = vand.u32 %v127, 4294901760
    %152 = vmatpush1.msra.mxu0 %v151
    %153 = vmatprep.subr.mxu0 0.0
    %v154 = vand.u32 %v128, 4294901760
    %155 = vmatpush1.msra.mxu0 %v154
    %156 = vmatprep.subr.mxu0 0.0
    %v157 = vand.u32 %v129, 4294901760
    %158 = vmatpush1.msra.mxu0 %v157
    %159 = vmatprep.subr.mxu0 0.0
    %v160 = vand.u32 %v130, 4294901760
    %161 = vmatpush1.msra.mxu0 %v160
    %162 = vmatprep.subr.mxu0 0.0
    %v163 = vand.u32 %v131, 4294901760
    %164 = vmatpush1.msra.mxu0 %v163
    %165 = vmatprep.subr.mxu0 0.0
    %v166 = vand.u32 %v132, 4294901760
    %167 = vmatpush1.msra.mxu0 %v166
    %168 = vmatprep.subr.mxu0 0.0
    %v169 = vand.u32 %v133, 4294901760
    %170 = vmatpush1.msra.mxu0 %v169
    %171 = vmatprep.subr.mxu0 0.0
    %v172 = vand.u32 %v134, 4294901760
    %173 = vmatpush1.msra.mxu0 %v172
    %174 = vmatprep.subr.mxu0 0.0
    %v175 = vand.u32 %v135, 4294901760
    %176 = vmatpush1.msra.mxu0 %v175
    %177 = vmatprep.subr.mxu0 0.0
    %v178 = vand.u32 %v136, 4294901760
    %179 = vmatpush1.msra.mxu0 %v178
    %180 = vmatprep.subr.mxu0 0.0
    %v181 = vand.u32 %v137, 4294901760
    %182 = vmatpush1.msra.mxu0 %v181
    %183 = vmatprep.subr.mxu0 0.0
    %v184 = vand.u32 %v138, 4294901760
    %185 = vmatpush1.msra.mxu0 %v184
    %186 = vmatprep.subr.mxu0 0.0
    %v187 = vand.u32 %v139, 4294901760
    %188 = vmatpush1.msra.mxu0 %v187
    %189 = vmatprep.subr.mxu0 0.0
    %v190 = vand.u32 %v140, 4294901760
    %191 = vmatpush1.msra.mxu0 %v190
    %192 = vmatprep.subr.mxu0 0.0
    %v193 = vand.u32 %v141, 4294901760
    %194 = vmatpush1.msra.mxu0 %v193
    %195 = vmatprep.subr.mxu0 0.0
    %v196 = vand.u32 %v142, 4294901760
    %197 = vmatpush1.msra.mxu0 %v196
    %198 = vmatprep.subr.mxu0 0.0
    %199 = vmatpush1.msra.mxu0 0.0
    %200 = vmatprep.subr.mxu0 0.0
    %201 = vmatpush1.msra.mxu0 0.0
    %202 = vmatprep.subr.mxu0 0.0
    %203 = vmatpush1.msra.mxu0 0.0
    %204 = vmatprep.subr.mxu0 0.0
    %205 = vmatpush1.msra.mxu0 0.0
    %206 = vmatprep.subr.mxu0 0.0
    %207 = vmatpush1.msra.mxu0 0.0
    %208 = vmatprep.subr.mxu0 0.0
    %209 = vmatpush1.msra.mxu0 0.0
    %210 = vmatprep.subr.mxu0 0.0
    %211 = vmatpush1.msra.mxu0 0.0
    %212 = vmatprep.subr.mxu0 0.0
    %213 = vmatpush1.msra.mxu0 0.0
    %214 = vmatprep.subr.mxu0 0.0
    %215 = vmatpush1.msra.mxu0 0.0
    %216 = vmatprep.subr.mxu0 0.0
    %217 = vmatpush1.msra.mxu0 0.0
    %218 = vmatprep.subr.mxu0 0.0
    %219 = vmatpush1.msra.mxu0 0.0
    %220 = vmatprep.subr.mxu0 0.0
    %221 = vmatpush1.msra.mxu0 0.0
    %222 = vmatprep.subr.mxu0 0.0
    %223 = vmatpush1.msra.mxu0 0.0
    %224 = vmatprep.subr.mxu0 0.0
    %225 = vmatpush1.msra.mxu0 0.0
    %226 = vmatprep.subr.mxu0 0.0
    %227 = vmatpush1.msra.mxu0 0.0
    %228 = vmatprep.subr.mxu0 0.0
    %229 = vmatpush1.msra.mxu0 0.0
    %230 = vmatprep.mubr.f32.mxu0 0.0
    %v231 = vand.u32 %v34, 4294901760
    %v232 = vsub.f32 %v34, %v231
    %v233 = vand.u32 %v232, 4294901760
    %v234 = vsub.f32 %v232, %v233
    %v235 = vand.u32 %v234, 4294901760
    %236 = vmatmul.mubr.f32.gmra.mrb[0].mxu0 %v235
    %v237 = vpop.f32.mrb[0].mxu0
    %v238 = vadd.f32 0.0, %v237
    %v239 = vpop.f32.mrb[0].mxu0
    %240 = vmatprep.mubr.f32.mxu0 0.0
    %v241 = vand.u32 %v35, 4294901760
    %v242 = vsub.f32 %v35, %v241
    %v243 = vand.u32 %v242, 4294901760
    %v244 = vsub.f32 %v242, %v243
    %v245 = vand.u32 %v244, 4294901760
    %246 = vmatmul.mubr.f32.gmra.mrb[0].mxu0 %v245
    %v247 = vpop.f32.mrb[0].mxu0
    %v248 = vadd.f32 0.0, %v247
    %v249 = vpop.f32.mrb[0].mxu0
    %250 = vmatprep.mubr.f32.mxu0 0.0
    %v251 = vand.u32 %v36, 4294901760
    %v252 = vsub.f32 %v36, %v251
    %v253 = vand.u32 %v252, 4294901760
    %v254 = vsub.f32 %v252, %v253
    %v255 = vand.u32 %v254, 4294901760
    %256 = vmatmul.mubr.f32.gmra.mrb[0].mxu0 %v255
    %v257 = vpop.f32.mrb[0].mxu0
    %v258 = vadd.f32 0.0, %v257
    %v259 = vpop.f32.mrb[0].mxu0
    %260 = vmatprep.mubr.f32.mxu0 0.0
    %v261 = vand.u32 %v37, 4294901760
    %v262 = vsub.f32 %v37, %v261
    %v263 = vand.u32 %v262, 4294901760
    %v264 = vsub.f32 %v262, %v263
    %v265 = vand.u32 %v264, 4294901760
    %266 = vmatmul.mubr.f32.gmra.mrb[0].mxu0 %v265
    %v267 = vpop.f32.mrb[0].mxu0
    %v268 = vadd.f32 0.0, %v267
    %v269 = vpop.f32.mrb[0].mxu0
    %270 = vmatprep.mubr.f32.mxu0 0.0
    %v271 = vand.u32 %v38, 4294901760
    %v272 = vsub.f32 %v38, %v271
    %v273 = vand.u32 %v272, 4294901760
    %v274 = vsub.f32 %v272, %v273
    %v275 = vand.u32 %v274, 4294901760
    %276 = vmatmul.mubr.f32.gmra.mrb[0].mxu0 %v275
    %v277 = vpop.f32.mrb[0].mxu0
    %v278 = vadd.f32 0.0, %v277
    %v279 = vpop.f32.mrb[0].mxu0
    %280 = vmatprep.mubr.f32.mxu0 0.0
    %v281 = vand.u32 %v39, 4294901760
    %v282 = vsub.f32 %v39, %v281
    %v283 = vand.u32 %v282, 4294901760
    %v284 = vsub.f32 %v282, %v283
    %v285 = vand.u32 %v284, 4294901760
    %286 = vmatmul.mubr.f32.gmra.mrb[0].mxu0 %v285
    %v287 = vpop.f32.mrb[0].mxu0
    %v288 = vadd.f32 0.0, %v287
    %v289 = vpop.f32.mrb[0].mxu0
    %290 = vmatprep.mubr.f32.mxu0 0.0
    %v291 = vand.u32 %v40, 4294901760
    %v292 = vsub.f32 %v40, %v291
    %v293 = vand.u32 %v292, 4294901760
    %v294 = vsub.f32 %v292, %v293
    %v295 = vand.u32 %v294, 4294901760
    %296 = vmatmul.mubr.f32.gmra.mrb[0].mxu0 %v295
    %v297 = vpop.f32.mrb[0].mxu0
    %v298 = vadd.f32 0.0, %v297
    %v299 = vpop.f32.mrb[0].mxu0
    %300 = vmatprep.mubr.f32.mxu0 0.0
    %v301 = vand.u32 %v41, 4294901760
    %v302 = vsub.f32 %v41, %v301
    %v303 = vand.u32 %v302, 4294901760
    %v304 = vsub.f32 %v302, %v303
    %v305 = vand.u32 %v304, 4294901760
    %306 = vmatmul.mubr.f32.gmra.mrb[0].mxu0 %v305
    %v307 = vpop.f32.mrb[0].mxu0
    %v308 = vadd.f32 0.0, %v307
    %v309 = vpop.f32.mrb[0].mxu0
    %310 = vdwg.mxu0
    %311 = vmatprep.subr.mxu0 0.0
    %v312 = vand.u32 %v127, 4294901760
    %v313 = vsub.f32 %v127, %v312
    %v314 = vand.u32 %v313, 4294901760
    %v315 = vsub.f32 %v313, %v314
    %v316 = vand.u32 %v315, 4294901760
    %317 = vmatpush1.msra.mxu0 %v316
    %318 = vmatprep.subr.mxu0 0.0
    %v319 = vand.u32 %v128, 4294901760
    %v320 = vsub.f32 %v128, %v319
    %v321 = vand.u32 %v320, 4294901760
    %v322 = vsub.f32 %v320, %v321
    %v323 = vand.u32 %v322, 4294901760
    %324 = vmatpush1.msra.mxu0 %v323
    %325 = vmatprep.subr.mxu0 0.0
    %v326 = vand.u32 %v129, 4294901760
    %v327 = vsub.f32 %v129, %v326
    %v328 = vand.u32 %v327, 4294901760
    %v329 = vsub.f32 %v327, %v328
    %v330 = vand.u32 %v329, 4294901760
    %331 = vmatpush1.msra.mxu0 %v330
    %332 = vmatprep.subr.mxu0 0.0
    %v333 = vand.u32 %v130, 4294901760
    %v334 = vsub.f32 %v130, %v333
    %v335 = vand.u32 %v334, 4294901760
    %v336 = vsub.f32 %v334, %v335
    %v337 = vand.u32 %v336, 4294901760
    %338 = vmatpush1.msra.mxu0 %v337
    %339 = vmatprep.subr.mxu0 0.0
    %v340 = vand.u32 %v131, 4294901760
    %v341 = vsub.f32 %v131, %v340
    %v342 = vand.u32 %v341, 4294901760
    %v343 = vsub.f32 %v341, %v342
    %v344 = vand.u32 %v343, 4294901760
    %345 = vmatpush1.msra.mxu0 %v344
    %346 = vmatprep.subr.mxu0 0.0
    %v347 = vand.u32 %v132, 4294901760
    %v348 = vsub.f32 %v132, %v347
    %v349 = vand.u32 %v348, 4294901760
    %v350 = vsub.f32 %v348, %v349
    %v351 = vand.u32 %v350, 4294901760
    %352 = vmatpush1.msra.mxu0 %v351
    %353 = vmatprep.subr.mxu0 0.0
    %v354 = vand.u32 %v133, 4294901760
    %v355 = vsub.f32 %v133, %v354
    %v356 = vand.u32 %v355, 4294901760
    %v357 = vsub.f32 %v355, %v356
    %v358 = vand.u32 %v357, 4294901760
    %359 = vmatpush1.msra.mxu0 %v358
    %360 = vmatprep.subr.mxu0 0.0
    %v361 = vand.u32 %v134, 4294901760
    %v362 = vsub.f32 %v134, %v361
    %v363 = vand.u32 %v362, 4294901760
    %v364 = vsub.f32 %v362, %v363
    %v365 = vand.u32 %v364, 4294901760
    %366 = vmatpush1.msra.mxu0 %v365
    %367 = vmatprep.subr.mxu0 0.0
    %v368 = vand.u32 %v135, 4294901760
    %v369 = vsub.f32 %v135, %v368
    %v370 = vand.u32 %v369, 4294901760
    %v371 = vsub.f32 %v369, %v370
    %v372 = vand.u32 %v371, 4294901760
    %373 = vmatpush1.msra.mxu0 %v372
    %374 = vmatprep.subr.mxu0 0.0
    %v375 = vand.u32 %v136, 4294901760
    %v376 = vsub.f32 %v136, %v375
    %v377 = vand.u32 %v376, 4294901760
    %v378 = vsub.f32 %v376, %v377
    %v379 = vand.u32 %v378, 4294901760
    %380 = vmatpush1.msra.mxu0 %v379
    %381 = vmatprep.subr.mxu0 0.0
    %v382 = vand.u32 %v137, 4294901760
    %v383 = vsub.f32 %v137, %v382
    %v384 = vand.u32 %v383, 4294901760
    %v385 = vsub.f32 %v383, %v384
    %v386 = vand.u32 %v385, 4294901760
    %387 = vmatpush1.msra.mxu0 %v386
    %388 = vmatprep.subr.mxu0 0.0
    %v389 = vand.u32 %v138, 4294901760
    %v390 = vsub.f32 %v138, %v389
    %v391 = vand.u32 %v390, 4294901760
    %v392 = vsub.f32 %v390, %v391
    %v393 = vand.u32 %v392, 4294901760
    %394 = vmatpush1.msra.mxu0 %v393
    %395 = vmatprep.subr.mxu0 0.0
    %v396 = vand.u32 %v139, 4294901760
    %v397 = vsub.f32 %v139, %v396
    %v398 = vand.u32 %v397, 4294901760
    %v399 = vsub.f32 %v397, %v398
    %v400 = vand.u32 %v399, 4294901760
    %401 = vmatpush1.msra.mxu0 %v400
    %402 = vmatprep.subr.mxu0 0.0
    %v403 = vand.u32 %v140, 4294901760
    %v404 = vsub.f32 %v140, %v403
    %v405 = vand.u32 %v404, 4294901760
    %v406 = vsub.f32 %v404, %v405
    %v407 = vand.u32 %v406, 4294901760
    %408 = vmatpush1.msra.mxu0 %v407
    %409 = vmatprep.subr.mxu0 0.0
    %v410 = vand.u32 %v141, 4294901760
    %v411 = vsub.f32 %v141, %v410
    %v412 = vand.u32 %v411, 4294901760
    %v413 = vsub.f32 %v411, %v412
    %v414 = vand.u32 %v413, 4294901760
    %415 = vmatpush1.msra.mxu0 %v414
    %416 = vmatprep.subr.mxu0 0.0
    %v417 = vand.u32 %v142, 4294901760
    %v418 = vsub.f32 %v142, %v417
    %v419 = vand.u32 %v418, 4294901760
    %v420 = vsub.f32 %v418, %v419
    %v421 = vand.u32 %v420, 4294901760
    %422 = vmatpush1.msra.mxu0 %v421
    %423 = vmatprep.subr.mxu0 0.0
    %424 = vmatpush1.msra.mxu0 0.0
    %425 = vmatprep.subr.mxu0 0.0
    %426 = vmatpush1.msra.mxu0 0.0
    %427 = vmatprep.subr.mxu0 0.0
    %428 = vmatpush1.msra.mxu0 0.0
    %429 = vmatprep.subr.mxu0 0.0
    %430 = vmatpush1.msra.mxu0 0.0
    %431 = vmatprep.subr.mxu0 0.0
    %432 = vmatpush1.msra.mxu0 0.0
    %433 = vmatprep.subr.mxu0 0.0
    %434 = vmatpush1.msra.mxu0 0.0
    %435 = vmatprep.subr.mxu0 0.0
    %436 = vmatpush1.msra.mxu0 0.0
    %437 = vmatprep.subr.mxu0 0.0
    %438 = vmatpush1.msra.mxu0 0.0
    %439 = vmatprep.subr.mxu0 0.0
    %440 = vmatpush1.msra.mxu0 0.0
    %441 = vmatprep.subr.mxu0 0.0
    %442 = vmatpush1.msra.mxu0 0.0
    %443 = vmatprep.subr.mxu0 0.0
    %444 = vmatpush1.msra.mxu0 0.0
    %445 = vmatprep.subr.mxu0 0.0
    %446 = vmatpush1.msra.mxu0 0.0
    %447 = vmatprep.subr.mxu0 0.0
    %448 = vmatpush1.msra.mxu0 0.0
    %449 = vmatprep.subr.mxu0 0.0
    %450 = vmatpush1.msra.mxu0 0.0
    %451 = vmatprep.subr.mxu0 0.0
    %452 = vmatpush1.msra.mxu0 0.0
    %453 = vmatprep.subr.mxu0 0.0
    %454 = vmatpush1.msra.mxu0 0.0
    %455 = vmatprep.mubr.f32.mxu0 0.0
    %v456 = vand.u32 %v34, 4294901760
    %457 = vmatmul.mubr.f32.gmra.mrb[0].mxu0 %v456
    %v458 = vpop.f32.mrb[0].mxu0
    %v459 = vadd.f32 %v238, %v458
    %v460 = vpop.f32.mrb[0].mxu0
    %461 = vmatprep.mubr.f32.mxu0 0.0
    %v462 = vand.u32 %v35, 4294901760
    %463 = vmatmul.mubr.f32.gmra.mrb[0].mxu0 %v462
    %v464 = vpop.f32.mrb[0].mxu0
    %v465 = vadd.f32 %v248, %v464
    %v466 = vpop.f32.mrb[0].mxu0
    %467 = vmatprep.mubr.f32.mxu0 0.0
    %v468 = vand.u32 %v36, 4294901760
    %469 = vmatmul.mubr.f32.gmra.mrb[0].mxu0 %v468
    %v470 = vpop.f32.mrb[0].mxu0
    %v471 = vadd.f32 %v258, %v470
    %v472 = vpop.f32.mrb[0].mxu0
    %473 = vmatprep.mubr.f32.mxu0 0.0
    %v474 = vand.u32 %v37, 4294901760
    %475 = vmatmul.mubr.f32.gmra.mrb[0].mxu0 %v474
    %v476 = vpop.f32.mrb[0].mxu0
    %v477 = vadd.f32 %v268, %v476
    %v478 = vpop.f32.mrb[0].mxu0
    %479 = vmatprep.mubr.f32.mxu0 0.0
    %v480 = vand.u32 %v38, 4294901760
    %481 = vmatmul.mubr.f32.gmra.mrb[0].mxu0 %v480
    %v482 = vpop.f32.mrb[0].mxu0
    %v483 = vadd.f32 %v278, %v482
    %v484 = vpop.f32.mrb[0].mxu0
    %485 = vmatprep.mubr.f32.mxu0 0.0
    %v486 = vand.u32 %v39, 4294901760
    %487 = vmatmul.mubr.f32.gmra.mrb[0].mxu0 %v486
    %v488 = vpop.f32.mrb[0].mxu0
    %v489 = vadd.f32 %v288, %v488
    %v490 = vpop.f32.mrb[0].mxu0
    %491 = vmatprep.mubr.f32.mxu0 0.0
    %v492 = vand.u32 %v40, 4294901760
    %493 = vmatmul.mubr.f32.gmra.mrb[0].mxu0 %v492
    %v494 = vpop.f32.mrb[0].mxu0
    %v495 = vadd.f32 %v298, %v494
    %v496 = vpop.f32.mrb[0].mxu0
    %497 = vmatprep.mubr.f32.mxu0 0.0
    %v498 = vand.u32 %v41, 4294901760
    %499 = vmatmul.mubr.f32.gmra.mrb[0].mxu0 %v498
    %v500 = vpop.f32.mrb[0].mxu0
    %v501 = vadd.f32 %v308, %v500
    %v502 = vpop.f32.mrb[0].mxu0
    %503 = vdwg.mxu0
    %504 = vmatprep.subr.mxu0 0.0
    %v505 = vand.u32 %v127, 4294901760
    %v506 = vsub.f32 %v127, %v505
    %507 = vmatpush1.msra.mxu0 %v506
    %508 = vmatprep.subr.mxu0 0.0
    %v509 = vand.u32 %v128, 4294901760
    %v510 = vsub.f32 %v128, %v509
    %511 = vmatpush1.msra.mxu0 %v510
    %512 = vmatprep.subr.mxu0 0.0
    %v513 = vand.u32 %v129, 4294901760
    %v514 = vsub.f32 %v129, %v513
    %515 = vmatpush1.msra.mxu0 %v514
    %516 = vmatprep.subr.mxu0 0.0
    %v517 = vand.u32 %v130, 4294901760
    %v518 = vsub.f32 %v130, %v517
    %519 = vmatpush1.msra.mxu0 %v518
    %520 = vmatprep.subr.mxu0 0.0
    %v521 = vand.u32 %v131, 4294901760
    %v522 = vsub.f32 %v131, %v521
    %523 = vmatpush1.msra.mxu0 %v522
    %524 = vmatprep.subr.mxu0 0.0
    %v525 = vand.u32 %v132, 4294901760
    %v526 = vsub.f32 %v132, %v525
    %527 = vmatpush1.msra.mxu0 %v526
    %528 = vmatprep.subr.mxu0 0.0
    %v529 = vand.u32 %v133, 4294901760
    %v530 = vsub.f32 %v133, %v529
    %531 = vmatpush1.msra.mxu0 %v530
    %532 = vmatprep.subr.mxu0 0.0
    %v533 = vand.u32 %v134, 4294901760
    %v534 = vsub.f32 %v134, %v533
    %535 = vmatpush1.msra.mxu0 %v534
    %536 = vmatprep.subr.mxu0 0.0
    %v537 = vand.u32 %v135, 4294901760
    %v538 = vsub.f32 %v135, %v537
    %539 = vmatpush1.msra.mxu0 %v538
    %540 = vmatprep.subr.mxu0 0.0
    %v541 = vand.u32 %v136, 4294901760
    %v542 = vsub.f32 %v136, %v541
    %543 = vmatpush1.msra.mxu0 %v542
    %544 = vmatprep.subr.mxu0 0.0
    %v545 = vand.u32 %v137, 4294901760
    %v546 = vsub.f32 %v137, %v545
    %547 = vmatpush1.msra.mxu0 %v546
    %548 = vmatprep.subr.mxu0 0.0
    %v549 = vand.u32 %v138, 4294901760
    %v550 = vsub.f32 %v138, %v549
    %551 = vmatpush1.msra.mxu0 %v550
    %552 = vmatprep.subr.mxu0 0.0
    %v553 = vand.u32 %v139, 4294901760
    %v554 = vsub.f32 %v139, %v553
    %555 = vmatpush1.msra.mxu0 %v554
    %556 = vmatprep.subr.mxu0 0.0
    %v557 = vand.u32 %v140, 4294901760
    %v558 = vsub.f32 %v140, %v557
    %559 = vmatpush1.msra.mxu0 %v558
    %560 = vmatprep.subr.mxu0 0.0
    %v561 = vand.u32 %v141, 4294901760
    %v562 = vsub.f32 %v141, %v561
    %563 = vmatpush1.msra.mxu0 %v562
    %564 = vmatprep.subr.mxu0 0.0
    %v565 = vand.u32 %v142, 4294901760
    %v566 = vsub.f32 %v142, %v565
    %567 = vmatpush1.msra.mxu0 %v566
    %568 = vmatprep.subr.mxu0 0.0
    %569 = vmatpush1.msra.mxu0 0.0
    %570 = vmatprep.subr.mxu0 0.0
    %571 = vmatpush1.msra.mxu0 0.0
    %572 = vmatprep.subr.mxu0 0.0
    %573 = vmatpush1.msra.mxu0 0.0
    %574 = vmatprep.subr.mxu0 0.0
    %575 = vmatpush1.msra.mxu0 0.0
    %576 = vmatprep.subr.mxu0 0.0
    %577 = vmatpush1.msra.mxu0 0.0
    %578 = vmatprep.subr.mxu0 0.0
    %579 = vmatpush1.msra.mxu0 0.0
    %580 = vmatprep.subr.mxu0 0.0
    %581 = vmatpush1.msra.mxu0 0.0
    %582 = vmatprep.subr.mxu0 0.0
    %583 = vmatpush1.msra.mxu0 0.0
    %584 = vmatprep.subr.mxu0 0.0
    %585 = vmatpush1.msra.mxu0 0.0
    %586 = vmatprep.subr.mxu0 0.0
    %587 = vmatpush1.msra.mxu0 0.0
    %588 = vmatprep.subr.mxu0 0.0
    %589 = vmatpush1.msra.mxu0 0.0
    %590 = vmatprep.subr.mxu0 0.0
    %591 = vmatpush1.msra.mxu0 0.0
    %592 = vmatprep.subr.mxu0 0.0
    %593 = vmatpush1.msra.mxu0 0.0
    %594 = vmatprep.subr.mxu0 0.0
    %595 = vmatpush1.msra.mxu0 0.0
    %596 = vmatprep.subr.mxu0 0.0
    %597 = vmatpush1.msra.mxu0 0.0
    %598 = vmatprep.subr.mxu0 0.0
    %599 = vmatpush1.msra.mxu0 0.0
    %600 = vmatprep.mubr.f32.mxu0 0.0
    %v601 = vand.u32 %v34, 4294901760
    %v602 = vsub.f32 %v34, %v601
    %603 = vmatmul.mubr.f32.gmra.mrb[0].mxu0 %v602
    %v604 = vpop.f32.mrb[0].mxu0
    %v605 = vadd.f32 %v459, %v604
    %v606 = vpop.f32.mrb[0].mxu0
    %607 = vmatprep.mubr.f32.mxu0 0.0
    %v608 = vand.u32 %v35, 4294901760
    %v609 = vsub.f32 %v35, %v608
    %610 = vmatmul.mubr.f32.gmra.mrb[0].mxu0 %v609
    %v611 = vpop.f32.mrb[0].mxu0
    %v612 = vadd.f32 %v465, %v611
    %v613 = vpop.f32.mrb[0].mxu0
    %614 = vmatprep.mubr.f32.mxu0 0.0
    %v615 = vand.u32 %v36, 4294901760
    %v616 = vsub.f32 %v36, %v615
    %617 = vmatmul.mubr.f32.gmra.mrb[0].mxu0 %v616
    %v618 = vpop.f32.mrb[0].mxu0
    %v619 = vadd.f32 %v471, %v618
    %v620 = vpop.f32.mrb[0].mxu0
    %621 = vmatprep.mubr.f32.mxu0 0.0
    %v622 = vand.u32 %v37, 4294901760
    %v623 = vsub.f32 %v37, %v622
    %624 = vmatmul.mubr.f32.gmra.mrb[0].mxu0 %v623
    %v625 = vpop.f32.mrb[0].mxu0
    %v626 = vadd.f32 %v477, %v625
    %v627 = vpop.f32.mrb[0].mxu0
    %628 = vmatprep.mubr.f32.mxu0 0.0
    %v629 = vand.u32 %v38, 4294901760
    %v630 = vsub.f32 %v38, %v629
    %631 = vmatmul.mubr.f32.gmra.mrb[0].mxu0 %v630
    %v632 = vpop.f32.mrb[0].mxu0
    %v633 = vadd.f32 %v483, %v632
    %v634 = vpop.f32.mrb[0].mxu0
    %635 = vmatprep.mubr.f32.mxu0 0.0
    %v636 = vand.u32 %v39, 4294901760
    %v637 = vsub.f32 %v39, %v636
    %638 = vmatmul.mubr.f32.gmra.mrb[0].mxu0 %v637
    %v639 = vpop.f32.mrb[0].mxu0
    %v640 = vadd.f32 %v489, %v639
    %v641 = vpop.f32.mrb[0].mxu0
    %642 = vmatprep.mubr.f32.mxu0 0.0
    %v643 = vand.u32 %v40, 4294901760
    %v644 = vsub.f32 %v40, %v643
    %645 = vmatmul.mubr.f32.gmra.mrb[0].mxu0 %v644
    %v646 = vpop.f32.mrb[0].mxu0
    %v647 = vadd.f32 %v495, %v646
    %v648 = vpop.f32.mrb[0].mxu0
    %649 = vmatprep.mubr.f32.mxu0 0.0
    %v650 = vand.u32 %v41, 4294901760
    %v651 = vsub.f32 %v41, %v650
    %652 = vmatmul.mubr.f32.gmra.mrb[0].mxu0 %v651
    %v653 = vpop.f32.mrb[0].mxu0
    %v654 = vadd.f32 %v501, %v653
    %v655 = vpop.f32.mrb[0].mxu0
    %656 = vdwg.mxu0
    %657 = vmatprep.subr.mxu0 0.0
    %v658 = vand.u32 %v127, 4294901760
    %659 = vmatpush1.msra.mxu0 %v658
    %660 = vmatprep.subr.mxu0 0.0
    %v661 = vand.u32 %v128, 4294901760
    %662 = vmatpush1.msra.mxu0 %v661
    %663 = vmatprep.subr.mxu0 0.0
    %v664 = vand.u32 %v129, 4294901760
    %665 = vmatpush1.msra.mxu0 %v664
    %666 = vmatprep.subr.mxu0 0.0
    %v667 = vand.u32 %v130, 4294901760
    %668 = vmatpush1.msra.mxu0 %v667
    %669 = vmatprep.subr.mxu0 0.0
    %v670 = vand.u32 %v131, 4294901760
    %671 = vmatpush1.msra.mxu0 %v670
    %672 = vmatprep.subr.mxu0 0.0
    %v673 = vand.u32 %v132, 4294901760
    %674 = vmatpush1.msra.mxu0 %v673
    %675 = vmatprep.subr.mxu0 0.0
    %v676 = vand.u32 %v133, 4294901760
    %677 = vmatpush1.msra.mxu0 %v676
    %678 = vmatprep.subr.mxu0 0.0
    %v679 = vand.u32 %v134, 4294901760
    %680 = vmatpush1.msra.mxu0 %v679
    %681 = vmatprep.subr.mxu0 0.0
    %v682 = vand.u32 %v135, 4294901760
    %683 = vmatpush1.msra.mxu0 %v682
    %684 = vmatprep.subr.mxu0 0.0
    %v685 = vand.u32 %v136, 4294901760
    %686 = vmatpush1.msra.mxu0 %v685
    %687 = vmatprep.subr.mxu0 0.0
    %v688 = vand.u32 %v137, 4294901760
    %689 = vmatpush1.msra.mxu0 %v688
    %690 = vmatprep.subr.mxu0 0.0
    %v691 = vand.u32 %v138, 4294901760
    %692 = vmatpush1.msra.mxu0 %v691
    %693 = vmatprep.subr.mxu0 0.0
    %v694 = vand.u32 %v139, 4294901760
    %695 = vmatpush1.msra.mxu0 %v694
    %696 = vmatprep.subr.mxu0 0.0
    %v697 = vand.u32 %v140, 4294901760
    %698 = vmatpush1.msra.mxu0 %v697
    %699 = vmatprep.subr.mxu0 0.0
    %v700 = vand.u32 %v141, 4294901760
    %701 = vmatpush1.msra.mxu0 %v700
    %702 = vmatprep.subr.mxu0 0.0
    %v703 = vand.u32 %v142, 4294901760
    %704 = vmatpush1.msra.mxu0 %v703
    %705 = vmatprep.subr.mxu0 0.0
    %706 = vmatpush1.msra.mxu0 0.0
    %707 = vmatprep.subr.mxu0 0.0
    %708 = vmatpush1.msra.mxu0 0.0
    %709 = vmatprep.subr.mxu0 0.0
    %710 = vmatpush1.msra.mxu0 0.0
    %711 = vmatprep.subr.mxu0 0.0
    %712 = vmatpush1.msra.mxu0 0.0
    %713 = vmatprep.subr.mxu0 0.0
    %714 = vmatpush1.msra.mxu0 0.0
    %715 = vmatprep.subr.mxu0 0.0
    %716 = vmatpush1.msra.mxu0 0.0
    %717 = vmatprep.subr.mxu0 0.0
    %718 = vmatpush1.msra.mxu0 0.0
    %719 = vmatprep.subr.mxu0 0.0
    %720 = vmatpush1.msra.mxu0 0.0
    %721 = vmatprep.subr.mxu0 0.0
    %722 = vmatpush1.msra.mxu0 0.0
    %723 = vmatprep.subr.mxu0 0.0
    %724 = vmatpush1.msra.mxu0 0.0
    %725 = vmatprep.subr.mxu0 0.0
    %726 = vmatpush1.msra.mxu0 0.0
    %727 = vmatprep.subr.mxu0 0.0
    %728 = vmatpush1.msra.mxu0 0.0
    %729 = vmatprep.subr.mxu0 0.0
    %730 = vmatpush1.msra.mxu0 0.0
    %731 = vmatprep.subr.mxu0 0.0
    %732 = vmatpush1.msra.mxu0 0.0
    %733 = vmatprep.subr.mxu0 0.0
    %734 = vmatpush1.msra.mxu0 0.0
    %735 = vmatprep.subr.mxu0 0.0
    %736 = vmatpush1.msra.mxu0 0.0
    %737 = vmatprep.mubr.f32.mxu0 0.0
    %v738 = vand.u32 %v34, 4294901760
    %v739 = vsub.f32 %v34, %v738
    %v740 = vand.u32 %v739, 4294901760
    %741 = vmatmul.mubr.f32.gmra.mrb[0].mxu0 %v740
    %v742 = vpop.f32.mrb[0].mxu0
    %v743 = vadd.f32 %v605, %v742
    %v744 = vpop.f32.mrb[0].mxu0
    %745 = vmatprep.mubr.f32.mxu0 0.0
    %v746 = vand.u32 %v35, 4294901760
    %v747 = vsub.f32 %v35, %v746
    %v748 = vand.u32 %v747, 4294901760
    %749 = vmatmul.mubr.f32.gmra.mrb[0].mxu0 %v748
    %v750 = vpop.f32.mrb[0].mxu0
    %v751 = vadd.f32 %v612, %v750
    %v752 = vpop.f32.mrb[0].mxu0
    %753 = vmatprep.mubr.f32.mxu0 0.0
    %v754 = vand.u32 %v36, 4294901760
    %v755 = vsub.f32 %v36, %v754
    %v756 = vand.u32 %v755, 4294901760
    %757 = vmatmul.mubr.f32.gmra.mrb[0].mxu0 %v756
    %v758 = vpop.f32.mrb[0].mxu0
    %v759 = vadd.f32 %v619, %v758
    %v760 = vpop.f32.mrb[0].mxu0
    %761 = vmatprep.mubr.f32.mxu0 0.0
    %v762 = vand.u32 %v37, 4294901760
    %v763 = vsub.f32 %v37, %v762
    %v764 = vand.u32 %v763, 4294901760
    %765 = vmatmul.mubr.f32.gmra.mrb[0].mxu0 %v764
    %v766 = vpop.f32.mrb[0].mxu0
    %v767 = vadd.f32 %v626, %v766
    %v768 = vpop.f32.mrb[0].mxu0
    %769 = vmatprep.mubr.f32.mxu0 0.0
    %v770 = vand.u32 %v38, 4294901760
    %v771 = vsub.f32 %v38, %v770
    %v772 = vand.u32 %v771, 4294901760
    %773 = vmatmul.mubr.f32.gmra.mrb[0].mxu0 %v772
    %v774 = vpop.f32.mrb[0].mxu0
    %v775 = vadd.f32 %v633, %v774
    %v776 = vpop.f32.mrb[0].mxu0
    %777 = vmatprep.mubr.f32.mxu0 0.0
    %v778 = vand.u32 %v39, 4294901760
    %v779 = vsub.f32 %v39, %v778
    %v780 = vand.u32 %v779, 4294901760
    %781 = vmatmul.mubr.f32.gmra.mrb[0].mxu0 %v780
    %v782 = vpop.f32.mrb[0].mxu0
    %v783 = vadd.f32 %v640, %v782
    %v784 = vpop.f32.mrb[0].mxu0
    %785 = vmatprep.mubr.f32.mxu0 0.0
    %v786 = vand.u32 %v40, 4294901760
    %v787 = vsub.f32 %v40, %v786
    %v788 = vand.u32 %v787, 4294901760
    %789 = vmatmul.mubr.f32.gmra.mrb[0].mxu0 %v788
    %v790 = vpop.f32.mrb[0].mxu0
    %v791 = vadd.f32 %v647, %v790
    %v792 = vpop.f32.mrb[0].mxu0
    %793 = vmatprep.mubr.f32.mxu0 0.0
    %v794 = vand.u32 %v41, 4294901760
    %v795 = vsub.f32 %v41, %v794
    %v796 = vand.u32 %v795, 4294901760
    %797 = vmatmul.mubr.f32.gmra.mrb[0].mxu0 %v796
    %v798 = vpop.f32.mrb[0].mxu0
    %v799 = vadd.f32 %v654, %v798
    %v800 = vpop.f32.mrb[0].mxu0
    %801 = vdwg.mxu0
    %802 = vmatprep.subr.mxu0 0.0
    %v803 = vand.u32 %v127, 4294901760
    %v804 = vsub.f32 %v127, %v803
    %v805 = vand.u32 %v804, 4294901760
    %806 = vmatpush1.msra.mxu0 %v805
    %807 = vmatprep.subr.mxu0 0.0
    %v808 = vand.u32 %v128, 4294901760
    %v809 = vsub.f32 %v128, %v808
    %v810 = vand.u32 %v809, 4294901760
    %811 = vmatpush1.msra.mxu0 %v810
    %812 = vmatprep.subr.mxu0 0.0
    %v813 = vand.u32 %v129, 4294901760
    %v814 = vsub.f32 %v129, %v813
    %v815 = vand.u32 %v814, 4294901760
    %816 = vmatpush1.msra.mxu0 %v815
    %817 = vmatprep.subr.mxu0 0.0
    %v818 = vand.u32 %v130, 4294901760
    %v819 = vsub.f32 %v130, %v818
    %v820 = vand.u32 %v819, 4294901760
    %821 = vmatpush1.msra.mxu0 %v820
    %822 = vmatprep.subr.mxu0 0.0
    %v823 = vand.u32 %v131, 4294901760
    %v824 = vsub.f32 %v131, %v823
    %v825 = vand.u32 %v824, 4294901760
    %826 = vmatpush1.msra.mxu0 %v825
    %827 = vmatprep.subr.mxu0 0.0
    %v828 = vand.u32 %v132, 4294901760
    %v829 = vsub.f32 %v132, %v828
    %v830 = vand.u32 %v829, 4294901760
    %831 = vmatpush1.msra.mxu0 %v830
    %832 = vmatprep.subr.mxu0 0.0
    %v833 = vand.u32 %v133, 4294901760
    %v834 = vsub.f32 %v133, %v833
    %v835 = vand.u32 %v834, 4294901760
    %836 = vmatpush1.msra.mxu0 %v835
    %837 = vmatprep.subr.mxu0 0.0
    %v838 = vand.u32 %v134, 4294901760
    %v839 = vsub.f32 %v134, %v838
    %v840 = vand.u32 %v839, 4294901760
    %841 = vmatpush1.msra.mxu0 %v840
    %842 = vmatprep.subr.mxu0 0.0
    %v843 = vand.u32 %v135, 4294901760
    %v844 = vsub.f32 %v135, %v843
    %v845 = vand.u32 %v844, 4294901760
    %846 = vmatpush1.msra.mxu0 %v845
    %847 = vmatprep.subr.mxu0 0.0
    %v848 = vand.u32 %v136, 4294901760
    %v849 = vsub.f32 %v136, %v848
    %v850 = vand.u32 %v849, 4294901760
    %851 = vmatpush1.msra.mxu0 %v850
    %852 = vmatprep.subr.mxu0 0.0
    %v853 = vand.u32 %v137, 4294901760
    %v854 = vsub.f32 %v137, %v853
    %v855 = vand.u32 %v854, 4294901760
    %856 = vmatpush1.msra.mxu0 %v855
    %857 = vmatprep.subr.mxu0 0.0
    %v858 = vand.u32 %v138, 4294901760
    %v859 = vsub.f32 %v138, %v858
    %v860 = vand.u32 %v859, 4294901760
    %861 = vmatpush1.msra.mxu0 %v860
    %862 = vmatprep.subr.mxu0 0.0
    %v863 = vand.u32 %v139, 4294901760
    %v864 = vsub.f32 %v139, %v863
    %v865 = vand.u32 %v864, 4294901760
    %866 = vmatpush1.msra.mxu0 %v865
    %867 = vmatprep.subr.mxu0 0.0
    %v868 = vand.u32 %v140, 4294901760
    %v869 = vsub.f32 %v140, %v868
    %v870 = vand.u32 %v869, 4294901760
    %871 = vmatpush1.msra.mxu0 %v870
    %872 = vmatprep.subr.mxu0 0.0
    %v873 = vand.u32 %v141, 4294901760
    %v874 = vsub.f32 %v141, %v873
    %v875 = vand.u32 %v874, 4294901760
    %876 = vmatpush1.msra.mxu0 %v875
    %877 = vmatprep.subr.mxu0 0.0
    %v878 = vand.u32 %v142, 4294901760
    %v879 = vsub.f32 %v142, %v878
    %v880 = vand.u32 %v879, 4294901760
    %881 = vmatpush1.msra.mxu0 %v880
    %882 = vmatprep.subr.mxu0 0.0
    %883 = vmatpush1.msra.mxu0 0.0
    %884 = vmatprep.subr.mxu0 0.0
    %885 = vmatpush1.msra.mxu0 0.0
    %886 = vmatprep.subr.mxu0 0.0
    %887 = vmatpush1.msra.mxu0 0.0
    %888 = vmatprep.subr.mxu0 0.0
    %889 = vmatpush1.msra.mxu0 0.0
    %890 = vmatprep.subr.mxu0 0.0
    %891 = vmatpush1.msra.mxu0 0.0
    %892 = vmatprep.subr.mxu0 0.0
    %893 = vmatpush1.msra.mxu0 0.0
    %894 = vmatprep.subr.mxu0 0.0
    %895 = vmatpush1.msra.mxu0 0.0
    %896 = vmatprep.subr.mxu0 0.0
    %897 = vmatpush1.msra.mxu0 0.0
    %898 = vmatprep.subr.mxu0 0.0
    %899 = vmatpush1.msra.mxu0 0.0
    %900 = vmatprep.subr.mxu0 0.0
    %901 = vmatpush1.msra.mxu0 0.0
    %902 = vmatprep.subr.mxu0 0.0
    %903 = vmatpush1.msra.mxu0 0.0
    %904 = vmatprep.subr.mxu0 0.0
    %905 = vmatpush1.msra.mxu0 0.0
    %906 = vmatprep.subr.mxu0 0.0
    %907 = vmatpush1.msra.mxu0 0.0
    %908 = vmatprep.subr.mxu0 0.0
    %909 = vmatpush1.msra.mxu0 0.0
    %910 = vmatprep.subr.mxu0 0.0
    %911 = vmatpush1.msra.mxu0 0.0
    %912 = vmatprep.subr.mxu0 0.0
    %913 = vmatpush1.msra.mxu0 0.0
    %914 = vmatprep.mubr.f32.mxu0 0.0
    %v915 = vand.u32 %v34, 4294901760
    %916 = vmatmul.mubr.f32.gmra.mrb[0].mxu0 %v915
    %v917 = vpop.f32.mrb[0].mxu0
    %v918 = vadd.f32 %v743, %v917
    %v919 = vpop.f32.mrb[0].mxu0
    %920 = vmatprep.mubr.f32.mxu0 0.0
    %v921 = vand.u32 %v35, 4294901760
    %922 = vmatmul.mubr.f32.gmra.mrb[0].mxu0 %v921
    %v923 = vpop.f32.mrb[0].mxu0
    %v924 = vadd.f32 %v751, %v923
    %v925 = vpop.f32.mrb[0].mxu0
    %926 = vmatprep.mubr.f32.mxu0 0.0
    %v927 = vand.u32 %v36, 4294901760
    %928 = vmatmul.mubr.f32.gmra.mrb[0].mxu0 %v927
    %v929 = vpop.f32.mrb[0].mxu0
    %v930 = vadd.f32 %v759, %v929
    %v931 = vpop.f32.mrb[0].mxu0
    %932 = vmatprep.mubr.f32.mxu0 0.0
    %v933 = vand.u32 %v37, 4294901760
    %934 = vmatmul.mubr.f32.gmra.mrb[0].mxu0 %v933
    %v935 = vpop.f32.mrb[0].mxu0
    %v936 = vadd.f32 %v767, %v935
    %v937 = vpop.f32.mrb[0].mxu0
    %938 = vmatprep.mubr.f32.mxu0 0.0
    %v939 = vand.u32 %v38, 4294901760
    %940 = vmatmul.mubr.f32.gmra.mrb[0].mxu0 %v939
    %v941 = vpop.f32.mrb[0].mxu0
    %v942 = vadd.f32 %v775, %v941
    %v943 = vpop.f32.mrb[0].mxu0
    %944 = vmatprep.mubr.f32.mxu0 0.0
    %v945 = vand.u32 %v39, 4294901760
    %946 = vmatmul.mubr.f32.gmra.mrb[0].mxu0 %v945
    %v947 = vpop.f32.mrb[0].mxu0
    %v948 = vadd.f32 %v783, %v947
    %v949 = vpop.f32.mrb[0].mxu0
    %950 = vmatprep.mubr.f32.mxu0 0.0
    %v951 = vand.u32 %v40, 4294901760
    %952 = vmatmul.mubr.f32.gmra.mrb[0].mxu0 %v951
    %v953 = vpop.f32.mrb[0].mxu0
    %v954 = vadd.f32 %v791, %v953
    %v955 = vpop.f32.mrb[0].mxu0
    %956 = vmatprep.mubr.f32.mxu0 0.0
    %v957 = vand.u32 %v41, 4294901760
    %958 = vmatmul.mubr.f32.gmra.mrb[0].mxu0 %v957
    %v959 = vpop.f32.mrb[0].mxu0
    %v960 = vadd.f32 %v799, %v959
    %v961 = vpop.f32.mrb[0].mxu0
    %962 = vdwg.mxu0
    %963 = vmatprep.subr.mxu0 0.0
    %v964 = vand.u32 %v127, 4294901760
    %965 = vmatpush1.msra.mxu0 %v964
    %966 = vmatprep.subr.mxu0 0.0
    %v967 = vand.u32 %v128, 4294901760
    %968 = vmatpush1.msra.mxu0 %v967
    %969 = vmatprep.subr.mxu0 0.0
    %v970 = vand.u32 %v129, 4294901760
    %971 = vmatpush1.msra.mxu0 %v970
    %972 = vmatprep.subr.mxu0 0.0
    %v973 = vand.u32 %v130, 4294901760
    %974 = vmatpush1.msra.mxu0 %v973
    %975 = vmatprep.subr.mxu0 0.0
    %v976 = vand.u32 %v131, 4294901760
    %977 = vmatpush1.msra.mxu0 %v976
    %978 = vmatprep.subr.mxu0 0.0
    %v979 = vand.u32 %v132, 4294901760
    %980 = vmatpush1.msra.mxu0 %v979
    %981 = vmatprep.subr.mxu0 0.0
    %v982 = vand.u32 %v133, 4294901760
    %983 = vmatpush1.msra.mxu0 %v982
    %984 = vmatprep.subr.mxu0 0.0
    %v985 = vand.u32 %v134, 4294901760
    %986 = vmatpush1.msra.mxu0 %v985
    %987 = vmatprep.subr.mxu0 0.0
    %v988 = vand.u32 %v135, 4294901760
    %989 = vmatpush1.msra.mxu0 %v988
    %990 = vmatprep.subr.mxu0 0.0
    %v991 = vand.u32 %v136, 4294901760
    %992 = vmatpush1.msra.mxu0 %v991
    %993 = vmatprep.subr.mxu0 0.0
    %v994 = vand.u32 %v137, 4294901760
    %995 = vmatpush1.msra.mxu0 %v994
    %996 = vmatprep.subr.mxu0 0.0
    %v997 = vand.u32 %v138, 4294901760
    %998 = vmatpush1.msra.mxu0 %v997
    %999 = vmatprep.subr.mxu0 0.0
    %v1000 = vand.u32 %v139, 4294901760
    %1001 = vmatpush1.msra.mxu0 %v1000
    %1002 = vmatprep.subr.mxu0 0.0
    %v1003 = vand.u32 %v140, 4294901760
    %1004 = vmatpush1.msra.mxu0 %v1003
    %1005 = vmatprep.subr.mxu0 0.0
    %v1006 = vand.u32 %v141, 4294901760
    %1007 = vmatpush1.msra.mxu0 %v1006
    %1008 = vmatprep.subr.mxu0 0.0
    %v1009 = vand.u32 %v142, 4294901760
    %1010 = vmatpush1.msra.mxu0 %v1009
    %1011 = vmatprep.subr.mxu0 0.0
    %1012 = vmatpush1.msra.mxu0 0.0
    %1013 = vmatprep.subr.mxu0 0.0
    %1014 = vmatpush1.msra.mxu0 0.0
    %1015 = vmatprep.subr.mxu0 0.0
    %1016 = vmatpush1.msra.mxu0 0.0
    %1017 = vmatprep.subr.mxu0 0.0
    %1018 = vmatpush1.msra.mxu0 0.0
    %1019 = vmatprep.subr.mxu0 0.0
    %1020 = vmatpush1.msra.mxu0 0.0
    %1021 = vmatprep.subr.mxu0 0.0
    %1022 = vmatpush1.msra.mxu0 0.0
    %1023 = vmatprep.subr.mxu0 0.0
    %1024 = vmatpush1.msra.mxu0 0.0
    %1025 = vmatprep.subr.mxu0 0.0
    %1026 = vmatpush1.msra.mxu0 0.0
    %1027 = vmatprep.subr.mxu0 0.0
    %1028 = vmatpush1.msra.mxu0 0.0
    %1029 = vmatprep.subr.mxu0 0.0
    %1030 = vmatpush1.msra.mxu0 0.0
    %1031 = vmatprep.subr.mxu0 0.0
    %1032 = vmatpush1.msra.mxu0 0.0
    %1033 = vmatprep.subr.mxu0 0.0
    %1034 = vmatpush1.msra.mxu0 0.0
    %1035 = vmatprep.subr.mxu0 0.0
    %1036 = vmatpush1.msra.mxu0 0.0
    %1037 = vmatprep.subr.mxu0 0.0
    %1038 = vmatpush1.msra.mxu0 0.0
    %1039 = vmatprep.subr.mxu0 0.0
    %1040 = vmatpush1.msra.mxu0 0.0
    %1041 = vmatprep.subr.mxu0 0.0
    %1042 = vmatpush1.msra.mxu0 0.0
    %1043 = vmatprep.mubr.f32.mxu0 0.0
    %v1044 = vand.u32 %v34, 4294901760
    %1045 = vmatmul.mubr.f32.gmra.mrb[0].mxu0 %v1044
    %v1046 = vpop.f32.mrb[0].mxu0
    %v1047 = vadd.f32 %v918, %v1046
    %v1048 = vpop.f32.mrb[0].mxu0
    %1049 = vmatprep.mubr.f32.mxu0 0.0
    %v1050 = vand.u32 %v35, 4294901760
    %1051 = vmatmul.mubr.f32.gmra.mrb[0].mxu0 %v1050
    %v1052 = vpop.f32.mrb[0].mxu0
    %v1053 = vadd.f32 %v924, %v1052
    %v1054 = vpop.f32.mrb[0].mxu0
    %1055 = vmatprep.mubr.f32.mxu0 0.0
    %v1056 = vand.u32 %v36, 4294901760
    %1057 = vmatmul.mubr.f32.gmra.mrb[0].mxu0 %v1056
    %v1058 = vpop.f32.mrb[0].mxu0
    %v1059 = vadd.f32 %v930, %v1058
    %v1060 = vpop.f32.mrb[0].mxu0
    %1061 = vmatprep.mubr.f32.mxu0 0.0
    %v1062 = vand.u32 %v37, 4294901760
    %1063 = vmatmul.mubr.f32.gmra.mrb[0].mxu0 %v1062
    %v1064 = vpop.f32.mrb[0].mxu0
    %v1065 = vadd.f32 %v936, %v1064
    %v1066 = vpop.f32.mrb[0].mxu0
    %1067 = vmatprep.mubr.f32.mxu0 0.0
    %v1068 = vand.u32 %v38, 4294901760
    %1069 = vmatmul.mubr.f32.gmra.mrb[0].mxu0 %v1068
    %v1070 = vpop.f32.mrb[0].mxu0
    %v1071 = vadd.f32 %v942, %v1070
    %v1072 = vpop.f32.mrb[0].mxu0
    %1073 = vmatprep.mubr.f32.mxu0 0.0
    %v1074 = vand.u32 %v39, 4294901760
    %1075 = vmatmul.mubr.f32.gmra.mrb[0].mxu0 %v1074
    %v1076 = vpop.f32.mrb[0].mxu0
    %v1077 = vadd.f32 %v948, %v1076
    %v1078 = vpop.f32.mrb[0].mxu0
    %1079 = vmatprep.mubr.f32.mxu0 0.0
    %v1080 = vand.u32 %v40, 4294901760
    %1081 = vmatmul.mubr.f32.gmra.mrb[0].mxu0 %v1080
    %v1082 = vpop.f32.mrb[0].mxu0
    %v1083 = vadd.f32 %v954, %v1082
    %v1084 = vpop.f32.mrb[0].mxu0
    %1085 = vmatprep.mubr.f32.mxu0 0.0
    %v1086 = vand.u32 %v41, 4294901760
    %1087 = vmatmul.mubr.f32.gmra.mrb[0].mxu0 %v1086
    %v1088 = vpop.f32.mrb[0].mxu0
    %v1089 = vadd.f32 %v960, %v1088
    %v1090 = vpop.f32.mrb[0].mxu0
    %1091 = vdwg.mxu0
    %v1092 = vmul.f32 %v1047, 0.03125
    %v1093 = vmul.f32 %v1053, 0.03125
    %v1094 = vmul.f32 %v1059, 0.03125
    %v1095 = vmul.f32 %v1065, 0.03125
    %v1096 = vmul.f32 %v1071, 0.03125
    %v1097 = vmul.f32 %v1077, 0.03125
    %v1098 = vmul.f32 %v1083, 0.03125
    %v1099 = vmul.f32 %v1089, 0.03125
    %vm1100 = vcmask 31744
    %v1102 = vsel %vm1100, %v1092, 0
    %v1105 = vsel %vm1100, %v1093, 0
    %v1108 = vsel %vm1100, %v1094, 0
    %v1111 = vsel %vm1100, %v1095, 0
    %v1114 = vsel %vm1100, %v1096, 0
    %v1117 = vsel %vm1100, %v1097, 0
    %v1120 = vsel %vm1100, %v1098, 0
    %v1123 = vsel %vm1100, %v1099, 0
    %vm1125 = vcmask 1043456
    %v1127 = vsel %vm1125, %v149, 0
    %1129 = vmatprep.subr.mxu0 0.0
    %v1130 = vand.u32 %v1127, 4294901760
    %1131 = vmatpush1.msra.mxu0 %v1130
    %1132 = vmatprep.subr.mxu0 0.0
    %1133 = vmatpush1.msra.mxu0 0.0
    %1134 = vmatprep.subr.mxu0 0.0
    %1135 = vmatpush1.msra.mxu0 0.0
    %1136 = vmatprep.subr.mxu0 0.0
    %1137 = vmatpush1.msra.mxu0 0.0
    %1138 = vmatprep.subr.mxu0 0.0
    %1139 = vmatpush1.msra.mxu0 0.0
    %1140 = vmatprep.subr.mxu0 0.0
    %1141 = vmatpush1.msra.mxu0 0.0
    %1142 = vmatprep.subr.mxu0 0.0
    %1143 = vmatpush1.msra.mxu0 0.0
    %1144 = vmatprep.subr.mxu0 0.0
    %1145 = vmatpush1.msra.mxu0 0.0
    %1146 = vmatprep.subr.mxu0 0.0
    %1147 = vmatpush1.msra.mxu0 0.0
    %1148 = vmatprep.subr.mxu0 0.0
    %1149 = vmatpush1.msra.mxu0 0.0
    %1150 = vmatprep.subr.mxu0 0.0
    %1151 = vmatpush1.msra.mxu0 0.0
    %1152 = vmatprep.subr.mxu0 0.0
    %1153 = vmatpush1.msra.mxu0 0.0
    %1154 = vmatprep.subr.mxu0 0.0
    %1155 = vmatpush1.msra.mxu0 0.0
    %1156 = vmatprep.subr.mxu0 0.0
    %1157 = vmatpush1.msra.mxu0 0.0
    %1158 = vmatprep.subr.mxu0 0.0
    %1159 = vmatpush1.msra.mxu0 0.0
    %1160 = vmatprep.subr.mxu0 0.0
    %1161 = vmatpush1.msra.mxu0 0.0
    %1162 = vmatprep.subr.mxu0 0.0
    %1163 = vmatpush1.msra.mxu0 0.0
    %1164 = vmatprep.subr.mxu0 0.0
    %1165 = vmatpush1.msra.mxu0 0.0
    %1166 = vmatprep.subr.mxu0 0.0
    %1167 = vmatpush1.msra.mxu0 0.0
    %1168 = vmatprep.subr.mxu0 0.0
    %1169 = vmatpush1.msra.mxu0 0.0
    %1170 = vmatprep.subr.mxu0 0.0
    %1171 = vmatpush1.msra.mxu0 0.0
    %1172 = vmatprep.subr.mxu0 0.0
    %1173 = vmatpush1.msra.mxu0 0.0
    %1174 = vmatprep.subr.mxu0 0.0
    %1175 = vmatpush1.msra.mxu0 0.0
    %1176 = vmatprep.subr.mxu0 0.0
    %1177 = vmatpush1.msra.mxu0 0.0
    %1178 = vmatprep.subr.mxu0 0.0
    %1179 = vmatpush1.msra.mxu0 0.0
    %1180 = vmatprep.subr.mxu0 0.0
    %1181 = vmatpush1.msra.mxu0 0.0
    %1182 = vmatprep.subr.mxu0 0.0
    %1183 = vmatpush1.msra.mxu0 0.0
    %1184 = vmatprep.subr.mxu0 0.0
    %1185 = vmatpush1.msra.mxu0 0.0
    %1186 = vmatprep.subr.mxu0 0.0
    %1187 = vmatpush1.msra.mxu0 0.0
    %1188 = vmatprep.subr.mxu0 0.0
    %1189 = vmatpush1.msra.mxu0 0.0
    %1190 = vmatprep.subr.mxu0 0.0
    %1191 = vmatpush1.msra.mxu0 0.0
    %1192 = vmatprep.subr.mxu0 0.0
    %1193 = vmatpush1.msra.mxu0 0.0
    %1194 = vmatprep.mubr.f32.mxu0 0.0
    %v1195 = vand.u32 %v1102, 4294901760
    %v1196 = vsub.f32 %v1102, %v1195
    %v1197 = vand.u32 %v1196, 4294901760
    %v1198 = vsub.f32 %v1196, %v1197
    %v1199 = vand.u32 %v1198, 4294901760
    %1200 = vmatmul.mubr.f32.gmra.mrb[0].mxu0 %v1199
    %v1201 = vpop.f32.mrb[0].mxu0
    %v1202 = vadd.f32 0.0, %v1201
    %v1203 = vpop.f32.mrb[0].mxu0
    %1204 = vmatprep.mubr.f32.mxu0 0.0
    %v1205 = vand.u32 %v1105, 4294901760
    %v1206 = vsub.f32 %v1105, %v1205
    %v1207 = vand.u32 %v1206, 4294901760
    %v1208 = vsub.f32 %v1206, %v1207
    %v1209 = vand.u32 %v1208, 4294901760
    %1210 = vmatmul.mubr.f32.gmra.mrb[0].mxu0 %v1209
    %v1211 = vpop.f32.mrb[0].mxu0
    %v1212 = vadd.f32 0.0, %v1211
    %v1213 = vpop.f32.mrb[0].mxu0
    %1214 = vmatprep.mubr.f32.mxu0 0.0
    %v1215 = vand.u32 %v1108, 4294901760
    %v1216 = vsub.f32 %v1108, %v1215
    %v1217 = vand.u32 %v1216, 4294901760
    %v1218 = vsub.f32 %v1216, %v1217
    %v1219 = vand.u32 %v1218, 4294901760
    %1220 = vmatmul.mubr.f32.gmra.mrb[0].mxu0 %v1219
    %v1221 = vpop.f32.mrb[0].mxu0
    %v1222 = vadd.f32 0.0, %v1221
    %v1223 = vpop.f32.mrb[0].mxu0
    %1224 = vmatprep.mubr.f32.mxu0 0.0
    %v1225 = vand.u32 %v1111, 4294901760
    %v1226 = vsub.f32 %v1111, %v1225
    %v1227 = vand.u32 %v1226, 4294901760
    %v1228 = vsub.f32 %v1226, %v1227
    %v1229 = vand.u32 %v1228, 4294901760
    %1230 = vmatmul.mubr.f32.gmra.mrb[0].mxu0 %v1229
    %v1231 = vpop.f32.mrb[0].mxu0
    %v1232 = vadd.f32 0.0, %v1231
    %v1233 = vpop.f32.mrb[0].mxu0
    %1234 = vmatprep.mubr.f32.mxu0 0.0
    %v1235 = vand.u32 %v1114, 4294901760
    %v1236 = vsub.f32 %v1114, %v1235
    %v1237 = vand.u32 %v1236, 4294901760
    %v1238 = vsub.f32 %v1236, %v1237
    %v1239 = vand.u32 %v1238, 4294901760
    %1240 = vmatmul.mubr.f32.gmra.mrb[0].mxu0 %v1239
    %v1241 = vpop.f32.mrb[0].mxu0
    %v1242 = vadd.f32 0.0, %v1241
    %v1243 = vpop.f32.mrb[0].mxu0
    %1244 = vmatprep.mubr.f32.mxu0 0.0
    %v1245 = vand.u32 %v1117, 4294901760
    %v1246 = vsub.f32 %v1117, %v1245
    %v1247 = vand.u32 %v1246, 4294901760
    %v1248 = vsub.f32 %v1246, %v1247
    %v1249 = vand.u32 %v1248, 4294901760
    %1250 = vmatmul.mubr.f32.gmra.mrb[0].mxu0 %v1249
    %v1251 = vpop.f32.mrb[0].mxu0
    %v1252 = vadd.f32 0.0, %v1251
    %v1253 = vpop.f32.mrb[0].mxu0
    %1254 = vmatprep.mubr.f32.mxu0 0.0
    %v1255 = vand.u32 %v1120, 4294901760
    %v1256 = vsub.f32 %v1120, %v1255
    %v1257 = vand.u32 %v1256, 4294901760
    %v1258 = vsub.f32 %v1256, %v1257
    %v1259 = vand.u32 %v1258, 4294901760
    %1260 = vmatmul.mubr.f32.gmra.mrb[0].mxu0 %v1259
    %v1261 = vpop.f32.mrb[0].mxu0
    %v1262 = vadd.f32 0.0, %v1261
    %v1263 = vpop.f32.mrb[0].mxu0
    %1264 = vmatprep.mubr.f32.mxu0 0.0
    %v1265 = vand.u32 %v1123, 4294901760
    %v1266 = vsub.f32 %v1123, %v1265
    %v1267 = vand.u32 %v1266, 4294901760
    %v1268 = vsub.f32 %v1266, %v1267
    %v1269 = vand.u32 %v1268, 4294901760
    %1270 = vmatmul.mubr.f32.gmra.mrb[0].mxu0 %v1269
    %v1271 = vpop.f32.mrb[0].mxu0
    %v1272 = vadd.f32 0.0, %v1271
    %v1273 = vpop.f32.mrb[0].mxu0
    %1274 = vdwg.mxu0
    %1275 = vmatprep.subr.mxu0 0.0
    %v1276 = vand.u32 %v1127, 4294901760
    %v1277 = vsub.f32 %v1127, %v1276
    %v1278 = vand.u32 %v1277, 4294901760
    %v1279 = vsub.f32 %v1277, %v1278
    %v1280 = vand.u32 %v1279, 4294901760
    %1281 = vmatpush1.msra.mxu0 %v1280
    %1282 = vmatprep.subr.mxu0 0.0
    %1283 = vmatpush1.msra.mxu0 0.0
    %1284 = vmatprep.subr.mxu0 0.0
    %1285 = vmatpush1.msra.mxu0 0.0
    %1286 = vmatprep.subr.mxu0 0.0
    %1287 = vmatpush1.msra.mxu0 0.0
    %1288 = vmatprep.subr.mxu0 0.0
    %1289 = vmatpush1.msra.mxu0 0.0
    %1290 = vmatprep.subr.mxu0 0.0
    %1291 = vmatpush1.msra.mxu0 0.0
    %1292 = vmatprep.subr.mxu0 0.0
    %1293 = vmatpush1.msra.mxu0 0.0
    %1294 = vmatprep.subr.mxu0 0.0
    %1295 = vmatpush1.msra.mxu0 0.0
    %1296 = vmatprep.subr.mxu0 0.0
    %1297 = vmatpush1.msra.mxu0 0.0
    %1298 = vmatprep.subr.mxu0 0.0
    %1299 = vmatpush1.msra.mxu0 0.0
    %1300 = vmatprep.subr.mxu0 0.0
    %1301 = vmatpush1.msra.mxu0 0.0
    %1302 = vmatprep.subr.mxu0 0.0
    %1303 = vmatpush1.msra.mxu0 0.0
    %1304 = vmatprep.subr.mxu0 0.0
    %1305 = vmatpush1.msra.mxu0 0.0
    %1306 = vmatprep.subr.mxu0 0.0
    %1307 = vmatpush1.msra.mxu0 0.0
    %1308 = vmatprep.subr.mxu0 0.0
    %1309 = vmatpush1.msra.mxu0 0.0
    %1310 = vmatprep.subr.mxu0 0.0
    %1311 = vmatpush1.msra.mxu0 0.0
    %1312 = vmatprep.subr.mxu0 0.0
    %1313 = vmatpush1.msra.mxu0 0.0
    %1314 = vmatprep.subr.mxu0 0.0
    %1315 = vmatpush1.msra.mxu0 0.0
    %1316 = vmatprep.subr.mxu0 0.0
    %1317 = vmatpush1.msra.mxu0 0.0
    %1318 = vmatprep.subr.mxu0 0.0
    %1319 = vmatpush1.msra.mxu0 0.0
    %1320 = vmatprep.subr.mxu0 0.0
    %1321 = vmatpush1.msra.mxu0 0.0
    %1322 = vmatprep.subr.mxu0 0.0
    %1323 = vmatpush1.msra.mxu0 0.0
    %1324 = vmatprep.subr.mxu0 0.0
    %1325 = vmatpush1.msra.mxu0 0.0
    %1326 = vmatprep.subr.mxu0 0.0
    %1327 = vmatpush1.msra.mxu0 0.0
    %1328 = vmatprep.subr.mxu0 0.0
    %1329 = vmatpush1.msra.mxu0 0.0
    %1330 = vmatprep.subr.mxu0 0.0
    %1331 = vmatpush1.msra.mxu0 0.0
    %1332 = vmatprep.subr.mxu0 0.0
    %1333 = vmatpush1.msra.mxu0 0.0
    %1334 = vmatprep.subr.mxu0 0.0
    %1335 = vmatpush1.msra.mxu0 0.0
    %1336 = vmatprep.subr.mxu0 0.0
    %1337 = vmatpush1.msra.mxu0 0.0
    %1338 = vmatprep.subr.mxu0 0.0
    %1339 = vmatpush1.msra.mxu0 0.0
    %1340 = vmatprep.subr.mxu0 0.0
    %1341 = vmatpush1.msra.mxu0 0.0
    %1342 = vmatprep.subr.mxu0 0.0
    %1343 = vmatpush1.msra.mxu0 0.0
    %1344 = vmatprep.mubr.f32.mxu0 0.0
    %v1345 = vand.u32 %v1102, 4294901760
    %1346 = vmatmul.mubr.f32.gmra.mrb[0].mxu0 %v1345
    %v1347 = vpop.f32.mrb[0].mxu0
    %v1348 = vadd.f32 %v1202, %v1347
    %v1349 = vpop.f32.mrb[0].mxu0
    %1350 = vmatprep.mubr.f32.mxu0 0.0
    %v1351 = vand.u32 %v1105, 4294901760
    %1352 = vmatmul.mubr.f32.gmra.mrb[0].mxu0 %v1351
    %v1353 = vpop.f32.mrb[0].mxu0
    %v1354 = vadd.f32 %v1212, %v1353
    %v1355 = vpop.f32.mrb[0].mxu0
    %1356 = vmatprep.mubr.f32.mxu0 0.0
    %v1357 = vand.u32 %v1108, 4294901760
    %1358 = vmatmul.mubr.f32.gmra.mrb[0].mxu0 %v1357
    %v1359 = vpop.f32.mrb[0].mxu0
    %v1360 = vadd.f32 %v1222, %v1359
    %v1361 = vpop.f32.mrb[0].mxu0
    %1362 = vmatprep.mubr.f32.mxu0 0.0
    %v1363 = vand.u32 %v1111, 4294901760
    %1364 = vmatmul.mubr.f32.gmra.mrb[0].mxu0 %v1363
    %v1365 = vpop.f32.mrb[0].mxu0
    %v1366 = vadd.f32 %v1232, %v1365
    %v1367 = vpop.f32.mrb[0].mxu0
    %1368 = vmatprep.mubr.f32.mxu0 0.0
    %v1369 = vand.u32 %v1114, 4294901760
    %1370 = vmatmul.mubr.f32.gmra.mrb[0].mxu0 %v1369
    %v1371 = vpop.f32.mrb[0].mxu0
    %v1372 = vadd.f32 %v1242, %v1371
    %v1373 = vpop.f32.mrb[0].mxu0
    %1374 = vmatprep.mubr.f32.mxu0 0.0
    %v1375 = vand.u32 %v1117, 4294901760
    %1376 = vmatmul.mubr.f32.gmra.mrb[0].mxu0 %v1375
    %v1377 = vpop.f32.mrb[0].mxu0
    %v1378 = vadd.f32 %v1252, %v1377
    %v1379 = vpop.f32.mrb[0].mxu0
    %1380 = vmatprep.mubr.f32.mxu0 0.0
    %v1381 = vand.u32 %v1120, 4294901760
    %1382 = vmatmul.mubr.f32.gmra.mrb[0].mxu0 %v1381
    %v1383 = vpop.f32.mrb[0].mxu0
    %v1384 = vadd.f32 %v1262, %v1383
    %v1385 = vpop.f32.mrb[0].mxu0
    %1386 = vmatprep.mubr.f32.mxu0 0.0
    %v1387 = vand.u32 %v1123, 4294901760
    %1388 = vmatmul.mubr.f32.gmra.mrb[0].mxu0 %v1387
    %v1389 = vpop.f32.mrb[0].mxu0
    %v1390 = vadd.f32 %v1272, %v1389
    %v1391 = vpop.f32.mrb[0].mxu0
    %1392 = vdwg.mxu0
    %1393 = vmatprep.subr.mxu0 0.0
    %v1394 = vand.u32 %v1127, 4294901760
    %v1395 = vsub.f32 %v1127, %v1394
    %1396 = vmatpush1.msra.mxu0 %v1395
    %1397 = vmatprep.subr.mxu0 0.0
    %1398 = vmatpush1.msra.mxu0 0.0
    %1399 = vmatprep.subr.mxu0 0.0
    %1400 = vmatpush1.msra.mxu0 0.0
    %1401 = vmatprep.subr.mxu0 0.0
    %1402 = vmatpush1.msra.mxu0 0.0
    %1403 = vmatprep.subr.mxu0 0.0
    %1404 = vmatpush1.msra.mxu0 0.0
    %1405 = vmatprep.subr.mxu0 0.0
    %1406 = vmatpush1.msra.mxu0 0.0
    %1407 = vmatprep.subr.mxu0 0.0
    %1408 = vmatpush1.msra.mxu0 0.0
    %1409 = vmatprep.subr.mxu0 0.0
    %1410 = vmatpush1.msra.mxu0 0.0
    %1411 = vmatprep.subr.mxu0 0.0
    %1412 = vmatpush1.msra.mxu0 0.0
    %1413 = vmatprep.subr.mxu0 0.0
    %1414 = vmatpush1.msra.mxu0 0.0
    %1415 = vmatprep.subr.mxu0 0.0
    %1416 = vmatpush1.msra.mxu0 0.0
    %1417 = vmatprep.subr.mxu0 0.0
    %1418 = vmatpush1.msra.mxu0 0.0
    %1419 = vmatprep.subr.mxu0 0.0
    %1420 = vmatpush1.msra.mxu0 0.0
    %1421 = vmatprep.subr.mxu0 0.0
    %1422 = vmatpush1.msra.mxu0 0.0
    %1423 = vmatprep.subr.mxu0 0.0
    %1424 = vmatpush1.msra.mxu0 0.0
    %1425 = vmatprep.subr.mxu0 0.0
    %1426 = vmatpush1.msra.mxu0 0.0
    %1427 = vmatprep.subr.mxu0 0.0
    %1428 = vmatpush1.msra.mxu0 0.0
    %1429 = vmatprep.subr.mxu0 0.0
    %1430 = vmatpush1.msra.mxu0 0.0
    %1431 = vmatprep.subr.mxu0 0.0
    %1432 = vmatpush1.msra.mxu0 0.0
    %1433 = vmatprep.subr.mxu0 0.0
    %1434 = vmatpush1.msra.mxu0 0.0
    %1435 = vmatprep.subr.mxu0 0.0
    %1436 = vmatpush1.msra.mxu0 0.0
    %1437 = vmatprep.subr.mxu0 0.0
    %1438 = vmatpush1.msra.mxu0 0.0
    %1439 = vmatprep.subr.mxu0 0.0
    %1440 = vmatpush1.msra.mxu0 0.0
    %1441 = vmatprep.subr.mxu0 0.0
    %1442 = vmatpush1.msra.mxu0 0.0
    %1443 = vmatprep.subr.mxu0 0.0
    %1444 = vmatpush1.msra.mxu0 0.0
    %1445 = vmatprep.subr.mxu0 0.0
    %1446 = vmatpush1.msra.mxu0 0.0
    %1447 = vmatprep.subr.mxu0 0.0
    %1448 = vmatpush1.msra.mxu0 0.0
    %1449 = vmatprep.subr.mxu0 0.0
    %1450 = vmatpush1.msra.mxu0 0.0
    %1451 = vmatprep.subr.mxu0 0.0
    %1452 = vmatpush1.msra.mxu0 0.0
    %1453 = vmatprep.subr.mxu0 0.0
    %1454 = vmatpush1.msra.mxu0 0.0
    %1455 = vmatprep.subr.mxu0 0.0
    %1456 = vmatpush1.msra.mxu0 0.0
    %1457 = vmatprep.subr.mxu0 0.0
    %1458 = vmatpush1.msra.mxu0 0.0
    %1459 = vmatprep.mubr.f32.mxu0 0.0
    %v1460 = vand.u32 %v1102, 4294901760
    %v1461 = vsub.f32 %v1102, %v1460
    %1462 = vmatmul.mubr.f32.gmra.mrb[0].mxu0 %v1461
    %v1463 = vpop.f32.mrb[0].mxu0
    %v1464 = vadd.f32 %v1348, %v1463
    %v1465 = vpop.f32.mrb[0].mxu0
    %1466 = vmatprep.mubr.f32.mxu0 0.0
    %v1467 = vand.u32 %v1105, 4294901760
    %v1468 = vsub.f32 %v1105, %v1467
    %1469 = vmatmul.mubr.f32.gmra.mrb[0].mxu0 %v1468
    %v1470 = vpop.f32.mrb[0].mxu0
    %v1471 = vadd.f32 %v1354, %v1470
    %v1472 = vpop.f32.mrb[0].mxu0
    %1473 = vmatprep.mubr.f32.mxu0 0.0
    %v1474 = vand.u32 %v1108, 4294901760
    %v1475 = vsub.f32 %v1108, %v1474
    %1476 = vmatmul.mubr.f32.gmra.mrb[0].mxu0 %v1475
    %v1477 = vpop.f32.mrb[0].mxu0
    %v1478 = vadd.f32 %v1360, %v1477
    %v1479 = vpop.f32.mrb[0].mxu0
    %1480 = vmatprep.mubr.f32.mxu0 0.0
    %v1481 = vand.u32 %v1111, 4294901760
    %v1482 = vsub.f32 %v1111, %v1481
    %1483 = vmatmul.mubr.f32.gmra.mrb[0].mxu0 %v1482
    %v1484 = vpop.f32.mrb[0].mxu0
    %v1485 = vadd.f32 %v1366, %v1484
    %v1486 = vpop.f32.mrb[0].mxu0
    %1487 = vmatprep.mubr.f32.mxu0 0.0
    %v1488 = vand.u32 %v1114, 4294901760
    %v1489 = vsub.f32 %v1114, %v1488
    %1490 = vmatmul.mubr.f32.gmra.mrb[0].mxu0 %v1489
    %v1491 = vpop.f32.mrb[0].mxu0
    %v1492 = vadd.f32 %v1372, %v1491
    %v1493 = vpop.f32.mrb[0].mxu0
    %1494 = vmatprep.mubr.f32.mxu0 0.0
    %v1495 = vand.u32 %v1117, 4294901760
    %v1496 = vsub.f32 %v1117, %v1495
    %1497 = vmatmul.mubr.f32.gmra.mrb[0].mxu0 %v1496
    %v1498 = vpop.f32.mrb[0].mxu0
    %v1499 = vadd.f32 %v1378, %v1498
    %v1500 = vpop.f32.mrb[0].mxu0
    %1501 = vmatprep.mubr.f32.mxu0 0.0
    %v1502 = vand.u32 %v1120, 4294901760
    %v1503 = vsub.f32 %v1120, %v1502
    %1504 = vmatmul.mubr.f32.gmra.mrb[0].mxu0 %v1503
    %v1505 = vpop.f32.mrb[0].mxu0
    %v1506 = vadd.f32 %v1384, %v1505
    %v1507 = vpop.f32.mrb[0].mxu0
    %1508 = vmatprep.mubr.f32.mxu0 0.0
    %v1509 = vand.u32 %v1123, 4294901760
    %v1510 = vsub.f32 %v1123, %v1509
    %1511 = vmatmul.mubr.f32.gmra.mrb[0].mxu0 %v1510
    %v1512 = vpop.f32.mrb[0].mxu0
    %v1513 = vadd.f32 %v1390, %v1512
    %v1514 = vpop.f32.mrb[0].mxu0
    %1515 = vdwg.mxu0
    %1516 = vmatprep.subr.mxu0 0.0
    %v1517 = vand.u32 %v1127, 4294901760
    %1518 = vmatpush1.msra.mxu0 %v1517
    %1519 = vmatprep.subr.mxu0 0.0
    %1520 = vmatpush1.msra.mxu0 0.0
    %1521 = vmatprep.subr.mxu0 0.0
    %1522 = vmatpush1.msra.mxu0 0.0
    %1523 = vmatprep.subr.mxu0 0.0
    %1524 = vmatpush1.msra.mxu0 0.0
    %1525 = vmatprep.subr.mxu0 0.0
    %1526 = vmatpush1.msra.mxu0 0.0
    %1527 = vmatprep.subr.mxu0 0.0
    %1528 = vmatpush1.msra.mxu0 0.0
    %1529 = vmatprep.subr.mxu0 0.0
    %1530 = vmatpush1.msra.mxu0 0.0
    %1531 = vmatprep.subr.mxu0 0.0
    %1532 = vmatpush1.msra.mxu0 0.0
    %1533 = vmatprep.subr.mxu0 0.0
    %1534 = vmatpush1.msra.mxu0 0.0
    %1535 = vmatprep.subr.mxu0 0.0
    %1536 = vmatpush1.msra.mxu0 0.0
    %1537 = vmatprep.subr.mxu0 0.0
    %1538 = vmatpush1.msra.mxu0 0.0
    %1539 = vmatprep.subr.mxu0 0.0
    %1540 = vmatpush1.msra.mxu0 0.0
    %1541 = vmatprep.subr.mxu0 0.0
    %1542 = vmatpush1.msra.mxu0 0.0
    %1543 = vmatprep.subr.mxu0 0.0
    %1544 = vmatpush1.msra.mxu0 0.0
    %1545 = vmatprep.subr.mxu0 0.0
    %1546 = vmatpush1.msra.mxu0 0.0
    %1547 = vmatprep.subr.mxu0 0.0
    %1548 = vmatpush1.msra.mxu0 0.0
    %1549 = vmatprep.subr.mxu0 0.0
    %1550 = vmatpush1.msra.mxu0 0.0
    %1551 = vmatprep.subr.mxu0 0.0
    %1552 = vmatpush1.msra.mxu0 0.0
    %1553 = vmatprep.subr.mxu0 0.0
    %1554 = vmatpush1.msra.mxu0 0.0
    %1555 = vmatprep.subr.mxu0 0.0
    %1556 = vmatpush1.msra.mxu0 0.0
    %1557 = vmatprep.subr.mxu0 0.0
    %1558 = vmatpush1.msra.mxu0 0.0
    %1559 = vmatprep.subr.mxu0 0.0
    %1560 = vmatpush1.msra.mxu0 0.0
    %1561 = vmatprep.subr.mxu0 0.0
    %1562 = vmatpush1.msra.mxu0 0.0
    %1563 = vmatprep.subr.mxu0 0.0
    %1564 = vmatpush1.msra.mxu0 0.0
    %1565 = vmatprep.subr.mxu0 0.0
    %1566 = vmatpush1.msra.mxu0 0.0
    %1567 = vmatprep.subr.mxu0 0.0
    %1568 = vmatpush1.msra.mxu0 0.0
    %1569 = vmatprep.subr.mxu0 0.0
    %1570 = vmatpush1.msra.mxu0 0.0
    %1571 = vmatprep.subr.mxu0 0.0
    %1572 = vmatpush1.msra.mxu0 0.0
    %1573 = vmatprep.subr.mxu0 0.0
    %1574 = vmatpush1.msra.mxu0 0.0
    %1575 = vmatprep.subr.mxu0 0.0
    %1576 = vmatpush1.msra.mxu0 0.0
    %1577 = vmatprep.subr.mxu0 0.0
    %1578 = vmatpush1.msra.mxu0 0.0
    %1579 = vmatprep.subr.mxu0 0.0
    %1580 = vmatpush1.msra.mxu0 0.0
    %1581 = vmatprep.mubr.f32.mxu0 0.0
    %v1582 = vand.u32 %v1102, 4294901760
    %v1583 = vsub.f32 %v1102, %v1582
    %v1584 = vand.u32 %v1583, 4294901760
    %1585 = vmatmul.mubr.f32.gmra.mrb[0].mxu0 %v1584
    %v1586 = vpop.f32.mrb[0].mxu0
    %v1587 = vadd.f32 %v1464, %v1586
    %v1588 = vpop.f32.mrb[0].mxu0
    %1589 = vmatprep.mubr.f32.mxu0 0.0
    %v1590 = vand.u32 %v1105, 4294901760
    %v1591 = vsub.f32 %v1105, %v1590
    %v1592 = vand.u32 %v1591, 4294901760
    %1593 = vmatmul.mubr.f32.gmra.mrb[0].mxu0 %v1592
    %v1594 = vpop.f32.mrb[0].mxu0
    %v1595 = vadd.f32 %v1471, %v1594
    %v1596 = vpop.f32.mrb[0].mxu0
    %1597 = vmatprep.mubr.f32.mxu0 0.0
    %v1598 = vand.u32 %v1108, 4294901760
    %v1599 = vsub.f32 %v1108, %v1598
    %v1600 = vand.u32 %v1599, 4294901760
    %1601 = vmatmul.mubr.f32.gmra.mrb[0].mxu0 %v1600
    %v1602 = vpop.f32.mrb[0].mxu0
    %v1603 = vadd.f32 %v1478, %v1602
    %v1604 = vpop.f32.mrb[0].mxu0
    %1605 = vmatprep.mubr.f32.mxu0 0.0
    %v1606 = vand.u32 %v1111, 4294901760
    %v1607 = vsub.f32 %v1111, %v1606
    %v1608 = vand.u32 %v1607, 4294901760
    %1609 = vmatmul.mubr.f32.gmra.mrb[0].mxu0 %v1608
    %v1610 = vpop.f32.mrb[0].mxu0
    %v1611 = vadd.f32 %v1485, %v1610
    %v1612 = vpop.f32.mrb[0].mxu0
    %1613 = vmatprep.mubr.f32.mxu0 0.0
    %v1614 = vand.u32 %v1114, 4294901760
    %v1615 = vsub.f32 %v1114, %v1614
    %v1616 = vand.u32 %v1615, 4294901760
    %1617 = vmatmul.mubr.f32.gmra.mrb[0].mxu0 %v1616
    %v1618 = vpop.f32.mrb[0].mxu0
    %v1619 = vadd.f32 %v1492, %v1618
    %v1620 = vpop.f32.mrb[0].mxu0
    %1621 = vmatprep.mubr.f32.mxu0 0.0
    %v1622 = vand.u32 %v1117, 4294901760
    %v1623 = vsub.f32 %v1117, %v1622
    %v1624 = vand.u32 %v1623, 4294901760
    %1625 = vmatmul.mubr.f32.gmra.mrb[0].mxu0 %v1624
    %v1626 = vpop.f32.mrb[0].mxu0
    %v1627 = vadd.f32 %v1499, %v1626
    %v1628 = vpop.f32.mrb[0].mxu0
    %1629 = vmatprep.mubr.f32.mxu0 0.0
    %v1630 = vand.u32 %v1120, 4294901760
    %v1631 = vsub.f32 %v1120, %v1630
    %v1632 = vand.u32 %v1631, 4294901760
    %1633 = vmatmul.mubr.f32.gmra.mrb[0].mxu0 %v1632
    %v1634 = vpop.f32.mrb[0].mxu0
    %v1635 = vadd.f32 %v1506, %v1634
    %v1636 = vpop.f32.mrb[0].mxu0
    %1637 = vmatprep.mubr.f32.mxu0 0.0
    %v1638 = vand.u32 %v1123, 4294901760
    %v1639 = vsub.f32 %v1123, %v1638
    %v1640 = vand.u32 %v1639, 4294901760
    %1641 = vmatmul.mubr.f32.gmra.mrb[0].mxu0 %v1640
    %v1642 = vpop.f32.mrb[0].mxu0
    %v1643 = vadd.f32 %v1513, %v1642
    %v1644 = vpop.f32.mrb[0].mxu0
    %1645 = vdwg.mxu0
    %1646 = vmatprep.subr.mxu0 0.0
    %v1647 = vand.u32 %v1127, 4294901760
    %v1648 = vsub.f32 %v1127, %v1647
    %v1649 = vand.u32 %v1648, 4294901760
    %1650 = vmatpush1.msra.mxu0 %v1649
    %1651 = vmatprep.subr.mxu0 0.0
    %1652 = vmatpush1.msra.mxu0 0.0
    %1653 = vmatprep.subr.mxu0 0.0
    %1654 = vmatpush1.msra.mxu0 0.0
    %1655 = vmatprep.subr.mxu0 0.0
    %1656 = vmatpush1.msra.mxu0 0.0
    %1657 = vmatprep.subr.mxu0 0.0
    %1658 = vmatpush1.msra.mxu0 0.0
    %1659 = vmatprep.subr.mxu0 0.0
    %1660 = vmatpush1.msra.mxu0 0.0
    %1661 = vmatprep.subr.mxu0 0.0
    %1662 = vmatpush1.msra.mxu0 0.0
    %1663 = vmatprep.subr.mxu0 0.0
    %1664 = vmatpush1.msra.mxu0 0.0
    %1665 = vmatprep.subr.mxu0 0.0
    %1666 = vmatpush1.msra.mxu0 0.0
    %1667 = vmatprep.subr.mxu0 0.0
    %1668 = vmatpush1.msra.mxu0 0.0
    %1669 = vmatprep.subr.mxu0 0.0
    %1670 = vmatpush1.msra.mxu0 0.0
    %1671 = vmatprep.subr.mxu0 0.0
    %1672 = vmatpush1.msra.mxu0 0.0
    %1673 = vmatprep.subr.mxu0 0.0
    %1674 = vmatpush1.msra.mxu0 0.0
    %1675 = vmatprep.subr.mxu0 0.0
    %1676 = vmatpush1.msra.mxu0 0.0
    %1677 = vmatprep.subr.mxu0 0.0
    %1678 = vmatpush1.msra.mxu0 0.0
    %1679 = vmatprep.subr.mxu0 0.0
    %1680 = vmatpush1.msra.mxu0 0.0
    %1681 = vmatprep.subr.mxu0 0.0
    %1682 = vmatpush1.msra.mxu0 0.0
    %1683 = vmatprep.subr.mxu0 0.0
    %1684 = vmatpush1.msra.mxu0 0.0
    %1685 = vmatprep.subr.mxu0 0.0
    %1686 = vmatpush1.msra.mxu0 0.0
    %1687 = vmatprep.subr.mxu0 0.0
    %1688 = vmatpush1.msra.mxu0 0.0
    %1689 = vmatprep.subr.mxu0 0.0
    %1690 = vmatpush1.msra.mxu0 0.0
    %1691 = vmatprep.subr.mxu0 0.0
    %1692 = vmatpush1.msra.mxu0 0.0
    %1693 = vmatprep.subr.mxu0 0.0
    %1694 = vmatpush1.msra.mxu0 0.0
    %1695 = vmatprep.subr.mxu0 0.0
    %1696 = vmatpush1.msra.mxu0 0.0
    %1697 = vmatprep.subr.mxu0 0.0
    %1698 = vmatpush1.msra.mxu0 0.0
    %1699 = vmatprep.subr.mxu0 0.0
    %1700 = vmatpush1.msra.mxu0 0.0
    %1701 = vmatprep.subr.mxu0 0.0
    %1702 = vmatpush1.msra.mxu0 0.0
    %1703 = vmatprep.subr.mxu0 0.0
    %1704 = vmatpush1.msra.mxu0 0.0
    %1705 = vmatprep.subr.mxu0 0.0
    %1706 = vmatpush1.msra.mxu0 0.0
    %1707 = vmatprep.subr.mxu0 0.0
    %1708 = vmatpush1.msra.mxu0 0.0
    %1709 = vmatprep.subr.mxu0 0.0
    %1710 = vmatpush1.msra.mxu0 0.0
    %1711 = vmatprep.subr.mxu0 0.0
    %1712 = vmatpush1.msra.mxu0 0.0
    %1713 = vmatprep.mubr.f32.mxu0 0.0
    %v1714 = vand.u32 %v1102, 4294901760
    %1715 = vmatmul.mubr.f32.gmra.mrb[0].mxu0 %v1714
    %v1716 = vpop.f32.mrb[0].mxu0
    %v1717 = vadd.f32 %v1587, %v1716
    %v1718 = vpop.f32.mrb[0].mxu0
    %1719 = vmatprep.mubr.f32.mxu0 0.0
    %v1720 = vand.u32 %v1105, 4294901760
    %1721 = vmatmul.mubr.f32.gmra.mrb[0].mxu0 %v1720
    %v1722 = vpop.f32.mrb[0].mxu0
    %v1723 = vadd.f32 %v1595, %v1722
    %v1724 = vpop.f32.mrb[0].mxu0
    %1725 = vmatprep.mubr.f32.mxu0 0.0
    %v1726 = vand.u32 %v1108, 4294901760
    %1727 = vmatmul.mubr.f32.gmra.mrb[0].mxu0 %v1726
    %v1728 = vpop.f32.mrb[0].mxu0
    %v1729 = vadd.f32 %v1603, %v1728
    %v1730 = vpop.f32.mrb[0].mxu0
    %1731 = vmatprep.mubr.f32.mxu0 0.0
    %v1732 = vand.u32 %v1111, 4294901760
    %1733 = vmatmul.mubr.f32.gmra.mrb[0].mxu0 %v1732
    %v1734 = vpop.f32.mrb[0].mxu0
    %v1735 = vadd.f32 %v1611, %v1734
    %v1736 = vpop.f32.mrb[0].mxu0
    %1737 = vmatprep.mubr.f32.mxu0 0.0
    %v1738 = vand.u32 %v1114, 4294901760
    %1739 = vmatmul.mubr.f32.gmra.mrb[0].mxu0 %v1738
    %v1740 = vpop.f32.mrb[0].mxu0
    %v1741 = vadd.f32 %v1619, %v1740
    %v1742 = vpop.f32.mrb[0].mxu0
    %1743 = vmatprep.mubr.f32.mxu0 0.0
    %v1744 = vand.u32 %v1117, 4294901760
    %1745 = vmatmul.mubr.f32.gmra.mrb[0].mxu0 %v1744
    %v1746 = vpop.f32.mrb[0].mxu0
    %v1747 = vadd.f32 %v1627, %v1746
    %v1748 = vpop.f32.mrb[0].mxu0
    %1749 = vmatprep.mubr.f32.mxu0 0.0
    %v1750 = vand.u32 %v1120, 4294901760
    %1751 = vmatmul.mubr.f32.gmra.mrb[0].mxu0 %v1750
    %v1752 = vpop.f32.mrb[0].mxu0
    %v1753 = vadd.f32 %v1635, %v1752
    %v1754 = vpop.f32.mrb[0].mxu0
    %1755 = vmatprep.mubr.f32.mxu0 0.0
    %v1756 = vand.u32 %v1123, 4294901760
    %1757 = vmatmul.mubr.f32.gmra.mrb[0].mxu0 %v1756
    %v1758 = vpop.f32.mrb[0].mxu0
    %v1759 = vadd.f32 %v1643, %v1758
    %v1760 = vpop.f32.mrb[0].mxu0
    %1761 = vdwg.mxu0
    %1762 = vmatprep.subr.mxu0 0.0
    %v1763 = vand.u32 %v1127, 4294901760
    %1764 = vmatpush1.msra.mxu0 %v1763
    %1765 = vmatprep.subr.mxu0 0.0
    %1766 = vmatpush1.msra.mxu0 0.0
    %1767 = vmatprep.subr.mxu0 0.0
    %1768 = vmatpush1.msra.mxu0 0.0
    %1769 = vmatprep.subr.mxu0 0.0
    %1770 = vmatpush1.msra.mxu0 0.0
    %1771 = vmatprep.subr.mxu0 0.0
    %1772 = vmatpush1.msra.mxu0 0.0
    %1773 = vmatprep.subr.mxu0 0.0
    %1774 = vmatpush1.msra.mxu0 0.0
    %1775 = vmatprep.subr.mxu0 0.0
    %1776 = vmatpush1.msra.mxu0 0.0
    %1777 = vmatprep.subr.mxu0 0.0
    %1778 = vmatpush1.msra.mxu0 0.0
    %1779 = vmatprep.subr.mxu0 0.0
    %1780 = vmatpush1.msra.mxu0 0.0
    %1781 = vmatprep.subr.mxu0 0.0
    %1782 = vmatpush1.msra.mxu0 0.0
    %1783 = vmatprep.subr.mxu0 0.0
    %1784 = vmatpush1.msra.mxu0 0.0
    %1785 = vmatprep.subr.mxu0 0.0
    %1786 = vmatpush1.msra.mxu0 0.0
    %1787 = vmatprep.subr.mxu0 0.0
    %1788 = vmatpush1.msra.mxu0 0.0
    %1789 = vmatprep.subr.mxu0 0.0
    %1790 = vmatpush1.msra.mxu0 0.0
    %1791 = vmatprep.subr.mxu0 0.0
    %1792 = vmatpush1.msra.mxu0 0.0
    %1793 = vmatprep.subr.mxu0 0.0
    %1794 = vmatpush1.msra.mxu0 0.0
    %1795 = vmatprep.subr.mxu0 0.0
    %1796 = vmatpush1.msra.mxu0 0.0
    %1797 = vmatprep.subr.mxu0 0.0
    %1798 = vmatpush1.msra.mxu0 0.0
    %1799 = vmatprep.subr.mxu0 0.0
    %1800 = vmatpush1.msra.mxu0 0.0
    %1801 = vmatprep.subr.mxu0 0.0
    %1802 = vmatpush1.msra.mxu0 0.0
    %1803 = vmatprep.subr.mxu0 0.0
    %1804 = vmatpush1.msra.mxu0 0.0
    %1805 = vmatprep.subr.mxu0 0.0
    %1806 = vmatpush1.msra.mxu0 0.0
    %1807 = vmatprep.subr.mxu0 0.0
    %1808 = vmatpush1.msra.mxu0 0.0
    %1809 = vmatprep.subr.mxu0 0.0
    %1810 = vmatpush1.msra.mxu0 0.0
    %1811 = vmatprep.subr.mxu0 0.0
    %1812 = vmatpush1.msra.mxu0 0.0
    %1813 = vmatprep.subr.mxu0 0.0
    %1814 = vmatpush1.msra.mxu0 0.0
    %1815 = vmatprep.subr.mxu0 0.0
    %1816 = vmatpush1.msra.mxu0 0.0
    %1817 = vmatprep.subr.mxu0 0.0
    %1818 = vmatpush1.msra.mxu0 0.0
    %1819 = vmatprep.subr.mxu0 0.0
    %1820 = vmatpush1.msra.mxu0 0.0
    %1821 = vmatprep.subr.mxu0 0.0
    %1822 = vmatpush1.msra.mxu0 0.0
    %1823 = vmatprep.subr.mxu0 0.0
    %1824 = vmatpush1.msra.mxu0 0.0
    %1825 = vmatprep.subr.mxu0 0.0
    %1826 = vmatpush1.msra.mxu0 0.0
    %1827 = vmatprep.mubr.f32.mxu0 0.0
    %v1828 = vand.u32 %v1102, 4294901760
    %1829 = vmatmul.mubr.f32.gmra.mrb[0].mxu0 %v1828
    %v1830 = vpop.f32.mrb[0].mxu0
    %v1831 = vadd.f32 %v1717, %v1830
    %v1832 = vpop.f32.mrb[0].mxu0
    %1833 = vmatprep.mubr.f32.mxu0 0.0
    %v1834 = vand.u32 %v1105, 4294901760
    %1835 = vmatmul.mubr.f32.gmra.mrb[0].mxu0 %v1834
    %v1836 = vpop.f32.mrb[0].mxu0
    %v1837 = vadd.f32 %v1723, %v1836
    %v1838 = vpop.f32.mrb[0].mxu0
    %1839 = vmatprep.mubr.f32.mxu0 0.0
    %v1840 = vand.u32 %v1108, 4294901760
    %1841 = vmatmul.mubr.f32.gmra.mrb[0].mxu0 %v1840
    %v1842 = vpop.f32.mrb[0].mxu0
    %v1843 = vadd.f32 %v1729, %v1842
    %v1844 = vpop.f32.mrb[0].mxu0
    %1845 = vmatprep.mubr.f32.mxu0 0.0
    %v1846 = vand.u32 %v1111, 4294901760
    %1847 = vmatmul.mubr.f32.gmra.mrb[0].mxu0 %v1846
    %v1848 = vpop.f32.mrb[0].mxu0
    %v1849 = vadd.f32 %v1735, %v1848
    %v1850 = vpop.f32.mrb[0].mxu0
    %1851 = vmatprep.mubr.f32.mxu0 0.0
    %v1852 = vand.u32 %v1114, 4294901760
    %1853 = vmatmul.mubr.f32.gmra.mrb[0].mxu0 %v1852
    %v1854 = vpop.f32.mrb[0].mxu0
    %v1855 = vadd.f32 %v1741, %v1854
    %v1856 = vpop.f32.mrb[0].mxu0
    %1857 = vmatprep.mubr.f32.mxu0 0.0
    %v1858 = vand.u32 %v1117, 4294901760
    %1859 = vmatmul.mubr.f32.gmra.mrb[0].mxu0 %v1858
    %v1860 = vpop.f32.mrb[0].mxu0
    %v1861 = vadd.f32 %v1747, %v1860
    %v1862 = vpop.f32.mrb[0].mxu0
    %1863 = vmatprep.mubr.f32.mxu0 0.0
    %v1864 = vand.u32 %v1120, 4294901760
    %1865 = vmatmul.mubr.f32.gmra.mrb[0].mxu0 %v1864
    %v1866 = vpop.f32.mrb[0].mxu0
    %v1867 = vadd.f32 %v1753, %v1866
    %v1868 = vpop.f32.mrb[0].mxu0
    %1869 = vmatprep.mubr.f32.mxu0 0.0
    %v1870 = vand.u32 %v1123, 4294901760
    %1871 = vmatmul.mubr.f32.gmra.mrb[0].mxu0 %v1870
    %v1872 = vpop.f32.mrb[0].mxu0
    %v1873 = vadd.f32 %v1759, %v1872
    %v1874 = vpop.f32.mrb[0].mxu0
    %1875 = vdwg.mxu0
    %v1876 = vsub.f32 %v34, %v1831
    %v1877 = vsub.f32 %v35, %v1837
    %v1878 = vsub.f32 %v36, %v1843
    %v1879 = vsub.f32 %v37, %v1849
    %v1880 = vsub.f32 %v38, %v1855
    %v1881 = vsub.f32 %v39, %v1861
    %v1882 = vsub.f32 %v40, %v1867
    %v1883 = vsub.f32 %v41, %v1873
    %v1884 = vmul.f32 %v1876, %v1876
    %v1885 = vmul.f32 %v1877, %v1877
    %v1886 = vmul.f32 %v1878, %v1878
    %v1887 = vmul.f32 %v1879, %v1879
    %v1888 = vmul.f32 %v1880, %v1880
    %v1889 = vmul.f32 %v1881, %v1881
    %v1890 = vmul.f32 %v1882, %v1882
    %v1891 = vmul.f32 %v1883, %v1883
    %1892 = vmatprep.subr.mxu0 0.0
    %v1893 = vand.u32 %v127, 4294901760
    %1894 = vmatpush1.msra.mxu0 %v1893
    %1895 = vmatprep.subr.mxu0 0.0
    %v1896 = vand.u32 %v128, 4294901760
    %1897 = vmatpush1.msra.mxu0 %v1896
    %1898 = vmatprep.subr.mxu0 0.0
    %v1899 = vand.u32 %v129, 4294901760
    %1900 = vmatpush1.msra.mxu0 %v1899
    %1901 = vmatprep.subr.mxu0 0.0
    %v1902 = vand.u32 %v130, 4294901760
    %1903 = vmatpush1.msra.mxu0 %v1902
    %1904 = vmatprep.subr.mxu0 0.0
    %v1905 = vand.u32 %v131, 4294901760
    %1906 = vmatpush1.msra.mxu0 %v1905
    %1907 = vmatprep.subr.mxu0 0.0
    %v1908 = vand.u32 %v132, 4294901760
    %1909 = vmatpush1.msra.mxu0 %v1908
    %1910 = vmatprep.subr.mxu0 0.0
    %v1911 = vand.u32 %v133, 4294901760
    %1912 = vmatpush1.msra.mxu0 %v1911
    %1913 = vmatprep.subr.mxu0 0.0
    %v1914 = vand.u32 %v134, 4294901760
    %1915 = vmatpush1.msra.mxu0 %v1914
    %1916 = vmatprep.subr.mxu0 0.0
    %v1917 = vand.u32 %v135, 4294901760
    %1918 = vmatpush1.msra.mxu0 %v1917
    %1919 = vmatprep.subr.mxu0 0.0
    %v1920 = vand.u32 %v136, 4294901760
    %1921 = vmatpush1.msra.mxu0 %v1920
    %1922 = vmatprep.subr.mxu0 0.0
    %v1923 = vand.u32 %v137, 4294901760
    %1924 = vmatpush1.msra.mxu0 %v1923
    %1925 = vmatprep.subr.mxu0 0.0
    %v1926 = vand.u32 %v138, 4294901760
    %1927 = vmatpush1.msra.mxu0 %v1926
    %1928 = vmatprep.subr.mxu0 0.0
    %v1929 = vand.u32 %v139, 4294901760
    %1930 = vmatpush1.msra.mxu0 %v1929
    %1931 = vmatprep.subr.mxu0 0.0
    %v1932 = vand.u32 %v140, 4294901760
    %1933 = vmatpush1.msra.mxu0 %v1932
    %1934 = vmatprep.subr.mxu0 0.0
    %v1935 = vand.u32 %v141, 4294901760
    %1936 = vmatpush1.msra.mxu0 %v1935
    %1937 = vmatprep.subr.mxu0 0.0
    %v1938 = vand.u32 %v142, 4294901760
    %1939 = vmatpush1.msra.mxu0 %v1938
    %1940 = vmatprep.subr.mxu0 0.0
    %1941 = vmatpush1.msra.mxu0 0.0
    %1942 = vmatprep.subr.mxu0 0.0
    %1943 = vmatpush1.msra.mxu0 0.0
    %1944 = vmatprep.subr.mxu0 0.0
    %1945 = vmatpush1.msra.mxu0 0.0
    %1946 = vmatprep.subr.mxu0 0.0
    %1947 = vmatpush1.msra.mxu0 0.0
    %1948 = vmatprep.subr.mxu0 0.0
    %1949 = vmatpush1.msra.mxu0 0.0
    %1950 = vmatprep.subr.mxu0 0.0
    %1951 = vmatpush1.msra.mxu0 0.0
    %1952 = vmatprep.subr.mxu0 0.0
    %1953 = vmatpush1.msra.mxu0 0.0
    %1954 = vmatprep.subr.mxu0 0.0
    %1955 = vmatpush1.msra.mxu0 0.0
    %1956 = vmatprep.subr.mxu0 0.0
    %1957 = vmatpush1.msra.mxu0 0.0
    %1958 = vmatprep.subr.mxu0 0.0
    %1959 = vmatpush1.msra.mxu0 0.0
    %1960 = vmatprep.subr.mxu0 0.0
    %1961 = vmatpush1.msra.mxu0 0.0
    %1962 = vmatprep.subr.mxu0 0.0
    %1963 = vmatpush1.msra.mxu0 0.0
    %1964 = vmatprep.subr.mxu0 0.0
    %1965 = vmatpush1.msra.mxu0 0.0
    %1966 = vmatprep.subr.mxu0 0.0
    %1967 = vmatpush1.msra.mxu0 0.0
    %1968 = vmatprep.subr.mxu0 0.0
    %1969 = vmatpush1.msra.mxu0 0.0
    %1970 = vmatprep.subr.mxu0 0.0
    %1971 = vmatpush1.msra.mxu0 0.0
    %1972 = vmatprep.mubr.f32.mxu0 0.0
    %v1973 = vand.u32 %v1884, 4294901760
    %v1974 = vsub.f32 %v1884, %v1973
    %v1975 = vand.u32 %v1974, 4294901760
    %v1976 = vsub.f32 %v1974, %v1975
    %v1977 = vand.u32 %v1976, 4294901760
    %1978 = vmatmul.mubr.f32.gmra.mrb[0].mxu0 %v1977
    %v1979 = vpop.f32.mrb[0].mxu0
    %v1980 = vadd.f32 0.0, %v1979
    %v1981 = vpop.f32.mrb[0].mxu0
    %1982 = vmatprep.mubr.f32.mxu0 0.0
    %v1983 = vand.u32 %v1885, 4294901760
    %v1984 = vsub.f32 %v1885, %v1983
    %v1985 = vand.u32 %v1984, 4294901760
    %v1986 = vsub.f32 %v1984, %v1985
    %v1987 = vand.u32 %v1986, 4294901760
    %1988 = vmatmul.mubr.f32.gmra.mrb[0].mxu0 %v1987
    %v1989 = vpop.f32.mrb[0].mxu0
    %v1990 = vadd.f32 0.0, %v1989
    %v1991 = vpop.f32.mrb[0].mxu0
    %1992 = vmatprep.mubr.f32.mxu0 0.0
    %v1993 = vand.u32 %v1886, 4294901760
    %v1994 = vsub.f32 %v1886, %v1993
    %v1995 = vand.u32 %v1994, 4294901760
    %v1996 = vsub.f32 %v1994, %v1995
    %v1997 = vand.u32 %v1996, 4294901760
    %1998 = vmatmul.mubr.f32.gmra.mrb[0].mxu0 %v1997
    %v1999 = vpop.f32.mrb[0].mxu0
    %v2000 = vadd.f32 0.0, %v1999
    %v2001 = vpop.f32.mrb[0].mxu0
    %2002 = vmatprep.mubr.f32.mxu0 0.0
    %v2003 = vand.u32 %v1887, 4294901760
    %v2004 = vsub.f32 %v1887, %v2003
    %v2005 = vand.u32 %v2004, 4294901760
    %v2006 = vsub.f32 %v2004, %v2005
    %v2007 = vand.u32 %v2006, 4294901760
    %2008 = vmatmul.mubr.f32.gmra.mrb[0].mxu0 %v2007
    %v2009 = vpop.f32.mrb[0].mxu0
    %v2010 = vadd.f32 0.0, %v2009
    %v2011 = vpop.f32.mrb[0].mxu0
    %2012 = vmatprep.mubr.f32.mxu0 0.0
    %v2013 = vand.u32 %v1888, 4294901760
    %v2014 = vsub.f32 %v1888, %v2013
    %v2015 = vand.u32 %v2014, 4294901760
    %v2016 = vsub.f32 %v2014, %v2015
    %v2017 = vand.u32 %v2016, 4294901760
    %2018 = vmatmul.mubr.f32.gmra.mrb[0].mxu0 %v2017
    %v2019 = vpop.f32.mrb[0].mxu0
    %v2020 = vadd.f32 0.0, %v2019
    %v2021 = vpop.f32.mrb[0].mxu0
    %2022 = vmatprep.mubr.f32.mxu0 0.0
    %v2023 = vand.u32 %v1889, 4294901760
    %v2024 = vsub.f32 %v1889, %v2023
    %v2025 = vand.u32 %v2024, 4294901760
    %v2026 = vsub.f32 %v2024, %v2025
    %v2027 = vand.u32 %v2026, 4294901760
    %2028 = vmatmul.mubr.f32.gmra.mrb[0].mxu0 %v2027
    %v2029 = vpop.f32.mrb[0].mxu0
    %v2030 = vadd.f32 0.0, %v2029
    %v2031 = vpop.f32.mrb[0].mxu0
    %2032 = vmatprep.mubr.f32.mxu0 0.0
    %v2033 = vand.u32 %v1890, 4294901760
    %v2034 = vsub.f32 %v1890, %v2033
    %v2035 = vand.u32 %v2034, 4294901760
    %v2036 = vsub.f32 %v2034, %v2035
    %v2037 = vand.u32 %v2036, 4294901760
    %2038 = vmatmul.mubr.f32.gmra.mrb[0].mxu0 %v2037
    %v2039 = vpop.f32.mrb[0].mxu0
    %v2040 = vadd.f32 0.0, %v2039
    %v2041 = vpop.f32.mrb[0].mxu0
    %2042 = vmatprep.mubr.f32.mxu0 0.0
    %v2043 = vand.u32 %v1891, 4294901760
    %v2044 = vsub.f32 %v1891, %v2043
    %v2045 = vand.u32 %v2044, 4294901760
    %v2046 = vsub.f32 %v2044, %v2045
    %v2047 = vand.u32 %v2046, 4294901760
    %2048 = vmatmul.mubr.f32.gmra.mrb[0].mxu0 %v2047
    %v2049 = vpop.f32.mrb[0].mxu0
    %v2050 = vadd.f32 0.0, %v2049
    %v2051 = vpop.f32.mrb[0].mxu0
    %2052 = vdwg.mxu0
    %2053 = vmatprep.subr.mxu0 0.0
    %v2054 = vand.u32 %v127, 4294901760
    %v2055 = vsub.f32 %v127, %v2054
    %v2056 = vand.u32 %v2055, 4294901760
    %v2057 = vsub.f32 %v2055, %v2056
    %v2058 = vand.u32 %v2057, 4294901760
    %2059 = vmatpush1.msra.mxu0 %v2058
    %2060 = vmatprep.subr.mxu0 0.0
    %v2061 = vand.u32 %v128, 4294901760
    %v2062 = vsub.f32 %v128, %v2061
    %v2063 = vand.u32 %v2062, 4294901760
    %v2064 = vsub.f32 %v2062, %v2063
    %v2065 = vand.u32 %v2064, 4294901760
    %2066 = vmatpush1.msra.mxu0 %v2065
    %2067 = vmatprep.subr.mxu0 0.0
    %v2068 = vand.u32 %v129, 4294901760
    %v2069 = vsub.f32 %v129, %v2068
    %v2070 = vand.u32 %v2069, 4294901760
    %v2071 = vsub.f32 %v2069, %v2070
    %v2072 = vand.u32 %v2071, 4294901760
    %2073 = vmatpush1.msra.mxu0 %v2072
    %2074 = vmatprep.subr.mxu0 0.0
    %v2075 = vand.u32 %v130, 4294901760
    %v2076 = vsub.f32 %v130, %v2075
    %v2077 = vand.u32 %v2076, 4294901760
    %v2078 = vsub.f32 %v2076, %v2077
    %v2079 = vand.u32 %v2078, 4294901760
    %2080 = vmatpush1.msra.mxu0 %v2079
    %2081 = vmatprep.subr.mxu0 0.0
    %v2082 = vand.u32 %v131, 4294901760
    %v2083 = vsub.f32 %v131, %v2082
    %v2084 = vand.u32 %v2083, 4294901760
    %v2085 = vsub.f32 %v2083, %v2084
    %v2086 = vand.u32 %v2085, 4294901760
    %2087 = vmatpush1.msra.mxu0 %v2086
    %2088 = vmatprep.subr.mxu0 0.0
    %v2089 = vand.u32 %v132, 4294901760
    %v2090 = vsub.f32 %v132, %v2089
    %v2091 = vand.u32 %v2090, 4294901760
    %v2092 = vsub.f32 %v2090, %v2091
    %v2093 = vand.u32 %v2092, 4294901760
    %2094 = vmatpush1.msra.mxu0 %v2093
    %2095 = vmatprep.subr.mxu0 0.0
    %v2096 = vand.u32 %v133, 4294901760
    %v2097 = vsub.f32 %v133, %v2096
    %v2098 = vand.u32 %v2097, 4294901760
    %v2099 = vsub.f32 %v2097, %v2098
    %v2100 = vand.u32 %v2099, 4294901760
    %2101 = vmatpush1.msra.mxu0 %v2100
    %2102 = vmatprep.subr.mxu0 0.0
    %v2103 = vand.u32 %v134, 4294901760
    %v2104 = vsub.f32 %v134, %v2103
    %v2105 = vand.u32 %v2104, 4294901760
    %v2106 = vsub.f32 %v2104, %v2105
    %v2107 = vand.u32 %v2106, 4294901760
    %2108 = vmatpush1.msra.mxu0 %v2107
    %2109 = vmatprep.subr.mxu0 0.0
    %v2110 = vand.u32 %v135, 4294901760
    %v2111 = vsub.f32 %v135, %v2110
    %v2112 = vand.u32 %v2111, 4294901760
    %v2113 = vsub.f32 %v2111, %v2112
    %v2114 = vand.u32 %v2113, 4294901760
    %2115 = vmatpush1.msra.mxu0 %v2114
    %2116 = vmatprep.subr.mxu0 0.0
    %v2117 = vand.u32 %v136, 4294901760
    %v2118 = vsub.f32 %v136, %v2117
    %v2119 = vand.u32 %v2118, 4294901760
    %v2120 = vsub.f32 %v2118, %v2119
    %v2121 = vand.u32 %v2120, 4294901760
    %2122 = vmatpush1.msra.mxu0 %v2121
    %2123 = vmatprep.subr.mxu0 0.0
    %v2124 = vand.u32 %v137, 4294901760
    %v2125 = vsub.f32 %v137, %v2124
    %v2126 = vand.u32 %v2125, 4294901760
    %v2127 = vsub.f32 %v2125, %v2126
    %v2128 = vand.u32 %v2127, 4294901760
    %2129 = vmatpush1.msra.mxu0 %v2128
    %2130 = vmatprep.subr.mxu0 0.0
    %v2131 = vand.u32 %v138, 4294901760
    %v2132 = vsub.f32 %v138, %v2131
    %v2133 = vand.u32 %v2132, 4294901760
    %v2134 = vsub.f32 %v2132, %v2133
    %v2135 = vand.u32 %v2134, 4294901760
    %2136 = vmatpush1.msra.mxu0 %v2135
    %2137 = vmatprep.subr.mxu0 0.0
    %v2138 = vand.u32 %v139, 4294901760
    %v2139 = vsub.f32 %v139, %v2138
    %v2140 = vand.u32 %v2139, 4294901760
    %v2141 = vsub.f32 %v2139, %v2140
    %v2142 = vand.u32 %v2141, 4294901760
    %2143 = vmatpush1.msra.mxu0 %v2142
    %2144 = vmatprep.subr.mxu0 0.0
    %v2145 = vand.u32 %v140, 4294901760
    %v2146 = vsub.f32 %v140, %v2145
    %v2147 = vand.u32 %v2146, 4294901760
    %v2148 = vsub.f32 %v2146, %v2147
    %v2149 = vand.u32 %v2148, 4294901760
    %2150 = vmatpush1.msra.mxu0 %v2149
    %2151 = vmatprep.subr.mxu0 0.0
    %v2152 = vand.u32 %v141, 4294901760
    %v2153 = vsub.f32 %v141, %v2152
    %v2154 = vand.u32 %v2153, 4294901760
    %v2155 = vsub.f32 %v2153, %v2154
    %v2156 = vand.u32 %v2155, 4294901760
    %2157 = vmatpush1.msra.mxu0 %v2156
    %2158 = vmatprep.subr.mxu0 0.0
    %v2159 = vand.u32 %v142, 4294901760
    %v2160 = vsub.f32 %v142, %v2159
    %v2161 = vand.u32 %v2160, 4294901760
    %v2162 = vsub.f32 %v2160, %v2161
    %v2163 = vand.u32 %v2162, 4294901760
    %2164 = vmatpush1.msra.mxu0 %v2163
    %2165 = vmatprep.subr.mxu0 0.0
    %2166 = vmatpush1.msra.mxu0 0.0
    %2167 = vmatprep.subr.mxu0 0.0
    %2168 = vmatpush1.msra.mxu0 0.0
    %2169 = vmatprep.subr.mxu0 0.0
    %2170 = vmatpush1.msra.mxu0 0.0
    %2171 = vmatprep.subr.mxu0 0.0
    %2172 = vmatpush1.msra.mxu0 0.0
    %2173 = vmatprep.subr.mxu0 0.0
    %2174 = vmatpush1.msra.mxu0 0.0
    %2175 = vmatprep.subr.mxu0 0.0
    %2176 = vmatpush1.msra.mxu0 0.0
    %2177 = vmatprep.subr.mxu0 0.0
    %2178 = vmatpush1.msra.mxu0 0.0
    %2179 = vmatprep.subr.mxu0 0.0
    %2180 = vmatpush1.msra.mxu0 0.0
    %2181 = vmatprep.subr.mxu0 0.0
    %2182 = vmatpush1.msra.mxu0 0.0
    %2183 = vmatprep.subr.mxu0 0.0
    %2184 = vmatpush1.msra.mxu0 0.0
    %2185 = vmatprep.subr.mxu0 0.0
    %2186 = vmatpush1.msra.mxu0 0.0
    %2187 = vmatprep.subr.mxu0 0.0
    %2188 = vmatpush1.msra.mxu0 0.0
    %2189 = vmatprep.subr.mxu0 0.0
    %2190 = vmatpush1.msra.mxu0 0.0
    %2191 = vmatprep.subr.mxu0 0.0
    %2192 = vmatpush1.msra.mxu0 0.0
    %2193 = vmatprep.subr.mxu0 0.0
    %2194 = vmatpush1.msra.mxu0 0.0
    %2195 = vmatprep.subr.mxu0 0.0
    %2196 = vmatpush1.msra.mxu0 0.0
    %2197 = vmatprep.mubr.f32.mxu0 0.0
    %v2198 = vand.u32 %v1884, 4294901760
    %2199 = vmatmul.mubr.f32.gmra.mrb[0].mxu0 %v2198
    %v2200 = vpop.f32.mrb[0].mxu0
    %v2201 = vadd.f32 %v1980, %v2200
    %v2202 = vpop.f32.mrb[0].mxu0
    %2203 = vmatprep.mubr.f32.mxu0 0.0
    %v2204 = vand.u32 %v1885, 4294901760
    %2205 = vmatmul.mubr.f32.gmra.mrb[0].mxu0 %v2204
    %v2206 = vpop.f32.mrb[0].mxu0
    %v2207 = vadd.f32 %v1990, %v2206
    %v2208 = vpop.f32.mrb[0].mxu0
    %2209 = vmatprep.mubr.f32.mxu0 0.0
    %v2210 = vand.u32 %v1886, 4294901760
    %2211 = vmatmul.mubr.f32.gmra.mrb[0].mxu0 %v2210
    %v2212 = vpop.f32.mrb[0].mxu0
    %v2213 = vadd.f32 %v2000, %v2212
    %v2214 = vpop.f32.mrb[0].mxu0
    %2215 = vmatprep.mubr.f32.mxu0 0.0
    %v2216 = vand.u32 %v1887, 4294901760
    %2217 = vmatmul.mubr.f32.gmra.mrb[0].mxu0 %v2216
    %v2218 = vpop.f32.mrb[0].mxu0
    %v2219 = vadd.f32 %v2010, %v2218
    %v2220 = vpop.f32.mrb[0].mxu0
    %2221 = vmatprep.mubr.f32.mxu0 0.0
    %v2222 = vand.u32 %v1888, 4294901760
    %2223 = vmatmul.mubr.f32.gmra.mrb[0].mxu0 %v2222
    %v2224 = vpop.f32.mrb[0].mxu0
    %v2225 = vadd.f32 %v2020, %v2224
    %v2226 = vpop.f32.mrb[0].mxu0
    %2227 = vmatprep.mubr.f32.mxu0 0.0
    %v2228 = vand.u32 %v1889, 4294901760
    %2229 = vmatmul.mubr.f32.gmra.mrb[0].mxu0 %v2228
    %v2230 = vpop.f32.mrb[0].mxu0
    %v2231 = vadd.f32 %v2030, %v2230
    %v2232 = vpop.f32.mrb[0].mxu0
    %2233 = vmatprep.mubr.f32.mxu0 0.0
    %v2234 = vand.u32 %v1890, 4294901760
    %2235 = vmatmul.mubr.f32.gmra.mrb[0].mxu0 %v2234
    %v2236 = vpop.f32.mrb[0].mxu0
    %v2237 = vadd.f32 %v2040, %v2236
    %v2238 = vpop.f32.mrb[0].mxu0
    %2239 = vmatprep.mubr.f32.mxu0 0.0
    %v2240 = vand.u32 %v1891, 4294901760
    %2241 = vmatmul.mubr.f32.gmra.mrb[0].mxu0 %v2240
    %v2242 = vpop.f32.mrb[0].mxu0
    %v2243 = vadd.f32 %v2050, %v2242
    %v2244 = vpop.f32.mrb[0].mxu0
    %2245 = vdwg.mxu0
    %2246 = vmatprep.subr.mxu0 0.0
    %v2247 = vand.u32 %v127, 4294901760
    %v2248 = vsub.f32 %v127, %v2247
    %2249 = vmatpush1.msra.mxu0 %v2248
    %2250 = vmatprep.subr.mxu0 0.0
    %v2251 = vand.u32 %v128, 4294901760
    %v2252 = vsub.f32 %v128, %v2251
    %2253 = vmatpush1.msra.mxu0 %v2252
    %2254 = vmatprep.subr.mxu0 0.0
    %v2255 = vand.u32 %v129, 4294901760
    %v2256 = vsub.f32 %v129, %v2255
    %2257 = vmatpush1.msra.mxu0 %v2256
    %2258 = vmatprep.subr.mxu0 0.0
    %v2259 = vand.u32 %v130, 4294901760
    %v2260 = vsub.f32 %v130, %v2259
    %2261 = vmatpush1.msra.mxu0 %v2260
    %2262 = vmatprep.subr.mxu0 0.0
    %v2263 = vand.u32 %v131, 4294901760
    %v2264 = vsub.f32 %v131, %v2263
    %2265 = vmatpush1.msra.mxu0 %v2264
    %2266 = vmatprep.subr.mxu0 0.0
    %v2267 = vand.u32 %v132, 4294901760
    %v2268 = vsub.f32 %v132, %v2267
    %2269 = vmatpush1.msra.mxu0 %v2268
    %2270 = vmatprep.subr.mxu0 0.0
    %v2271 = vand.u32 %v133, 4294901760
    %v2272 = vsub.f32 %v133, %v2271
    %2273 = vmatpush1.msra.mxu0 %v2272
    %2274 = vmatprep.subr.mxu0 0.0
    %v2275 = vand.u32 %v134, 4294901760
    %v2276 = vsub.f32 %v134, %v2275
    %2277 = vmatpush1.msra.mxu0 %v2276
    %2278 = vmatprep.subr.mxu0 0.0
    %v2279 = vand.u32 %v135, 4294901760
    %v2280 = vsub.f32 %v135, %v2279
    %2281 = vmatpush1.msra.mxu0 %v2280
    %2282 = vmatprep.subr.mxu0 0.0
    %v2283 = vand.u32 %v136, 4294901760
    %v2284 = vsub.f32 %v136, %v2283
    %2285 = vmatpush1.msra.mxu0 %v2284
    %2286 = vmatprep.subr.mxu0 0.0
    %v2287 = vand.u32 %v137, 4294901760
    %v2288 = vsub.f32 %v137, %v2287
    %2289 = vmatpush1.msra.mxu0 %v2288
    %2290 = vmatprep.subr.mxu0 0.0
    %v2291 = vand.u32 %v138, 4294901760
    %v2292 = vsub.f32 %v138, %v2291
    %2293 = vmatpush1.msra.mxu0 %v2292
    %2294 = vmatprep.subr.mxu0 0.0
    %v2295 = vand.u32 %v139, 4294901760
    %v2296 = vsub.f32 %v139, %v2295
    %2297 = vmatpush1.msra.mxu0 %v2296
    %2298 = vmatprep.subr.mxu0 0.0
    %v2299 = vand.u32 %v140, 4294901760
    %v2300 = vsub.f32 %v140, %v2299
    %2301 = vmatpush1.msra.mxu0 %v2300
    %2302 = vmatprep.subr.mxu0 0.0
    %v2303 = vand.u32 %v141, 4294901760
    %v2304 = vsub.f32 %v141, %v2303
    %2305 = vmatpush1.msra.mxu0 %v2304
    %2306 = vmatprep.subr.mxu0 0.0
    %v2307 = vand.u32 %v142, 4294901760
    %v2308 = vsub.f32 %v142, %v2307
    %2309 = vmatpush1.msra.mxu0 %v2308
    %2310 = vmatprep.subr.mxu0 0.0
    %2311 = vmatpush1.msra.mxu0 0.0
    %2312 = vmatprep.subr.mxu0 0.0
    %2313 = vmatpush1.msra.mxu0 0.0
    %2314 = vmatprep.subr.mxu0 0.0
    %2315 = vmatpush1.msra.mxu0 0.0
    %2316 = vmatprep.subr.mxu0 0.0
    %2317 = vmatpush1.msra.mxu0 0.0
    %2318 = vmatprep.subr.mxu0 0.0
    %2319 = vmatpush1.msra.mxu0 0.0
    %2320 = vmatprep.subr.mxu0 0.0
    %2321 = vmatpush1.msra.mxu0 0.0
    %2322 = vmatprep.subr.mxu0 0.0
    %2323 = vmatpush1.msra.mxu0 0.0
    %2324 = vmatprep.subr.mxu0 0.0
    %2325 = vmatpush1.msra.mxu0 0.0
    %2326 = vmatprep.subr.mxu0 0.0
    %2327 = vmatpush1.msra.mxu0 0.0
    %2328 = vmatprep.subr.mxu0 0.0
    %2329 = vmatpush1.msra.mxu0 0.0
    %2330 = vmatprep.subr.mxu0 0.0
    %2331 = vmatpush1.msra.mxu0 0.0
    %2332 = vmatprep.subr.mxu0 0.0
    %2333 = vmatpush1.msra.mxu0 0.0
    %2334 = vmatprep.subr.mxu0 0.0
    %2335 = vmatpush1.msra.mxu0 0.0
    %2336 = vmatprep.subr.mxu0 0.0
    %2337 = vmatpush1.msra.mxu0 0.0
    %2338 = vmatprep.subr.mxu0 0.0
    %2339 = vmatpush1.msra.mxu0 0.0
    %2340 = vmatprep.subr.mxu0 0.0
    %2341 = vmatpush1.msra.mxu0 0.0
    %2342 = vmatprep.mubr.f32.mxu0 0.0
    %v2343 = vand.u32 %v1884, 4294901760
    %v2344 = vsub.f32 %v1884, %v2343
    %2345 = vmatmul.mubr.f32.gmra.mrb[0].mxu0 %v2344
    %v2346 = vpop.f32.mrb[0].mxu0
    %v2347 = vadd.f32 %v2201, %v2346
    %v2348 = vpop.f32.mrb[0].mxu0
    %2349 = vmatprep.mubr.f32.mxu0 0.0
    %v2350 = vand.u32 %v1885, 4294901760
    %v2351 = vsub.f32 %v1885, %v2350
    %2352 = vmatmul.mubr.f32.gmra.mrb[0].mxu0 %v2351
    %v2353 = vpop.f32.mrb[0].mxu0
    %v2354 = vadd.f32 %v2207, %v2353
    %v2355 = vpop.f32.mrb[0].mxu0
    %2356 = vmatprep.mubr.f32.mxu0 0.0
    %v2357 = vand.u32 %v1886, 4294901760
    %v2358 = vsub.f32 %v1886, %v2357
    %2359 = vmatmul.mubr.f32.gmra.mrb[0].mxu0 %v2358
    %v2360 = vpop.f32.mrb[0].mxu0
    %v2361 = vadd.f32 %v2213, %v2360
    %v2362 = vpop.f32.mrb[0].mxu0
    %2363 = vmatprep.mubr.f32.mxu0 0.0
    %v2364 = vand.u32 %v1887, 4294901760
    %v2365 = vsub.f32 %v1887, %v2364
    %2366 = vmatmul.mubr.f32.gmra.mrb[0].mxu0 %v2365
    %v2367 = vpop.f32.mrb[0].mxu0
    %v2368 = vadd.f32 %v2219, %v2367
    %v2369 = vpop.f32.mrb[0].mxu0
    %2370 = vmatprep.mubr.f32.mxu0 0.0
    %v2371 = vand.u32 %v1888, 4294901760
    %v2372 = vsub.f32 %v1888, %v2371
    %2373 = vmatmul.mubr.f32.gmra.mrb[0].mxu0 %v2372
    %v2374 = vpop.f32.mrb[0].mxu0
    %v2375 = vadd.f32 %v2225, %v2374
    %v2376 = vpop.f32.mrb[0].mxu0
    %2377 = vmatprep.mubr.f32.mxu0 0.0
    %v2378 = vand.u32 %v1889, 4294901760
    %v2379 = vsub.f32 %v1889, %v2378
    %2380 = vmatmul.mubr.f32.gmra.mrb[0].mxu0 %v2379
    %v2381 = vpop.f32.mrb[0].mxu0
    %v2382 = vadd.f32 %v2231, %v2381
    %v2383 = vpop.f32.mrb[0].mxu0
    %2384 = vmatprep.mubr.f32.mxu0 0.0
    %v2385 = vand.u32 %v1890, 4294901760
    %v2386 = vsub.f32 %v1890, %v2385
    %2387 = vmatmul.mubr.f32.gmra.mrb[0].mxu0 %v2386
    %v2388 = vpop.f32.mrb[0].mxu0
    %v2389 = vadd.f32 %v2237, %v2388
    %v2390 = vpop.f32.mrb[0].mxu0
    %2391 = vmatprep.mubr.f32.mxu0 0.0
    %v2392 = vand.u32 %v1891, 4294901760
    %v2393 = vsub.f32 %v1891, %v2392
    %2394 = vmatmul.mubr.f32.gmra.mrb[0].mxu0 %v2393
    %v2395 = vpop.f32.mrb[0].mxu0
    %v2396 = vadd.f32 %v2243, %v2395
    %v2397 = vpop.f32.mrb[0].mxu0
    %2398 = vdwg.mxu0
    %2399 = vmatprep.subr.mxu0 0.0
    %v2400 = vand.u32 %v127, 4294901760
    %2401 = vmatpush1.msra.mxu0 %v2400
    %2402 = vmatprep.subr.mxu0 0.0
    %v2403 = vand.u32 %v128, 4294901760
    %2404 = vmatpush1.msra.mxu0 %v2403
    %2405 = vmatprep.subr.mxu0 0.0
    %v2406 = vand.u32 %v129, 4294901760
    %2407 = vmatpush1.msra.mxu0 %v2406
    %2408 = vmatprep.subr.mxu0 0.0
    %v2409 = vand.u32 %v130, 4294901760
    %2410 = vmatpush1.msra.mxu0 %v2409
    %2411 = vmatprep.subr.mxu0 0.0
    %v2412 = vand.u32 %v131, 4294901760
    %2413 = vmatpush1.msra.mxu0 %v2412
    %2414 = vmatprep.subr.mxu0 0.0
    %v2415 = vand.u32 %v132, 4294901760
    %2416 = vmatpush1.msra.mxu0 %v2415
    %2417 = vmatprep.subr.mxu0 0.0
    %v2418 = vand.u32 %v133, 4294901760
    %2419 = vmatpush1.msra.mxu0 %v2418
    %2420 = vmatprep.subr.mxu0 0.0
    %v2421 = vand.u32 %v134, 4294901760
    %2422 = vmatpush1.msra.mxu0 %v2421
    %2423 = vmatprep.subr.mxu0 0.0
    %v2424 = vand.u32 %v135, 4294901760
    %2425 = vmatpush1.msra.mxu0 %v2424
    %2426 = vmatprep.subr.mxu0 0.0
    %v2427 = vand.u32 %v136, 4294901760
    %2428 = vmatpush1.msra.mxu0 %v2427
    %2429 = vmatprep.subr.mxu0 0.0
    %v2430 = vand.u32 %v137, 4294901760
    %2431 = vmatpush1.msra.mxu0 %v2430
    %2432 = vmatprep.subr.mxu0 0.0
    %v2433 = vand.u32 %v138, 4294901760
    %2434 = vmatpush1.msra.mxu0 %v2433
    %2435 = vmatprep.subr.mxu0 0.0
    %v2436 = vand.u32 %v139, 4294901760
    %2437 = vmatpush1.msra.mxu0 %v2436
    %2438 = vmatprep.subr.mxu0 0.0
    %v2439 = vand.u32 %v140, 4294901760
    %2440 = vmatpush1.msra.mxu0 %v2439
    %2441 = vmatprep.subr.mxu0 0.0
    %v2442 = vand.u32 %v141, 4294901760
    %2443 = vmatpush1.msra.mxu0 %v2442
    %2444 = vmatprep.subr.mxu0 0.0
    %v2445 = vand.u32 %v142, 4294901760
    %2446 = vmatpush1.msra.mxu0 %v2445
    %2447 = vmatprep.subr.mxu0 0.0
    %2448 = vmatpush1.msra.mxu0 0.0
    %2449 = vmatprep.subr.mxu0 0.0
    %2450 = vmatpush1.msra.mxu0 0.0
    %2451 = vmatprep.subr.mxu0 0.0
    %2452 = vmatpush1.msra.mxu0 0.0
    %2453 = vmatprep.subr.mxu0 0.0
    %2454 = vmatpush1.msra.mxu0 0.0
    %2455 = vmatprep.subr.mxu0 0.0
    %2456 = vmatpush1.msra.mxu0 0.0
    %2457 = vmatprep.subr.mxu0 0.0
    %2458 = vmatpush1.msra.mxu0 0.0
    %2459 = vmatprep.subr.mxu0 0.0
    %2460 = vmatpush1.msra.mxu0 0.0
    %2461 = vmatprep.subr.mxu0 0.0
    %2462 = vmatpush1.msra.mxu0 0.0
    %2463 = vmatprep.subr.mxu0 0.0
    %2464 = vmatpush1.msra.mxu0 0.0
    %2465 = vmatprep.subr.mxu0 0.0
    %2466 = vmatpush1.msra.mxu0 0.0
    %2467 = vmatprep.subr.mxu0 0.0
    %2468 = vmatpush1.msra.mxu0 0.0
    %2469 = vmatprep.subr.mxu0 0.0
    %2470 = vmatpush1.msra.mxu0 0.0
    %2471 = vmatprep.subr.mxu0 0.0
    %2472 = vmatpush1.msra.mxu0 0.0
    %2473 = vmatprep.subr.mxu0 0.0
    %2474 = vmatpush1.msra.mxu0 0.0
    %2475 = vmatprep.subr.mxu0 0.0
    %2476 = vmatpush1.msra.mxu0 0.0
    %2477 = vmatprep.subr.mxu0 0.0
    %2478 = vmatpush1.msra.mxu0 0.0
    %2479 = vmatprep.mubr.f32.mxu0 0.0
    %v2480 = vand.u32 %v1884, 4294901760
    %v2481 = vsub.f32 %v1884, %v2480
    %v2482 = vand.u32 %v2481, 4294901760
    %2483 = vmatmul.mubr.f32.gmra.mrb[0].mxu0 %v2482
    %v2484 = vpop.f32.mrb[0].mxu0
    %v2485 = vadd.f32 %v2347, %v2484
    %v2486 = vpop.f32.mrb[0].mxu0
    %2487 = vmatprep.mubr.f32.mxu0 0.0
    %v2488 = vand.u32 %v1885, 4294901760
    %v2489 = vsub.f32 %v1885, %v2488
    %v2490 = vand.u32 %v2489, 4294901760
    %2491 = vmatmul.mubr.f32.gmra.mrb[0].mxu0 %v2490
    %v2492 = vpop.f32.mrb[0].mxu0
    %v2493 = vadd.f32 %v2354, %v2492
    %v2494 = vpop.f32.mrb[0].mxu0
    %2495 = vmatprep.mubr.f32.mxu0 0.0
    %v2496 = vand.u32 %v1886, 4294901760
    %v2497 = vsub.f32 %v1886, %v2496
    %v2498 = vand.u32 %v2497, 4294901760
    %2499 = vmatmul.mubr.f32.gmra.mrb[0].mxu0 %v2498
    %v2500 = vpop.f32.mrb[0].mxu0
    %v2501 = vadd.f32 %v2361, %v2500
    %v2502 = vpop.f32.mrb[0].mxu0
    %2503 = vmatprep.mubr.f32.mxu0 0.0
    %v2504 = vand.u32 %v1887, 4294901760
    %v2505 = vsub.f32 %v1887, %v2504
    %v2506 = vand.u32 %v2505, 4294901760
    %2507 = vmatmul.mubr.f32.gmra.mrb[0].mxu0 %v2506
    %v2508 = vpop.f32.mrb[0].mxu0
    %v2509 = vadd.f32 %v2368, %v2508
    %v2510 = vpop.f32.mrb[0].mxu0
    %2511 = vmatprep.mubr.f32.mxu0 0.0
    %v2512 = vand.u32 %v1888, 4294901760
    %v2513 = vsub.f32 %v1888, %v2512
    %v2514 = vand.u32 %v2513, 4294901760
    %2515 = vmatmul.mubr.f32.gmra.mrb[0].mxu0 %v2514
    %v2516 = vpop.f32.mrb[0].mxu0
    %v2517 = vadd.f32 %v2375, %v2516
    %v2518 = vpop.f32.mrb[0].mxu0
    %2519 = vmatprep.mubr.f32.mxu0 0.0
    %v2520 = vand.u32 %v1889, 4294901760
    %v2521 = vsub.f32 %v1889, %v2520
    %v2522 = vand.u32 %v2521, 4294901760
    %2523 = vmatmul.mubr.f32.gmra.mrb[0].mxu0 %v2522
    %v2524 = vpop.f32.mrb[0].mxu0
    %v2525 = vadd.f32 %v2382, %v2524
    %v2526 = vpop.f32.mrb[0].mxu0
    %2527 = vmatprep.mubr.f32.mxu0 0.0
    %v2528 = vand.u32 %v1890, 4294901760
    %v2529 = vsub.f32 %v1890, %v2528
    %v2530 = vand.u32 %v2529, 4294901760
    %2531 = vmatmul.mubr.f32.gmra.mrb[0].mxu0 %v2530
    %v2532 = vpop.f32.mrb[0].mxu0
    %v2533 = vadd.f32 %v2389, %v2532
    %v2534 = vpop.f32.mrb[0].mxu0
    %2535 = vmatprep.mubr.f32.mxu0 0.0
    %v2536 = vand.u32 %v1891, 4294901760
    %v2537 = vsub.f32 %v1891, %v2536
    %v2538 = vand.u32 %v2537, 4294901760
    %2539 = vmatmul.mubr.f32.gmra.mrb[0].mxu0 %v2538
    %v2540 = vpop.f32.mrb[0].mxu0
    %v2541 = vadd.f32 %v2396, %v2540
    %v2542 = vpop.f32.mrb[0].mxu0
    %2543 = vdwg.mxu0
    %2544 = vmatprep.subr.mxu0 0.0
    %v2545 = vand.u32 %v127, 4294901760
    %v2546 = vsub.f32 %v127, %v2545
    %v2547 = vand.u32 %v2546, 4294901760
    %2548 = vmatpush1.msra.mxu0 %v2547
    %2549 = vmatprep.subr.mxu0 0.0
    %v2550 = vand.u32 %v128, 4294901760
    %v2551 = vsub.f32 %v128, %v2550
    %v2552 = vand.u32 %v2551, 4294901760
    %2553 = vmatpush1.msra.mxu0 %v2552
    %2554 = vmatprep.subr.mxu0 0.0
    %v2555 = vand.u32 %v129, 4294901760
    %v2556 = vsub.f32 %v129, %v2555
    %v2557 = vand.u32 %v2556, 4294901760
    %2558 = vmatpush1.msra.mxu0 %v2557
    %2559 = vmatprep.subr.mxu0 0.0
    %v2560 = vand.u32 %v130, 4294901760
    %v2561 = vsub.f32 %v130, %v2560
    %v2562 = vand.u32 %v2561, 4294901760
    %2563 = vmatpush1.msra.mxu0 %v2562
    %2564 = vmatprep.subr.mxu0 0.0
    %v2565 = vand.u32 %v131, 4294901760
    %v2566 = vsub.f32 %v131, %v2565
    %v2567 = vand.u32 %v2566, 4294901760
    %2568 = vmatpush1.msra.mxu0 %v2567
    %2569 = vmatprep.subr.mxu0 0.0
    %v2570 = vand.u32 %v132, 4294901760
    %v2571 = vsub.f32 %v132, %v2570
    %v2572 = vand.u32 %v2571, 4294901760
    %2573 = vmatpush1.msra.mxu0 %v2572
    %2574 = vmatprep.subr.mxu0 0.0
    %v2575 = vand.u32 %v133, 4294901760
    %v2576 = vsub.f32 %v133, %v2575
    %v2577 = vand.u32 %v2576, 4294901760
    %2578 = vmatpush1.msra.mxu0 %v2577
    %2579 = vmatprep.subr.mxu0 0.0
    %v2580 = vand.u32 %v134, 4294901760
    %v2581 = vsub.f32 %v134, %v2580
    %v2582 = vand.u32 %v2581, 4294901760
    %2583 = vmatpush1.msra.mxu0 %v2582
    %2584 = vmatprep.subr.mxu0 0.0
    %v2585 = vand.u32 %v135, 4294901760
    %v2586 = vsub.f32 %v135, %v2585
    %v2587 = vand.u32 %v2586, 4294901760
    %2588 = vmatpush1.msra.mxu0 %v2587
    %2589 = vmatprep.subr.mxu0 0.0
    %v2590 = vand.u32 %v136, 4294901760
    %v2591 = vsub.f32 %v136, %v2590
    %v2592 = vand.u32 %v2591, 4294901760
    %2593 = vmatpush1.msra.mxu0 %v2592
    %2594 = vmatprep.subr.mxu0 0.0
    %v2595 = vand.u32 %v137, 4294901760
    %v2596 = vsub.f32 %v137, %v2595
    %v2597 = vand.u32 %v2596, 4294901760
    %2598 = vmatpush1.msra.mxu0 %v2597
    %2599 = vmatprep.subr.mxu0 0.0
    %v2600 = vand.u32 %v138, 4294901760
    %v2601 = vsub.f32 %v138, %v2600
    %v2602 = vand.u32 %v2601, 4294901760
    %2603 = vmatpush1.msra.mxu0 %v2602
    %2604 = vmatprep.subr.mxu0 0.0
    %v2605 = vand.u32 %v139, 4294901760
    %v2606 = vsub.f32 %v139, %v2605
    %v2607 = vand.u32 %v2606, 4294901760
    %2608 = vmatpush1.msra.mxu0 %v2607
    %2609 = vmatprep.subr.mxu0 0.0
    %v2610 = vand.u32 %v140, 4294901760
    %v2611 = vsub.f32 %v140, %v2610
    %v2612 = vand.u32 %v2611, 4294901760
    %2613 = vmatpush1.msra.mxu0 %v2612
    %2614 = vmatprep.subr.mxu0 0.0
    %v2615 = vand.u32 %v141, 4294901760
    %v2616 = vsub.f32 %v141, %v2615
    %v2617 = vand.u32 %v2616, 4294901760
    %2618 = vmatpush1.msra.mxu0 %v2617
    %2619 = vmatprep.subr.mxu0 0.0
    %v2620 = vand.u32 %v142, 4294901760
    %v2621 = vsub.f32 %v142, %v2620
    %v2622 = vand.u32 %v2621, 4294901760
    %2623 = vmatpush1.msra.mxu0 %v2622
    %2624 = vmatprep.subr.mxu0 0.0
    %2625 = vmatpush1.msra.mxu0 0.0
    %2626 = vmatprep.subr.mxu0 0.0
    %2627 = vmatpush1.msra.mxu0 0.0
    %2628 = vmatprep.subr.mxu0 0.0
    %2629 = vmatpush1.msra.mxu0 0.0
    %2630 = vmatprep.subr.mxu0 0.0
    %2631 = vmatpush1.msra.mxu0 0.0
    %2632 = vmatprep.subr.mxu0 0.0
    %2633 = vmatpush1.msra.mxu0 0.0
    %2634 = vmatprep.subr.mxu0 0.0
    %2635 = vmatpush1.msra.mxu0 0.0
    %2636 = vmatprep.subr.mxu0 0.0
    %2637 = vmatpush1.msra.mxu0 0.0
    %2638 = vmatprep.subr.mxu0 0.0
    %2639 = vmatpush1.msra.mxu0 0.0
    %2640 = vmatprep.subr.mxu0 0.0
    %2641 = vmatpush1.msra.mxu0 0.0
    %2642 = vmatprep.subr.mxu0 0.0
    %2643 = vmatpush1.msra.mxu0 0.0
    %2644 = vmatprep.subr.mxu0 0.0
    %2645 = vmatpush1.msra.mxu0 0.0
    %2646 = vmatprep.subr.mxu0 0.0
    %2647 = vmatpush1.msra.mxu0 0.0
    %2648 = vmatprep.subr.mxu0 0.0
    %2649 = vmatpush1.msra.mxu0 0.0
    %2650 = vmatprep.subr.mxu0 0.0
    %2651 = vmatpush1.msra.mxu0 0.0
    %2652 = vmatprep.subr.mxu0 0.0
    %2653 = vmatpush1.msra.mxu0 0.0
    %2654 = vmatprep.subr.mxu0 0.0
    %2655 = vmatpush1.msra.mxu0 0.0
    %2656 = vmatprep.mubr.f32.mxu0 0.0
    %v2657 = vand.u32 %v1884, 4294901760
    %2658 = vmatmul.mubr.f32.gmra.mrb[0].mxu0 %v2657
    %v2659 = vpop.f32.mrb[0].mxu0
    %v2660 = vadd.f32 %v2485, %v2659
    %v2661 = vpop.f32.mrb[0].mxu0
    %2662 = vmatprep.mubr.f32.mxu0 0.0
    %v2663 = vand.u32 %v1885, 4294901760
    %2664 = vmatmul.mubr.f32.gmra.mrb[0].mxu0 %v2663
    %v2665 = vpop.f32.mrb[0].mxu0
    %v2666 = vadd.f32 %v2493, %v2665
    %v2667 = vpop.f32.mrb[0].mxu0
    %2668 = vmatprep.mubr.f32.mxu0 0.0
    %v2669 = vand.u32 %v1886, 4294901760
    %2670 = vmatmul.mubr.f32.gmra.mrb[0].mxu0 %v2669
    %v2671 = vpop.f32.mrb[0].mxu0
    %v2672 = vadd.f32 %v2501, %v2671
    %v2673 = vpop.f32.mrb[0].mxu0
    %2674 = vmatprep.mubr.f32.mxu0 0.0
    %v2675 = vand.u32 %v1887, 4294901760
    %2676 = vmatmul.mubr.f32.gmra.mrb[0].mxu0 %v2675
    %v2677 = vpop.f32.mrb[0].mxu0
    %v2678 = vadd.f32 %v2509, %v2677
    %v2679 = vpop.f32.mrb[0].mxu0
    %2680 = vmatprep.mubr.f32.mxu0 0.0
    %v2681 = vand.u32 %v1888, 4294901760
    %2682 = vmatmul.mubr.f32.gmra.mrb[0].mxu0 %v2681
    %v2683 = vpop.f32.mrb[0].mxu0
    %v2684 = vadd.f32 %v2517, %v2683
    %v2685 = vpop.f32.mrb[0].mxu0
    %2686 = vmatprep.mubr.f32.mxu0 0.0
    %v2687 = vand.u32 %v1889, 4294901760
    %2688 = vmatmul.mubr.f32.gmra.mrb[0].mxu0 %v2687
    %v2689 = vpop.f32.mrb[0].mxu0
    %v2690 = vadd.f32 %v2525, %v2689
    %v2691 = vpop.f32.mrb[0].mxu0
    %2692 = vmatprep.mubr.f32.mxu0 0.0
    %v2693 = vand.u32 %v1890, 4294901760
    %2694 = vmatmul.mubr.f32.gmra.mrb[0].mxu0 %v2693
    %v2695 = vpop.f32.mrb[0].mxu0
    %v2696 = vadd.f32 %v2533, %v2695
    %v2697 = vpop.f32.mrb[0].mxu0
    %2698 = vmatprep.mubr.f32.mxu0 0.0
    %v2699 = vand.u32 %v1891, 4294901760
    %2700 = vmatmul.mubr.f32.gmra.mrb[0].mxu0 %v2699
    %v2701 = vpop.f32.mrb[0].mxu0
    %v2702 = vadd.f32 %v2541, %v2701
    %v2703 = vpop.f32.mrb[0].mxu0
    %2704 = vdwg.mxu0
    %2705 = vmatprep.subr.mxu0 0.0
    %v2706 = vand.u32 %v127, 4294901760
    %2707 = vmatpush1.msra.mxu0 %v2706
    %2708 = vmatprep.subr.mxu0 0.0
    %v2709 = vand.u32 %v128, 4294901760
    %2710 = vmatpush1.msra.mxu0 %v2709
    %2711 = vmatprep.subr.mxu0 0.0
    %v2712 = vand.u32 %v129, 4294901760
    %2713 = vmatpush1.msra.mxu0 %v2712
    %2714 = vmatprep.subr.mxu0 0.0
    %v2715 = vand.u32 %v130, 4294901760
    %2716 = vmatpush1.msra.mxu0 %v2715
    %2717 = vmatprep.subr.mxu0 0.0
    %v2718 = vand.u32 %v131, 4294901760
    %2719 = vmatpush1.msra.mxu0 %v2718
    %2720 = vmatprep.subr.mxu0 0.0
    %v2721 = vand.u32 %v132, 4294901760
    %2722 = vmatpush1.msra.mxu0 %v2721
    %2723 = vmatprep.subr.mxu0 0.0
    %v2724 = vand.u32 %v133, 4294901760
    %2725 = vmatpush1.msra.mxu0 %v2724
    %2726 = vmatprep.subr.mxu0 0.0
    %v2727 = vand.u32 %v134, 4294901760
    %2728 = vmatpush1.msra.mxu0 %v2727
    %2729 = vmatprep.subr.mxu0 0.0
    %v2730 = vand.u32 %v135, 4294901760
    %2731 = vmatpush1.msra.mxu0 %v2730
    %2732 = vmatprep.subr.mxu0 0.0
    %v2733 = vand.u32 %v136, 4294901760
    %2734 = vmatpush1.msra.mxu0 %v2733
    %2735 = vmatprep.subr.mxu0 0.0
    %v2736 = vand.u32 %v137, 4294901760
    %2737 = vmatpush1.msra.mxu0 %v2736
    %2738 = vmatprep.subr.mxu0 0.0
    %v2739 = vand.u32 %v138, 4294901760
    %2740 = vmatpush1.msra.mxu0 %v2739
    %2741 = vmatprep.subr.mxu0 0.0
    %v2742 = vand.u32 %v139, 4294901760
    %2743 = vmatpush1.msra.mxu0 %v2742
    %2744 = vmatprep.subr.mxu0 0.0
    %v2745 = vand.u32 %v140, 4294901760
    %2746 = vmatpush1.msra.mxu0 %v2745
    %2747 = vmatprep.subr.mxu0 0.0
    %v2748 = vand.u32 %v141, 4294901760
    %2749 = vmatpush1.msra.mxu0 %v2748
    %2750 = vmatprep.subr.mxu0 0.0
    %v2751 = vand.u32 %v142, 4294901760
    %2752 = vmatpush1.msra.mxu0 %v2751
    %2753 = vmatprep.subr.mxu0 0.0
    %2754 = vmatpush1.msra.mxu0 0.0
    %2755 = vmatprep.subr.mxu0 0.0
    %2756 = vmatpush1.msra.mxu0 0.0
    %2757 = vmatprep.subr.mxu0 0.0
    %2758 = vmatpush1.msra.mxu0 0.0
    %2759 = vmatprep.subr.mxu0 0.0
    %2760 = vmatpush1.msra.mxu0 0.0
    %2761 = vmatprep.subr.mxu0 0.0
    %2762 = vmatpush1.msra.mxu0 0.0
    %2763 = vmatprep.subr.mxu0 0.0
    %2764 = vmatpush1.msra.mxu0 0.0
    %2765 = vmatprep.subr.mxu0 0.0
    %2766 = vmatpush1.msra.mxu0 0.0
    %2767 = vmatprep.subr.mxu0 0.0
    %2768 = vmatpush1.msra.mxu0 0.0
    %2769 = vmatprep.subr.mxu0 0.0
    %2770 = vmatpush1.msra.mxu0 0.0
    %2771 = vmatprep.subr.mxu0 0.0
    %2772 = vmatpush1.msra.mxu0 0.0
    %2773 = vmatprep.subr.mxu0 0.0
    %2774 = vmatpush1.msra.mxu0 0.0
    %2775 = vmatprep.subr.mxu0 0.0
    %2776 = vmatpush1.msra.mxu0 0.0
    %2777 = vmatprep.subr.mxu0 0.0
    %2778 = vmatpush1.msra.mxu0 0.0
    %2779 = vmatprep.subr.mxu0 0.0
    %2780 = vmatpush1.msra.mxu0 0.0
    %2781 = vmatprep.subr.mxu0 0.0
    %2782 = vmatpush1.msra.mxu0 0.0
    %2783 = vmatprep.subr.mxu0 0.0
    %2784 = vmatpush1.msra.mxu0 0.0
    %2785 = vmatprep.mubr.f32.mxu0 0.0
    %v2786 = vand.u32 %v1884, 4294901760
    %2787 = vmatmul.mubr.f32.gmra.mrb[0].mxu0 %v2786
    %v2788 = vpop.f32.mrb[0].mxu0
    %v2789 = vadd.f32 %v2660, %v2788
    %v2790 = vpop.f32.mrb[0].mxu0
    %2791 = vmatprep.mubr.f32.mxu0 0.0
    %v2792 = vand.u32 %v1885, 4294901760
    %2793 = vmatmul.mubr.f32.gmra.mrb[0].mxu0 %v2792
    %v2794 = vpop.f32.mrb[0].mxu0
    %v2795 = vadd.f32 %v2666, %v2794
    %v2796 = vpop.f32.mrb[0].mxu0
    %2797 = vmatprep.mubr.f32.mxu0 0.0
    %v2798 = vand.u32 %v1886, 4294901760
    %2799 = vmatmul.mubr.f32.gmra.mrb[0].mxu0 %v2798
    %v2800 = vpop.f32.mrb[0].mxu0
    %v2801 = vadd.f32 %v2672, %v2800
    %v2802 = vpop.f32.mrb[0].mxu0
    %2803 = vmatprep.mubr.f32.mxu0 0.0
    %v2804 = vand.u32 %v1887, 4294901760
    %2805 = vmatmul.mubr.f32.gmra.mrb[0].mxu0 %v2804
    %v2806 = vpop.f32.mrb[0].mxu0
    %v2807 = vadd.f32 %v2678, %v2806
    %v2808 = vpop.f32.mrb[0].mxu0
    %2809 = vmatprep.mubr.f32.mxu0 0.0
    %v2810 = vand.u32 %v1888, 4294901760
    %2811 = vmatmul.mubr.f32.gmra.mrb[0].mxu0 %v2810
    %v2812 = vpop.f32.mrb[0].mxu0
    %v2813 = vadd.f32 %v2684, %v2812
    %v2814 = vpop.f32.mrb[0].mxu0
    %2815 = vmatprep.mubr.f32.mxu0 0.0
    %v2816 = vand.u32 %v1889, 4294901760
    %2817 = vmatmul.mubr.f32.gmra.mrb[0].mxu0 %v2816
    %v2818 = vpop.f32.mrb[0].mxu0
    %v2819 = vadd.f32 %v2690, %v2818
    %v2820 = vpop.f32.mrb[0].mxu0
    %2821 = vmatprep.mubr.f32.mxu0 0.0
    %v2822 = vand.u32 %v1890, 4294901760
    %2823 = vmatmul.mubr.f32.gmra.mrb[0].mxu0 %v2822
    %v2824 = vpop.f32.mrb[0].mxu0
    %v2825 = vadd.f32 %v2696, %v2824
    %v2826 = vpop.f32.mrb[0].mxu0
    %2827 = vmatprep.mubr.f32.mxu0 0.0
    %v2828 = vand.u32 %v1891, 4294901760
    %2829 = vmatmul.mubr.f32.gmra.mrb[0].mxu0 %v2828
    %v2830 = vpop.f32.mrb[0].mxu0
    %v2831 = vadd.f32 %v2702, %v2830
    %v2832 = vpop.f32.mrb[0].mxu0
    %2833 = vdwg.mxu0
    %v2834 = vmul.f32 %v2789, 0.032258064
    %v2835 = vmul.f32 %v2795, 0.032258064
    %v2836 = vmul.f32 %v2801, 0.032258064
    %v2837 = vmul.f32 %v2807, 0.032258064
    %v2838 = vmul.f32 %v2813, 0.032258064
    %v2839 = vmul.f32 %v2819, 0.032258064
    %v2840 = vmul.f32 %v2825, 0.032258064
    %v2841 = vmul.f32 %v2831, 0.032258064
    %v2842 = vrsqrt.pop %v2834
    %v2843 = vmul.f32 %v2834, %v2842
    %vm2844 = vcmp.eq.f32.partialorder %v2834, inf
    %v2845 = vsel %vm2844, %v2834, %v2843
    %vm2846 = vcmp.eq.f32.partialorder %v2834, 0.0
    %v2847 = vand.u32 %v2834, 2147483648
    %v2848 = vsel %vm2846, %v2847, %v2845
    %v2849 = vrsqrt.pop %v2835
    %v2850 = vmul.f32 %v2835, %v2849
    %vm2851 = vcmp.eq.f32.partialorder %v2835, inf
    %v2852 = vsel %vm2851, %v2835, %v2850
    %vm2853 = vcmp.eq.f32.partialorder %v2835, 0.0
    %v2854 = vand.u32 %v2835, 2147483648
    %v2855 = vsel %vm2853, %v2854, %v2852
    %v2856 = vrsqrt.pop %v2836
    %v2857 = vmul.f32 %v2836, %v2856
    %vm2858 = vcmp.eq.f32.partialorder %v2836, inf
    %v2859 = vsel %vm2858, %v2836, %v2857
    %vm2860 = vcmp.eq.f32.partialorder %v2836, 0.0
    %v2861 = vand.u32 %v2836, 2147483648
    %v2862 = vsel %vm2860, %v2861, %v2859
    %v2863 = vrsqrt.pop %v2837
    %v2864 = vmul.f32 %v2837, %v2863
    %vm2865 = vcmp.eq.f32.partialorder %v2837, inf
    %v2866 = vsel %vm2865, %v2837, %v2864
    %vm2867 = vcmp.eq.f32.partialorder %v2837, 0.0
    %v2868 = vand.u32 %v2837, 2147483648
    %v2869 = vsel %vm2867, %v2868, %v2866
    %v2870 = vrsqrt.pop %v2838
    %v2871 = vmul.f32 %v2838, %v2870
    %vm2872 = vcmp.eq.f32.partialorder %v2838, inf
    %v2873 = vsel %vm2872, %v2838, %v2871
    %vm2874 = vcmp.eq.f32.partialorder %v2838, 0.0
    %v2875 = vand.u32 %v2838, 2147483648
    %v2876 = vsel %vm2874, %v2875, %v2873
    %v2877 = vrsqrt.pop %v2839
    %v2878 = vmul.f32 %v2839, %v2877
    %vm2879 = vcmp.eq.f32.partialorder %v2839, inf
    %v2880 = vsel %vm2879, %v2839, %v2878
    %vm2881 = vcmp.eq.f32.partialorder %v2839, 0.0
    %v2882 = vand.u32 %v2839, 2147483648
    %v2883 = vsel %vm2881, %v2882, %v2880
    %v2884 = vrsqrt.pop %v2840
    %v2885 = vmul.f32 %v2840, %v2884
    %vm2886 = vcmp.eq.f32.partialorder %v2840, inf
    %v2887 = vsel %vm2886, %v2840, %v2885
    %vm2888 = vcmp.eq.f32.partialorder %v2840, 0.0
    %v2889 = vand.u32 %v2840, 2147483648
    %v2890 = vsel %vm2888, %v2889, %v2887
    %v2891 = vrsqrt.pop %v2841
    %v2892 = vmul.f32 %v2841, %v2891
    %vm2893 = vcmp.eq.f32.partialorder %v2841, inf
    %v2894 = vsel %vm2893, %v2841, %v2892
    %vm2895 = vcmp.eq.f32.partialorder %v2841, 0.0
    %v2896 = vand.u32 %v2841, 2147483648
    %v2897 = vsel %vm2895, %v2896, %v2894
    %v2898 = vadd.f32 %v2848, 1e-06
    %v2899 = vadd.f32 %v2855, 1e-06
    %v2900 = vadd.f32 %v2862, 1e-06
    %v2901 = vadd.f32 %v2869, 1e-06
    %v2902 = vadd.f32 %v2876, 1e-06
    %v2903 = vadd.f32 %v2883, 1e-06
    %v2904 = vadd.f32 %v2890, 1e-06
    %v2905 = vadd.f32 %v2897, 1e-06
    %v2906 = vld [vmem:[%s1] sm:$0xff]
    %v2907 = vld [vmem:[%s1 + $0x8] sm:$0xff]
    %v2908 = vld [vmem:[%s1 + $0x10] sm:$0xff]
    %v2909 = vld [vmem:[%s1 + $0x18] sm:$0xff]
    %v2910 = vld [vmem:[%s1 + $0x20] sm:$0xff]
    %v2911 = vld [vmem:[%s1 + $0x28] sm:$0xff]
    %v2912 = vld [vmem:[%s1 + $0x30] sm:$0xff]
    %v2913 = vld [vmem:[%s1 + $0x38] sm:$0xff]
    %v2914 = vld [vmem:[%s2] sm:$0xff]
    %v2915 = vld [vmem:[%s2 + $0x8] sm:$0xff]
    %v2916 = vld [vmem:[%s2 + $0x10] sm:$0xff]
    %v2917 = vld [vmem:[%s2 + $0x18] sm:$0xff]
    %v2918 = vld [vmem:[%s2 + $0x20] sm:$0xff]
    %v2919 = vld [vmem:[%s2 + $0x28] sm:$0xff]
    %v2920 = vld [vmem:[%s2 + $0x30] sm:$0xff]
    %v2921 = vld [vmem:[%s2 + $0x38] sm:$0xff]
    %s2922 = sld [smem:[#allocation2]]
    %v2923 = vstv %s2922
    %vm2924 = vcmask 523264
    %v2926 = vsel %vm2924, %v2906, 0
    %v2929 = vsel %vm2924, %v2907, 0
    %v2932 = vsel %vm2924, %v2908, 0
    %v2935 = vsel %vm2924, %v2909, 0
    %v2938 = vsel %vm2924, %v2910, 0
    %v2941 = vsel %vm2924, %v2911, 0
    %v2944 = vsel %vm2924, %v2912, 0
    %v2947 = vsel %vm2924, %v2913, 0
    %2949 = vmatprep.subr.mxu0 0.0
    %v2950 = vand.u32 %v2914, 4294901760
    %2951 = vmatpush1.msra.mxu0 %v2950
    %2952 = vmatprep.subr.mxu0 0.0
    %v2953 = vand.u32 %v2915, 4294901760
    %2954 = vmatpush1.msra.mxu0 %v2953
    %2955 = vmatprep.subr.mxu0 0.0
    %v2956 = vand.u32 %v2916, 4294901760
    %2957 = vmatpush1.msra.mxu0 %v2956
    %2958 = vmatprep.subr.mxu0 0.0
    %v2959 = vand.u32 %v2917, 4294901760
    %2960 = vmatpush1.msra.mxu0 %v2959
    %2961 = vmatprep.subr.mxu0 0.0
    %v2962 = vand.u32 %v2918, 4294901760
    %2963 = vmatpush1.msra.mxu0 %v2962
    %2964 = vmatprep.subr.mxu0 0.0
    %v2965 = vand.u32 %v2919, 4294901760
    %2966 = vmatpush1.msra.mxu0 %v2965
    %2967 = vmatprep.subr.mxu0 0.0
    %v2968 = vand.u32 %v2920, 4294901760
    %2969 = vmatpush1.msra.mxu0 %v2968
    %2970 = vmatprep.subr.mxu0 0.0
    %v2971 = vand.u32 %v2921, 4294901760
    %2972 = vmatpush1.msra.mxu0 %v2971
    %2973 = vmatprep.subr.mxu0 0.0
    %2974 = vmatpush1.msra.mxu0 0.0
    %2975 = vmatprep.subr.mxu0 0.0
    %2976 = vmatpush1.msra.mxu0 0.0
    %2977 = vmatprep.subr.mxu0 0.0
    %2978 = vmatpush1.msra.mxu0 0.0
    %2979 = vmatprep.subr.mxu0 0.0
    %2980 = vmatpush1.msra.mxu0 0.0
    %2981 = vmatprep.subr.mxu0 0.0
    %2982 = vmatpush1.msra.mxu0 0.0
    %2983 = vmatprep.subr.mxu0 0.0
    %2984 = vmatpush1.msra.mxu0 0.0
    %2985 = vmatprep.subr.mxu0 0.0
    %2986 = vmatpush1.msra.mxu0 0.0
    %2987 = vmatprep.subr.mxu0 0.0
    %2988 = vmatpush1.msra.mxu0 0.0
    %2989 = vmatprep.subr.mxu0 0.0
    %2990 = vmatpush1.msra.mxu0 0.0
    %2991 = vmatprep.subr.mxu0 0.0
    %2992 = vmatpush1.msra.mxu0 0.0
    %2993 = vmatprep.subr.mxu0 0.0
    %2994 = vmatpush1.msra.mxu0 0.0
    %2995 = vmatprep.subr.mxu0 0.0
    %2996 = vmatpush1.msra.mxu0 0.0
    %2997 = vmatprep.subr.mxu0 0.0
    %2998 = vmatpush1.msra.mxu0 0.0
    %2999 = vmatprep.subr.mxu0 0.0
    %3000 = vmatpush1.msra.mxu0 0.0
    %3001 = vmatprep.subr.mxu0 0.0
    %3002 = vmatpush1.msra.mxu0 0.0
    %3003 = vmatprep.subr.mxu0 0.0
    %3004 = vmatpush1.msra.mxu0 0.0
    %3005 = vmatprep.subr.mxu0 0.0
    %3006 = vmatpush1.msra.mxu0 0.0
    %3007 = vmatprep.subr.mxu0 0.0
    %3008 = vmatpush1.msra.mxu0 0.0
    %3009 = vmatprep.subr.mxu0 0.0
    %3010 = vmatpush1.msra.mxu0 0.0
    %3011 = vmatprep.subr.mxu0 0.0
    %3012 = vmatpush1.msra.mxu0 0.0
    %3013 = vmatprep.subr.mxu0 0.0
    %3014 = vmatpush1.msra.mxu0 0.0
    %3015 = vmatprep.subr.mxu0 0.0
    %3016 = vmatpush1.msra.mxu0 0.0
    %3017 = vmatprep.subr.mxu0 0.0
    %3018 = vmatpush1.msra.mxu0 0.0
    %3019 = vmatprep.subr.mxu0 0.0
    %3020 = vmatpush1.msra.mxu0 0.0
    %3021 = vmatprep.mubr.f32.mxu0 0.0
    %v3022 = vand.u32 %v2926, 4294901760
    %v3023 = vsub.f32 %v2926, %v3022
    %v3024 = vand.u32 %v3023, 4294901760
    %v3025 = vsub.f32 %v3023, %v3024
    %v3026 = vand.u32 %v3025, 4294901760
    %3027 = vmatmul.mubr.f32.gmra.mrb[0].mxu0 %v3026
    %v3028 = vpop.f32.mrb[0].mxu0
    %v3029 = vadd.f32 %v2923, %v3028
    %v3030 = vpop.f32.mrb[0].mxu0
    %3031 = vmatprep.mubr.f32.mxu0 0.0
    %v3032 = vand.u32 %v2929, 4294901760
    %v3033 = vsub.f32 %v2929, %v3032
    %v3034 = vand.u32 %v3033, 4294901760
    %v3035 = vsub.f32 %v3033, %v3034
    %v3036 = vand.u32 %v3035, 4294901760
    %3037 = vmatmul.mubr.f32.gmra.mrb[0].mxu0 %v3036
    %v3038 = vpop.f32.mrb[0].mxu0
    %v3039 = vadd.f32 %v2923, %v3038
    %v3040 = vpop.f32.mrb[0].mxu0
    %3041 = vmatprep.mubr.f32.mxu0 0.0
    %v3042 = vand.u32 %v2932, 4294901760
    %v3043 = vsub.f32 %v2932, %v3042
    %v3044 = vand.u32 %v3043, 4294901760
    %v3045 = vsub.f32 %v3043, %v3044
    %v3046 = vand.u32 %v3045, 4294901760
    %3047 = vmatmul.mubr.f32.gmra.mrb[0].mxu0 %v3046
    %v3048 = vpop.f32.mrb[0].mxu0
    %v3049 = vadd.f32 %v2923, %v3048
    %v3050 = vpop.f32.mrb[0].mxu0
    %3051 = vmatprep.mubr.f32.mxu0 0.0
    %v3052 = vand.u32 %v2935, 4294901760
    %v3053 = vsub.f32 %v2935, %v3052
    %v3054 = vand.u32 %v3053, 4294901760
    %v3055 = vsub.f32 %v3053, %v3054
    %v3056 = vand.u32 %v3055, 4294901760
    %3057 = vmatmul.mubr.f32.gmra.mrb[0].mxu0 %v3056
    %v3058 = vpop.f32.mrb[0].mxu0
    %v3059 = vadd.f32 %v2923, %v3058
    %v3060 = vpop.f32.mrb[0].mxu0
    %3061 = vmatprep.mubr.f32.mxu0 0.0
    %v3062 = vand.u32 %v2938, 4294901760
    %v3063 = vsub.f32 %v2938, %v3062
    %v3064 = vand.u32 %v3063, 4294901760
    %v3065 = vsub.f32 %v3063, %v3064
    %v3066 = vand.u32 %v3065, 4294901760
    %3067 = vmatmul.mubr.f32.gmra.mrb[0].mxu0 %v3066
    %v3068 = vpop.f32.mrb[0].mxu0
    %v3069 = vadd.f32 %v2923, %v3068
    %v3070 = vpop.f32.mrb[0].mxu0
    %3071 = vmatprep.mubr.f32.mxu0 0.0
    %v3072 = vand.u32 %v2941, 4294901760
    %v3073 = vsub.f32 %v2941, %v3072
    %v3074 = vand.u32 %v3073, 4294901760
    %v3075 = vsub.f32 %v3073, %v3074
    %v3076 = vand.u32 %v3075, 4294901760
    %3077 = vmatmul.mubr.f32.gmra.mrb[0].mxu0 %v3076
    %v3078 = vpop.f32.mrb[0].mxu0
    %v3079 = vadd.f32 %v2923, %v3078
    %v3080 = vpop.f32.mrb[0].mxu0
    %3081 = vmatprep.mubr.f32.mxu0 0.0
    %v3082 = vand.u32 %v2944, 4294901760
    %v3083 = vsub.f32 %v2944, %v3082
    %v3084 = vand.u32 %v3083, 4294901760
    %v3085 = vsub.f32 %v3083, %v3084
    %v3086 = vand.u32 %v3085, 4294901760
    %3087 = vmatmul.mubr.f32.gmra.mrb[0].mxu0 %v3086
    %v3088 = vpop.f32.mrb[0].mxu0
    %v3089 = vadd.f32 %v2923, %v3088
    %v3090 = vpop.f32.mrb[0].mxu0
    %3091 = vmatprep.mubr.f32.mxu0 0.0
    %v3092 = vand.u32 %v2947, 4294901760
    %v3093 = vsub.f32 %v2947, %v3092
    %v3094 = vand.u32 %v3093, 4294901760
    %v3095 = vsub.f32 %v3093, %v3094
    %v3096 = vand.u32 %v3095, 4294901760
    %3097 = vmatmul.mubr.f32.gmra.mrb[0].mxu0 %v3096
    %v3098 = vpop.f32.mrb[0].mxu0
    %v3099 = vadd.f32 %v2923, %v3098
    %v3100 = vpop.f32.mrb[0].mxu0
    %3101 = vdwg.mxu0
    %3102 = vmatprep.subr.mxu0 0.0
    %v3103 = vand.u32 %v2914, 4294901760
    %v3104 = vsub.f32 %v2914, %v3103
    %v3105 = vand.u32 %v3104, 4294901760
    %v3106 = vsub.f32 %v3104, %v3105
    %v3107 = vand.u32 %v3106, 4294901760
    %3108 = vmatpush1.msra.mxu0 %v3107
    %3109 = vmatprep.subr.mxu0 0.0
    %v3110 = vand.u32 %v2915, 4294901760
    %v3111 = vsub.f32 %v2915, %v3110
    %v3112 = vand.u32 %v3111, 4294901760
    %v3113 = vsub.f32 %v3111, %v3112
    %v3114 = vand.u32 %v3113, 4294901760
    %3115 = vmatpush1.msra.mxu0 %v3114
    %3116 = vmatprep.subr.mxu0 0.0
    %v3117 = vand.u32 %v2916, 4294901760
    %v3118 = vsub.f32 %v2916, %v3117
    %v3119 = vand.u32 %v3118, 4294901760
    %v3120 = vsub.f32 %v3118, %v3119
    %v3121 = vand.u32 %v3120, 4294901760
    %3122 = vmatpush1.msra.mxu0 %v3121
    %3123 = vmatprep.subr.mxu0 0.0
    %v3124 = vand.u32 %v2917, 4294901760
    %v3125 = vsub.f32 %v2917, %v3124
    %v3126 = vand.u32 %v3125, 4294901760
    %v3127 = vsub.f32 %v3125, %v3126
    %v3128 = vand.u32 %v3127, 4294901760
    %3129 = vmatpush1.msra.mxu0 %v3128
    %3130 = vmatprep.subr.mxu0 0.0
    %v3131 = vand.u32 %v2918, 4294901760
    %v3132 = vsub.f32 %v2918, %v3131
    %v3133 = vand.u32 %v3132, 4294901760
    %v3134 = vsub.f32 %v3132, %v3133
    %v3135 = vand.u32 %v3134, 4294901760
    %3136 = vmatpush1.msra.mxu0 %v3135
    %3137 = vmatprep.subr.mxu0 0.0
    %v3138 = vand.u32 %v2919, 4294901760
    %v3139 = vsub.f32 %v2919, %v3138
    %v3140 = vand.u32 %v3139, 4294901760
    %v3141 = vsub.f32 %v3139, %v3140
    %v3142 = vand.u32 %v3141, 4294901760
    %3143 = vmatpush1.msra.mxu0 %v3142
    %3144 = vmatprep.subr.mxu0 0.0
    %v3145 = vand.u32 %v2920, 4294901760
    %v3146 = vsub.f32 %v2920, %v3145
    %v3147 = vand.u32 %v3146, 4294901760
    %v3148 = vsub.f32 %v3146, %v3147
    %v3149 = vand.u32 %v3148, 4294901760
    %3150 = vmatpush1.msra.mxu0 %v3149
    %3151 = vmatprep.subr.mxu0 0.0
    %v3152 = vand.u32 %v2921, 4294901760
    %v3153 = vsub.f32 %v2921, %v3152
    %v3154 = vand.u32 %v3153, 4294901760
    %v3155 = vsub.f32 %v3153, %v3154
    %v3156 = vand.u32 %v3155, 4294901760
    %3157 = vmatpush1.msra.mxu0 %v3156
    %3158 = vmatprep.subr.mxu0 0.0
    %3159 = vmatpush1.msra.mxu0 0.0
    %3160 = vmatprep.subr.mxu0 0.0
    %3161 = vmatpush1.msra.mxu0 0.0
    %3162 = vmatprep.subr.mxu0 0.0
    %3163 = vmatpush1.msra.mxu0 0.0
    %3164 = vmatprep.subr.mxu0 0.0
    %3165 = vmatpush1.msra.mxu0 0.0
    %3166 = vmatprep.subr.mxu0 0.0
    %3167 = vmatpush1.msra.mxu0 0.0
    %3168 = vmatprep.subr.mxu0 0.0
    %3169 = vmatpush1.msra.mxu0 0.0
    %3170 = vmatprep.subr.mxu0 0.0
    %3171 = vmatpush1.msra.mxu0 0.0
    %3172 = vmatprep.subr.mxu0 0.0
    %3173 = vmatpush1.msra.mxu0 0.0
    %3174 = vmatprep.subr.mxu0 0.0
    %3175 = vmatpush1.msra.mxu0 0.0
    %3176 = vmatprep.subr.mxu0 0.0
    %3177 = vmatpush1.msra.mxu0 0.0
    %3178 = vmatprep.subr.mxu0 0.0
    %3179 = vmatpush1.msra.mxu0 0.0
    %3180 = vmatprep.subr.mxu0 0.0
    %3181 = vmatpush1.msra.mxu0 0.0
    %3182 = vmatprep.subr.mxu0 0.0
    %3183 = vmatpush1.msra.mxu0 0.0
    %3184 = vmatprep.subr.mxu0 0.0
    %3185 = vmatpush1.msra.mxu0 0.0
    %3186 = vmatprep.subr.mxu0 0.0
    %3187 = vmatpush1.msra.mxu0 0.0
    %3188 = vmatprep.subr.mxu0 0.0
    %3189 = vmatpush1.msra.mxu0 0.0
    %3190 = vmatprep.subr.mxu0 0.0
    %3191 = vmatpush1.msra.mxu0 0.0
    %3192 = vmatprep.subr.mxu0 0.0
    %3193 = vmatpush1.msra.mxu0 0.0
    %3194 = vmatprep.subr.mxu0 0.0
    %3195 = vmatpush1.msra.mxu0 0.0
    %3196 = vmatprep.subr.mxu0 0.0
    %3197 = vmatpush1.msra.mxu0 0.0
    %3198 = vmatprep.subr.mxu0 0.0
    %3199 = vmatpush1.msra.mxu0 0.0
    %3200 = vmatprep.subr.mxu0 0.0
    %3201 = vmatpush1.msra.mxu0 0.0
    %3202 = vmatprep.subr.mxu0 0.0
    %3203 = vmatpush1.msra.mxu0 0.0
    %3204 = vmatprep.subr.mxu0 0.0
    %3205 = vmatpush1.msra.mxu0 0.0
    %3206 = vmatprep.mubr.f32.mxu0 0.0
    %v3207 = vand.u32 %v2926, 4294901760
    %3208 = vmatmul.mubr.f32.gmra.mrb[0].mxu0 %v3207
    %v3209 = vpop.f32.mrb[0].mxu0
    %v3210 = vadd.f32 %v3029, %v3209
    %v3211 = vpop.f32.mrb[0].mxu0
    %3212 = vmatprep.mubr.f32.mxu0 0.0
    %v3213 = vand.u32 %v2929, 4294901760
    %3214 = vmatmul.mubr.f32.gmra.mrb[0].mxu0 %v3213
    %v3215 = vpop.f32.mrb[0].mxu0
    %v3216 = vadd.f32 %v3039, %v3215
    %v3217 = vpop.f32.mrb[0].mxu0
    %3218 = vmatprep.mubr.f32.mxu0 0.0
    %v3219 = vand.u32 %v2932, 4294901760
    %3220 = vmatmul.mubr.f32.gmra.mrb[0].mxu0 %v3219
    %v3221 = vpop.f32.mrb[0].mxu0
    %v3222 = vadd.f32 %v3049, %v3221
    %v3223 = vpop.f32.mrb[0].mxu0
    %3224 = vmatprep.mubr.f32.mxu0 0.0
    %v3225 = vand.u32 %v2935, 4294901760
    %3226 = vmatmul.mubr.f32.gmra.mrb[0].mxu0 %v3225
    %v3227 = vpop.f32.mrb[0].mxu0
    %v3228 = vadd.f32 %v3059, %v3227
    %v3229 = vpop.f32.mrb[0].mxu0
    %3230 = vmatprep.mubr.f32.mxu0 0.0
    %v3231 = vand.u32 %v2938, 4294901760
    %3232 = vmatmul.mubr.f32.gmra.mrb[0].mxu0 %v3231
    %v3233 = vpop.f32.mrb[0].mxu0
    %v3234 = vadd.f32 %v3069, %v3233
    %v3235 = vpop.f32.mrb[0].mxu0
    %3236 = vmatprep.mubr.f32.mxu0 0.0
    %v3237 = vand.u32 %v2941, 4294901760
    %3238 = vmatmul.mubr.f32.gmra.mrb[0].mxu0 %v3237
    %v3239 = vpop.f32.mrb[0].mxu0
    %v3240 = vadd.f32 %v3079, %v3239
    %v3241 = vpop.f32.mrb[0].mxu0
    %3242 = vmatprep.mubr.f32.mxu0 0.0
    %v3243 = vand.u32 %v2944, 4294901760
    %3244 = vmatmul.mubr.f32.gmra.mrb[0].mxu0 %v3243
    %v3245 = vpop.f32.mrb[0].mxu0
    %v3246 = vadd.f32 %v3089, %v3245
    %v3247 = vpop.f32.mrb[0].mxu0
    %3248 = vmatprep.mubr.f32.mxu0 0.0
    %v3249 = vand.u32 %v2947, 4294901760
    %3250 = vmatmul.mubr.f32.gmra.mrb[0].mxu0 %v3249
    %v3251 = vpop.f32.mrb[0].mxu0
    %v3252 = vadd.f32 %v3099, %v3251
    %v3253 = vpop.f32.mrb[0].mxu0
    %3254 = vdwg.mxu0
    %3255 = vmatprep.subr.mxu0 0.0
    %v3256 = vand.u32 %v2914, 4294901760
    %v3257 = vsub.f32 %v2914, %v3256
    %3258 = vmatpush1.msra.mxu0 %v3257
    %3259 = vmatprep.subr.mxu0 0.0
    %v3260 = vand.u32 %v2915, 4294901760
    %v3261 = vsub.f32 %v2915, %v3260
    %3262 = vmatpush1.msra.mxu0 %v3261
    %3263 = vmatprep.subr.mxu0 0.0
    %v3264 = vand.u32 %v2916, 4294901760
    %v3265 = vsub.f32 %v2916, %v3264
    %3266 = vmatpush1.msra.mxu0 %v3265
    %3267 = vmatprep.subr.mxu0 0.0
    %v3268 = vand.u32 %v2917, 4294901760
    %v3269 = vsub.f32 %v2917, %v3268
    %3270 = vmatpush1.msra.mxu0 %v3269
    %3271 = vmatprep.subr.mxu0 0.0
    %v3272 = vand.u32 %v2918, 4294901760
    %v3273 = vsub.f32 %v2918, %v3272
    %3274 = vmatpush1.msra.mxu0 %v3273
    %3275 = vmatprep.subr.mxu0 0.0
    %v3276 = vand.u32 %v2919, 4294901760
    %v3277 = vsub.f32 %v2919, %v3276
    %3278 = vmatpush1.msra.mxu0 %v3277
    %3279 = vmatprep.subr.mxu0 0.0
    %v3280 = vand.u32 %v2920, 4294901760
    %v3281 = vsub.f32 %v2920, %v3280
    %3282 = vmatpush1.msra.mxu0 %v3281
    %3283 = vmatprep.subr.mxu0 0.0
    %v3284 = vand.u32 %v2921, 4294901760
    %v3285 = vsub.f32 %v2921, %v3284
    %3286 = vmatpush1.msra.mxu0 %v3285
    %3287 = vmatprep.subr.mxu0 0.0
    %3288 = vmatpush1.msra.mxu0 0.0
    %3289 = vmatprep.subr.mxu0 0.0
    %3290 = vmatpush1.msra.mxu0 0.0
    %3291 = vmatprep.subr.mxu0 0.0
    %3292 = vmatpush1.msra.mxu0 0.0
    %3293 = vmatprep.subr.mxu0 0.0
    %3294 = vmatpush1.msra.mxu0 0.0
    %3295 = vmatprep.subr.mxu0 0.0
    %3296 = vmatpush1.msra.mxu0 0.0
    %3297 = vmatprep.subr.mxu0 0.0
    %3298 = vmatpush1.msra.mxu0 0.0
    %3299 = vmatprep.subr.mxu0 0.0
    %3300 = vmatpush1.msra.mxu0 0.0
    %3301 = vmatprep.subr.mxu0 0.0
    %3302 = vmatpush1.msra.mxu0 0.0
    %3303 = vmatprep.subr.mxu0 0.0
    %3304 = vmatpush1.msra.mxu0 0.0
    %3305 = vmatprep.subr.mxu0 0.0
    %3306 = vmatpush1.msra.mxu0 0.0
    %3307 = vmatprep.subr.mxu0 0.0
    %3308 = vmatpush1.msra.mxu0 0.0
    %3309 = vmatprep.subr.mxu0 0.0
    %3310 = vmatpush1.msra.mxu0 0.0
    %3311 = vmatprep.subr.mxu0 0.0
    %3312 = vmatpush1.msra.mxu0 0.0
    %3313 = vmatprep.subr.mxu0 0.0
    %3314 = vmatpush1.msra.mxu0 0.0
    %3315 = vmatprep.subr.mxu0 0.0
    %3316 = vmatpush1.msra.mxu0 0.0
    %3317 = vmatprep.subr.mxu0 0.0
    %3318 = vmatpush1.msra.mxu0 0.0
    %3319 = vmatprep.subr.mxu0 0.0
    %3320 = vmatpush1.msra.mxu0 0.0
    %3321 = vmatprep.subr.mxu0 0.0
    %3322 = vmatpush1.msra.mxu0 0.0
    %3323 = vmatprep.subr.mxu0 0.0
    %3324 = vmatpush1.msra.mxu0 0.0
    %3325 = vmatprep.subr.mxu0 0.0
    %3326 = vmatpush1.msra.mxu0 0.0
    %3327 = vmatprep.subr.mxu0 0.0
    %3328 = vmatpush1.msra.mxu0 0.0
    %3329 = vmatprep.subr.mxu0 0.0
    %3330 = vmatpush1.msra.mxu0 0.0
    %3331 = vmatprep.subr.mxu0 0.0
    %3332 = vmatpush1.msra.mxu0 0.0
    %3333 = vmatprep.subr.mxu0 0.0
    %3334 = vmatpush1.msra.mxu0 0.0
    %3335 = vmatprep.mubr.f32.mxu0 0.0
    %v3336 = vand.u32 %v2926, 4294901760
    %v3337 = vsub.f32 %v2926, %v3336
    %3338 = vmatmul.mubr.f32.gmra.mrb[0].mxu0 %v3337
    %v3339 = vpop.f32.mrb[0].mxu0
    %v3340 = vadd.f32 %v3210, %v3339
    %v3341 = vpop.f32.mrb[0].mxu0
    %3342 = vmatprep.mubr.f32.mxu0 0.0
    %v3343 = vand.u32 %v2929, 4294901760
    %v3344 = vsub.f32 %v2929, %v3343
    %3345 = vmatmul.mubr.f32.gmra.mrb[0].mxu0 %v3344
    %v3346 = vpop.f32.mrb[0].mxu0
    %v3347 = vadd.f32 %v3216, %v3346
    %v3348 = vpop.f32.mrb[0].mxu0
    %3349 = vmatprep.mubr.f32.mxu0 0.0
    %v3350 = vand.u32 %v2932, 4294901760
    %v3351 = vsub.f32 %v2932, %v3350
    %3352 = vmatmul.mubr.f32.gmra.mrb[0].mxu0 %v3351
    %v3353 = vpop.f32.mrb[0].mxu0
    %v3354 = vadd.f32 %v3222, %v3353
    %v3355 = vpop.f32.mrb[0].mxu0
    %3356 = vmatprep.mubr.f32.mxu0 0.0
    %v3357 = vand.u32 %v2935, 4294901760
    %v3358 = vsub.f32 %v2935, %v3357
    %3359 = vmatmul.mubr.f32.gmra.mrb[0].mxu0 %v3358
    %v3360 = vpop.f32.mrb[0].mxu0
    %v3361 = vadd.f32 %v3228, %v3360
    %v3362 = vpop.f32.mrb[0].mxu0
    %3363 = vmatprep.mubr.f32.mxu0 0.0
    %v3364 = vand.u32 %v2938, 4294901760
    %v3365 = vsub.f32 %v2938, %v3364
    %3366 = vmatmul.mubr.f32.gmra.mrb[0].mxu0 %v3365
    %v3367 = vpop.f32.mrb[0].mxu0
    %v3368 = vadd.f32 %v3234, %v3367
    %v3369 = vpop.f32.mrb[0].mxu0
    %3370 = vmatprep.mubr.f32.mxu0 0.0
    %v3371 = vand.u32 %v2941, 4294901760
    %v3372 = vsub.f32 %v2941, %v3371
    %3373 = vmatmul.mubr.f32.gmra.mrb[0].mxu0 %v3372
    %v3374 = vpop.f32.mrb[0].mxu0
    %v3375 = vadd.f32 %v3240, %v3374
    %v3376 = vpop.f32.mrb[0].mxu0
    %3377 = vmatprep.mubr.f32.mxu0 0.0
    %v3378 = vand.u32 %v2944, 4294901760
    %v3379 = vsub.f32 %v2944, %v3378
    %3380 = vmatmul.mubr.f32.gmra.mrb[0].mxu0 %v3379
    %v3381 = vpop.f32.mrb[0].mxu0
    %v3382 = vadd.f32 %v3246, %v3381
    %v3383 = vpop.f32.mrb[0].mxu0
    %3384 = vmatprep.mubr.f32.mxu0 0.0
    %v3385 = vand.u32 %v2947, 4294901760
    %v3386 = vsub.f32 %v2947, %v3385
    %3387 = vmatmul.mubr.f32.gmra.mrb[0].mxu0 %v3386
    %v3388 = vpop.f32.mrb[0].mxu0
    %v3389 = vadd.f32 %v3252, %v3388
    %v3390 = vpop.f32.mrb[0].mxu0
    %3391 = vdwg.mxu0
    %3392 = vmatprep.subr.mxu0 0.0
    %v3393 = vand.u32 %v2914, 4294901760
    %3394 = vmatpush1.msra.mxu0 %v3393
    %3395 = vmatprep.subr.mxu0 0.0
    %v3396 = vand.u32 %v2915, 4294901760
    %3397 = vmatpush1.msra.mxu0 %v3396
    %3398 = vmatprep.subr.mxu0 0.0
    %v3399 = vand.u32 %v2916, 4294901760
    %3400 = vmatpush1.msra.mxu0 %v3399
    %3401 = vmatprep.subr.mxu0 0.0
    %v3402 = vand.u32 %v2917, 4294901760
    %3403 = vmatpush1.msra.mxu0 %v3402
    %3404 = vmatprep.subr.mxu0 0.0
    %v3405 = vand.u32 %v2918, 4294901760
    %3406 = vmatpush1.msra.mxu0 %v3405
    %3407 = vmatprep.subr.mxu0 0.0
    %v3408 = vand.u32 %v2919, 4294901760
    %3409 = vmatpush1.msra.mxu0 %v3408
    %3410 = vmatprep.subr.mxu0 0.0
    %v3411 = vand.u32 %v2920, 4294901760
    %3412 = vmatpush1.msra.mxu0 %v3411
    %3413 = vmatprep.subr.mxu0 0.0
    %v3414 = vand.u32 %v2921, 4294901760
    %3415 = vmatpush1.msra.mxu0 %v3414
    %3416 = vmatprep.subr.mxu0 0.0
    %3417 = vmatpush1.msra.mxu0 0.0
    %3418 = vmatprep.subr.mxu0 0.0
    %3419 = vmatpush1.msra.mxu0 0.0
    %3420 = vmatprep.subr.mxu0 0.0
    %3421 = vmatpush1.msra.mxu0 0.0
    %3422 = vmatprep.subr.mxu0 0.0
    %3423 = vmatpush1.msra.mxu0 0.0
    %3424 = vmatprep.subr.mxu0 0.0
    %3425 = vmatpush1.msra.mxu0 0.0
    %3426 = vmatprep.subr.mxu0 0.0
    %3427 = vmatpush1.msra.mxu0 0.0
    %3428 = vmatprep.subr.mxu0 0.0
    %3429 = vmatpush1.msra.mxu0 0.0
    %3430 = vmatprep.subr.mxu0 0.0
    %3431 = vmatpush1.msra.mxu0 0.0
    %3432 = vmatprep.subr.mxu0 0.0
    %3433 = vmatpush1.msra.mxu0 0.0
    %3434 = vmatprep.subr.mxu0 0.0
    %3435 = vmatpush1.msra.mxu0 0.0
    %3436 = vmatprep.subr.mxu0 0.0
    %3437 = vmatpush1.msra.mxu0 0.0
    %3438 = vmatprep.subr.mxu0 0.0
    %3439 = vmatpush1.msra.mxu0 0.0
    %3440 = vmatprep.subr.mxu0 0.0
    %3441 = vmatpush1.msra.mxu0 0.0
    %3442 = vmatprep.subr.mxu0 0.0
    %3443 = vmatpush1.msra.mxu0 0.0
    %3444 = vmatprep.subr.mxu0 0.0
    %3445 = vmatpush1.msra.mxu0 0.0
    %3446 = vmatprep.subr.mxu0 0.0
    %3447 = vmatpush1.msra.mxu0 0.0
    %3448 = vmatprep.subr.mxu0 0.0
    %3449 = vmatpush1.msra.mxu0 0.0
    %3450 = vmatprep.subr.mxu0 0.0
    %3451 = vmatpush1.msra.mxu0 0.0
    %3452 = vmatprep.subr.mxu0 0.0
    %3453 = vmatpush1.msra.mxu0 0.0
    %3454 = vmatprep.subr.mxu0 0.0
    %3455 = vmatpush1.msra.mxu0 0.0
    %3456 = vmatprep.subr.mxu0 0.0
    %3457 = vmatpush1.msra.mxu0 0.0
    %3458 = vmatprep.subr.mxu0 0.0
    %3459 = vmatpush1.msra.mxu0 0.0
    %3460 = vmatprep.subr.mxu0 0.0
    %3461 = vmatpush1.msra.mxu0 0.0
    %3462 = vmatprep.subr.mxu0 0.0
    %3463 = vmatpush1.msra.mxu0 0.0
    %3464 = vmatprep.mubr.f32.mxu0 0.0
    %v3465 = vand.u32 %v2926, 4294901760
    %v3466 = vsub.f32 %v2926, %v3465
    %v3467 = vand.u32 %v3466, 4294901760
    %3468 = vmatmul.mubr.f32.gmra.mrb[0].mxu0 %v3467
    %v3469 = vpop.f32.mrb[0].mxu0
    %v3470 = vadd.f32 %v3340, %v3469
    %v3471 = vpop.f32.mrb[0].mxu0
    %3472 = vmatprep.mubr.f32.mxu0 0.0
    %v3473 = vand.u32 %v2929, 4294901760
    %v3474 = vsub.f32 %v2929, %v3473
    %v3475 = vand.u32 %v3474, 4294901760
    %3476 = vmatmul.mubr.f32.gmra.mrb[0].mxu0 %v3475
    %v3477 = vpop.f32.mrb[0].mxu0
    %v3478 = vadd.f32 %v3347, %v3477
    %v3479 = vpop.f32.mrb[0].mxu0
    %3480 = vmatprep.mubr.f32.mxu0 0.0
    %v3481 = vand.u32 %v2932, 4294901760
    %v3482 = vsub.f32 %v2932, %v3481
    %v3483 = vand.u32 %v3482, 4294901760
    %3484 = vmatmul.mubr.f32.gmra.mrb[0].mxu0 %v3483
    %v3485 = vpop.f32.mrb[0].mxu0
    %v3486 = vadd.f32 %v3354, %v3485
    %v3487 = vpop.f32.mrb[0].mxu0
    %3488 = vmatprep.mubr.f32.mxu0 0.0
    %v3489 = vand.u32 %v2935, 4294901760
    %v3490 = vsub.f32 %v2935, %v3489
    %v3491 = vand.u32 %v3490, 4294901760
    %3492 = vmatmul.mubr.f32.gmra.mrb[0].mxu0 %v3491
    %v3493 = vpop.f32.mrb[0].mxu0
    %v3494 = vadd.f32 %v3361, %v3493
    %v3495 = vpop.f32.mrb[0].mxu0
    %3496 = vmatprep.mubr.f32.mxu0 0.0
    %v3497 = vand.u32 %v2938, 4294901760
    %v3498 = vsub.f32 %v2938, %v3497
    %v3499 = vand.u32 %v3498, 4294901760
    %3500 = vmatmul.mubr.f32.gmra.mrb[0].mxu0 %v3499
    %v3501 = vpop.f32.mrb[0].mxu0
    %v3502 = vadd.f32 %v3368, %v3501
    %v3503 = vpop.f32.mrb[0].mxu0
    %3504 = vmatprep.mubr.f32.mxu0 0.0
    %v3505 = vand.u32 %v2941, 4294901760
    %v3506 = vsub.f32 %v2941, %v3505
    %v3507 = vand.u32 %v3506, 4294901760
    %3508 = vmatmul.mubr.f32.gmra.mrb[0].mxu0 %v3507
    %v3509 = vpop.f32.mrb[0].mxu0
    %v3510 = vadd.f32 %v3375, %v3509
    %v3511 = vpop.f32.mrb[0].mxu0
    %3512 = vmatprep.mubr.f32.mxu0 0.0
    %v3513 = vand.u32 %v2944, 4294901760
    %v3514 = vsub.f32 %v2944, %v3513
    %v3515 = vand.u32 %v3514, 4294901760
    %3516 = vmatmul.mubr.f32.gmra.mrb[0].mxu0 %v3515
    %v3517 = vpop.f32.mrb[0].mxu0
    %v3518 = vadd.f32 %v3382, %v3517
    %v3519 = vpop.f32.mrb[0].mxu0
    %3520 = vmatprep.mubr.f32.mxu0 0.0
    %v3521 = vand.u32 %v2947, 4294901760
    %v3522 = vsub.f32 %v2947, %v3521
    %v3523 = vand.u32 %v3522, 4294901760
    %3524 = vmatmul.mubr.f32.gmra.mrb[0].mxu0 %v3523
    %v3525 = vpop.f32.mrb[0].mxu0
    %v3526 = vadd.f32 %v3389, %v3525
    %v3527 = vpop.f32.mrb[0].mxu0
    %3528 = vdwg.mxu0
    %3529 = vmatprep.subr.mxu0 0.0
    %v3530 = vand.u32 %v2914, 4294901760
    %v3531 = vsub.f32 %v2914, %v3530
    %v3532 = vand.u32 %v3531, 4294901760
    %3533 = vmatpush1.msra.mxu0 %v3532
    %3534 = vmatprep.subr.mxu0 0.0
    %v3535 = vand.u32 %v2915, 4294901760
    %v3536 = vsub.f32 %v2915, %v3535
    %v3537 = vand.u32 %v3536, 4294901760
    %3538 = vmatpush1.msra.mxu0 %v3537
    %3539 = vmatprep.subr.mxu0 0.0
    %v3540 = vand.u32 %v2916, 4294901760
    %v3541 = vsub.f32 %v2916, %v3540
    %v3542 = vand.u32 %v3541, 4294901760
    %3543 = vmatpush1.msra.mxu0 %v3542
    %3544 = vmatprep.subr.mxu0 0.0
    %v3545 = vand.u32 %v2917, 4294901760
    %v3546 = vsub.f32 %v2917, %v3545
    %v3547 = vand.u32 %v3546, 4294901760
    %3548 = vmatpush1.msra.mxu0 %v3547
    %3549 = vmatprep.subr.mxu0 0.0
    %v3550 = vand.u32 %v2918, 4294901760
    %v3551 = vsub.f32 %v2918, %v3550
    %v3552 = vand.u32 %v3551, 4294901760
    %3553 = vmatpush1.msra.mxu0 %v3552
    %3554 = vmatprep.subr.mxu0 0.0
    %v3555 = vand.u32 %v2919, 4294901760
    %v3556 = vsub.f32 %v2919, %v3555
    %v3557 = vand.u32 %v3556, 4294901760
    %3558 = vmatpush1.msra.mxu0 %v3557
    %3559 = vmatprep.subr.mxu0 0.0
    %v3560 = vand.u32 %v2920, 4294901760
    %v3561 = vsub.f32 %v2920, %v3560
    %v3562 = vand.u32 %v3561, 4294901760
    %3563 = vmatpush1.msra.mxu0 %v3562
    %3564 = vmatprep.subr.mxu0 0.0
    %v3565 = vand.u32 %v2921, 4294901760
    %v3566 = vsub.f32 %v2921, %v3565
    %v3567 = vand.u32 %v3566, 4294901760
    %3568 = vmatpush1.msra.mxu0 %v3567
    %3569 = vmatprep.subr.mxu0 0.0
    %3570 = vmatpush1.msra.mxu0 0.0
    %3571 = vmatprep.subr.mxu0 0.0
    %3572 = vmatpush1.msra.mxu0 0.0
    %3573 = vmatprep.subr.mxu0 0.0
    %3574 = vmatpush1.msra.mxu0 0.0
    %3575 = vmatprep.subr.mxu0 0.0
    %3576 = vmatpush1.msra.mxu0 0.0
    %3577 = vmatprep.subr.mxu0 0.0
    %3578 = vmatpush1.msra.mxu0 0.0
    %3579 = vmatprep.subr.mxu0 0.0
    %3580 = vmatpush1.msra.mxu0 0.0
    %3581 = vmatprep.subr.mxu0 0.0
    %3582 = vmatpush1.msra.mxu0 0.0
    %3583 = vmatprep.subr.mxu0 0.0
    %3584 = vmatpush1.msra.mxu0 0.0
    %3585 = vmatprep.subr.mxu0 0.0
    %3586 = vmatpush1.msra.mxu0 0.0
    %3587 = vmatprep.subr.mxu0 0.0
    %3588 = vmatpush1.msra.mxu0 0.0
    %3589 = vmatprep.subr.mxu0 0.0
    %3590 = vmatpush1.msra.mxu0 0.0
    %3591 = vmatprep.subr.mxu0 0.0
    %3592 = vmatpush1.msra.mxu0 0.0
    %3593 = vmatprep.subr.mxu0 0.0
    %3594 = vmatpush1.msra.mxu0 0.0
    %3595 = vmatprep.subr.mxu0 0.0
    %3596 = vmatpush1.msra.mxu0 0.0
    %3597 = vmatprep.subr.mxu0 0.0
    %3598 = vmatpush1.msra.mxu0 0.0
    %3599 = vmatprep.subr.mxu0 0.0
    %3600 = vmatpush1.msra.mxu0 0.0
    %3601 = vmatprep.subr.mxu0 0.0
    %3602 = vmatpush1.msra.mxu0 0.0
    %3603 = vmatprep.subr.mxu0 0.0
    %3604 = vmatpush1.msra.mxu0 0.0
    %3605 = vmatprep.subr.mxu0 0.0
    %3606 = vmatpush1.msra.mxu0 0.0
    %3607 = vmatprep.subr.mxu0 0.0
    %3608 = vmatpush1.msra.mxu0 0.0
    %3609 = vmatprep.subr.mxu0 0.0
    %3610 = vmatpush1.msra.mxu0 0.0
    %3611 = vmatprep.subr.mxu0 0.0
    %3612 = vmatpush1.msra.mxu0 0.0
    %3613 = vmatprep.subr.mxu0 0.0
    %3614 = vmatpush1.msra.mxu0 0.0
    %3615 = vmatprep.subr.mxu0 0.0
    %3616 = vmatpush1.msra.mxu0 0.0
    %3617 = vmatprep.mubr.f32.mxu0 0.0
    %v3618 = vand.u32 %v2926, 4294901760
    %3619 = vmatmul.mubr.f32.gmra.mrb[0].mxu0 %v3618
    %v3620 = vpop.f32.mrb[0].mxu0
    %v3621 = vadd.f32 %v3470, %v3620
    %v3622 = vpop.f32.mrb[0].mxu0
    %3623 = vmatprep.mubr.f32.mxu0 0.0
    %v3624 = vand.u32 %v2929, 4294901760
    %3625 = vmatmul.mubr.f32.gmra.mrb[0].mxu0 %v3624
    %v3626 = vpop.f32.mrb[0].mxu0
    %v3627 = vadd.f32 %v3478, %v3626
    %v3628 = vpop.f32.mrb[0].mxu0
    %3629 = vmatprep.mubr.f32.mxu0 0.0
    %v3630 = vand.u32 %v2932, 4294901760
    %3631 = vmatmul.mubr.f32.gmra.mrb[0].mxu0 %v3630
    %v3632 = vpop.f32.mrb[0].mxu0
    %v3633 = vadd.f32 %v3486, %v3632
    %v3634 = vpop.f32.mrb[0].mxu0
    %3635 = vmatprep.mubr.f32.mxu0 0.0
    %v3636 = vand.u32 %v2935, 4294901760
    %3637 = vmatmul.mubr.f32.gmra.mrb[0].mxu0 %v3636
    %v3638 = vpop.f32.mrb[0].mxu0
    %v3639 = vadd.f32 %v3494, %v3638
    %v3640 = vpop.f32.mrb[0].mxu0
    %3641 = vmatprep.mubr.f32.mxu0 0.0
    %v3642 = vand.u32 %v2938, 4294901760
    %3643 = vmatmul.mubr.f32.gmra.mrb[0].mxu0 %v3642
    %v3644 = vpop.f32.mrb[0].mxu0
    %v3645 = vadd.f32 %v3502, %v3644
    %v3646 = vpop.f32.mrb[0].mxu0
    %3647 = vmatprep.mubr.f32.mxu0 0.0
    %v3648 = vand.u32 %v2941, 4294901760
    %3649 = vmatmul.mubr.f32.gmra.mrb[0].mxu0 %v3648
    %v3650 = vpop.f32.mrb[0].mxu0
    %v3651 = vadd.f32 %v3510, %v3650
    %v3652 = vpop.f32.mrb[0].mxu0
    %3653 = vmatprep.mubr.f32.mxu0 0.0
    %v3654 = vand.u32 %v2944, 4294901760
    %3655 = vmatmul.mubr.f32.gmra.mrb[0].mxu0 %v3654
    %v3656 = vpop.f32.mrb[0].mxu0
    %v3657 = vadd.f32 %v3518, %v3656
    %v3658 = vpop.f32.mrb[0].mxu0
    %3659 = vmatprep.mubr.f32.mxu0 0.0
    %v3660 = vand.u32 %v2947, 4294901760
    %3661 = vmatmul.mubr.f32.gmra.mrb[0].mxu0 %v3660
    %v3662 = vpop.f32.mrb[0].mxu0
    %v3663 = vadd.f32 %v3526, %v3662
    %v3664 = vpop.f32.mrb[0].mxu0
    %3665 = vdwg.mxu0
    %3666 = vmatprep.subr.mxu0 0.0
    %v3667 = vand.u32 %v2914, 4294901760
    %3668 = vmatpush1.msra.mxu0 %v3667
    %3669 = vmatprep.subr.mxu0 0.0
    %v3670 = vand.u32 %v2915, 4294901760
    %3671 = vmatpush1.msra.mxu0 %v3670
    %3672 = vmatprep.subr.mxu0 0.0
    %v3673 = vand.u32 %v2916, 4294901760
    %3674 = vmatpush1.msra.mxu0 %v3673
    %3675 = vmatprep.subr.mxu0 0.0
    %v3676 = vand.u32 %v2917, 4294901760
    %3677 = vmatpush1.msra.mxu0 %v3676
    %3678 = vmatprep.subr.mxu0 0.0
    %v3679 = vand.u32 %v2918, 4294901760
    %3680 = vmatpush1.msra.mxu0 %v3679
    %3681 = vmatprep.subr.mxu0 0.0
    %v3682 = vand.u32 %v2919, 4294901760
    %3683 = vmatpush1.msra.mxu0 %v3682
    %3684 = vmatprep.subr.mxu0 0.0
    %v3685 = vand.u32 %v2920, 4294901760
    %3686 = vmatpush1.msra.mxu0 %v3685
    %3687 = vmatprep.subr.mxu0 0.0
    %v3688 = vand.u32 %v2921, 4294901760
    %3689 = vmatpush1.msra.mxu0 %v3688
    %3690 = vmatprep.subr.mxu0 0.0
    %3691 = vmatpush1.msra.mxu0 0.0
    %3692 = vmatprep.subr.mxu0 0.0
    %3693 = vmatpush1.msra.mxu0 0.0
    %3694 = vmatprep.subr.mxu0 0.0
    %3695 = vmatpush1.msra.mxu0 0.0
    %3696 = vmatprep.subr.mxu0 0.0
    %3697 = vmatpush1.msra.mxu0 0.0
    %3698 = vmatprep.subr.mxu0 0.0
    %3699 = vmatpush1.msra.mxu0 0.0
    %3700 = vmatprep.subr.mxu0 0.0
    %3701 = vmatpush1.msra.mxu0 0.0
    %3702 = vmatprep.subr.mxu0 0.0
    %3703 = vmatpush1.msra.mxu0 0.0
    %3704 = vmatprep.subr.mxu0 0.0
    %3705 = vmatpush1.msra.mxu0 0.0
    %3706 = vmatprep.subr.mxu0 0.0
    %3707 = vmatpush1.msra.mxu0 0.0
    %3708 = vmatprep.subr.mxu0 0.0
    %3709 = vmatpush1.msra.mxu0 0.0
    %3710 = vmatprep.subr.mxu0 0.0
    %3711 = vmatpush1.msra.mxu0 0.0
    %3712 = vmatprep.subr.mxu0 0.0
    %3713 = vmatpush1.msra.mxu0 0.0
    %3714 = vmatprep.subr.mxu0 0.0
    %3715 = vmatpush1.msra.mxu0 0.0
    %3716 = vmatprep.subr.mxu0 0.0
    %3717 = vmatpush1.msra.mxu0 0.0
    %3718 = vmatprep.subr.mxu0 0.0
    %3719 = vmatpush1.msra.mxu0 0.0
    %3720 = vmatprep.subr.mxu0 0.0
    %3721 = vmatpush1.msra.mxu0 0.0
    %3722 = vmatprep.subr.mxu0 0.0
    %3723 = vmatpush1.msra.mxu0 0.0
    %3724 = vmatprep.subr.mxu0 0.0
    %3725 = vmatpush1.msra.mxu0 0.0
    %3726 = vmatprep.subr.mxu0 0.0
    %3727 = vmatpush1.msra.mxu0 0.0
    %3728 = vmatprep.subr.mxu0 0.0
    %3729 = vmatpush1.msra.mxu0 0.0
    %3730 = vmatprep.subr.mxu0 0.0
    %3731 = vmatpush1.msra.mxu0 0.0
    %3732 = vmatprep.subr.mxu0 0.0
    %3733 = vmatpush1.msra.mxu0 0.0
    %3734 = vmatprep.subr.mxu0 0.0
    %3735 = vmatpush1.msra.mxu0 0.0
    %3736 = vmatprep.subr.mxu0 0.0
    %3737 = vmatpush1.msra.mxu0 0.0
    %3738 = vmatprep.mubr.f32.mxu0 0.0
    %v3739 = vand.u32 %v2926, 4294901760
    %3740 = vmatmul.mubr.f32.gmra.mrb[0].mxu0 %v3739
    %v3741 = vpop.f32.mrb[0].mxu0
    %v3742 = vadd.f32 %v3621, %v3741
    %v3743 = vpop.f32.mrb[0].mxu0
    %3744 = vmatprep.mubr.f32.mxu0 0.0
    %v3745 = vand.u32 %v2929, 4294901760
    %3746 = vmatmul.mubr.f32.gmra.mrb[0].mxu0 %v3745
    %v3747 = vpop.f32.mrb[0].mxu0
    %v3748 = vadd.f32 %v3627, %v3747
    %v3749 = vpop.f32.mrb[0].mxu0
    %3750 = vmatprep.mubr.f32.mxu0 0.0
    %v3751 = vand.u32 %v2932, 4294901760
    %3752 = vmatmul.mubr.f32.gmra.mrb[0].mxu0 %v3751
    %v3753 = vpop.f32.mrb[0].mxu0
    %v3754 = vadd.f32 %v3633, %v3753
    %v3755 = vpop.f32.mrb[0].mxu0
    %3756 = vmatprep.mubr.f32.mxu0 0.0
    %v3757 = vand.u32 %v2935, 4294901760
    %3758 = vmatmul.mubr.f32.gmra.mrb[0].mxu0 %v3757
    %v3759 = vpop.f32.mrb[0].mxu0
    %v3760 = vadd.f32 %v3639, %v3759
    %v3761 = vpop.f32.mrb[0].mxu0
    %3762 = vmatprep.mubr.f32.mxu0 0.0
    %v3763 = vand.u32 %v2938, 4294901760
    %3764 = vmatmul.mubr.f32.gmra.mrb[0].mxu0 %v3763
    %v3765 = vpop.f32.mrb[0].mxu0
    %v3766 = vadd.f32 %v3645, %v3765
    %v3767 = vpop.f32.mrb[0].mxu0
    %3768 = vmatprep.mubr.f32.mxu0 0.0
    %v3769 = vand.u32 %v2941, 4294901760
    %3770 = vmatmul.mubr.f32.gmra.mrb[0].mxu0 %v3769
    %v3771 = vpop.f32.mrb[0].mxu0
    %v3772 = vadd.f32 %v3651, %v3771
    %v3773 = vpop.f32.mrb[0].mxu0
    %3774 = vmatprep.mubr.f32.mxu0 0.0
    %v3775 = vand.u32 %v2944, 4294901760
    %3776 = vmatmul.mubr.f32.gmra.mrb[0].mxu0 %v3775
    %v3777 = vpop.f32.mrb[0].mxu0
    %v3778 = vadd.f32 %v3657, %v3777
    %v3779 = vpop.f32.mrb[0].mxu0
    %3780 = vmatprep.mubr.f32.mxu0 0.0
    %v3781 = vand.u32 %v2947, 4294901760
    %3782 = vmatmul.mubr.f32.gmra.mrb[0].mxu0 %v3781
    %v3783 = vpop.f32.mrb[0].mxu0
    %v3784 = vadd.f32 %v3663, %v3783
    %v3785 = vpop.f32.mrb[0].mxu0
    %3786 = vdwg.mxu0
    %v3787 = vld [vmem:[%s3] sm:$0xff]
    %v3788 = vld [vmem:[%s3 + $0x8] sm:$0xff]
    %v3789 = vld [vmem:[%s3 + $0x10] sm:$0xff]
    %v3790 = vld [vmem:[%s3 + $0x18] sm:$0xff]
    %v3791 = vld [vmem:[%s3 + $0x20] sm:$0xff]
    %v3792 = vld [vmem:[%s3 + $0x28] sm:$0xff]
    %v3793 = vld [vmem:[%s3 + $0x30] sm:$0xff]
    %v3794 = vld [vmem:[%s3 + $0x38] sm:$0xff]
    %s3795 = sld [smem:[#allocation2 + $0x1]]
    %v3796 = vstv %s3795
    %3797 = vmatprep.subr.mxu0 0.0
    %v3798 = vand.u32 %v3787, 4294901760
    %3799 = vmatpush1.msra.mxu0 %v3798
    %3800 = vmatprep.subr.mxu0 0.0
    %v3801 = vand.u32 %v3788, 4294901760
    %3802 = vmatpush1.msra.mxu0 %v3801
    %3803 = vmatprep.subr.mxu0 0.0
    %v3804 = vand.u32 %v3789, 4294901760
    %3805 = vmatpush1.msra.mxu0 %v3804
    %3806 = vmatprep.subr.mxu0 0.0
    %v3807 = vand.u32 %v3790, 4294901760
    %3808 = vmatpush1.msra.mxu0 %v3807
    %3809 = vmatprep.subr.mxu0 0.0
    %v3810 = vand.u32 %v3791, 4294901760
    %3811 = vmatpush1.msra.mxu0 %v3810
    %3812 = vmatprep.subr.mxu0 0.0
    %v3813 = vand.u32 %v3792, 4294901760
    %3814 = vmatpush1.msra.mxu0 %v3813
    %3815 = vmatprep.subr.mxu0 0.0
    %v3816 = vand.u32 %v3793, 4294901760
    %3817 = vmatpush1.msra.mxu0 %v3816
    %3818 = vmatprep.subr.mxu0 0.0
    %v3819 = vand.u32 %v3794, 4294901760
    %3820 = vmatpush1.msra.mxu0 %v3819
    %3821 = vmatprep.subr.mxu0 0.0
    %3822 = vmatpush1.msra.mxu0 0.0
    %3823 = vmatprep.subr.mxu0 0.0
    %3824 = vmatpush1.msra.mxu0 0.0
    %3825 = vmatprep.subr.mxu0 0.0
    %3826 = vmatpush1.msra.mxu0 0.0
    %3827 = vmatprep.subr.mxu0 0.0
    %3828 = vmatpush1.msra.mxu0 0.0
    %3829 = vmatprep.subr.mxu0 0.0
    %3830 = vmatpush1.msra.mxu0 0.0
    %3831 = vmatprep.subr.mxu0 0.0
    %3832 = vmatpush1.msra.mxu0 0.0
    %3833 = vmatprep.subr.mxu0 0.0
    %3834 = vmatpush1.msra.mxu0 0.0
    %3835 = vmatprep.subr.mxu0 0.0
    %3836 = vmatpush1.msra.mxu0 0.0
    %3837 = vmatprep.subr.mxu0 0.0
    %3838 = vmatpush1.msra.mxu0 0.0
    %3839 = vmatprep.subr.mxu0 0.0
    %3840 = vmatpush1.msra.mxu0 0.0
    %3841 = vmatprep.subr.mxu0 0.0
    %3842 = vmatpush1.msra.mxu0 0.0
    %3843 = vmatprep.subr.mxu0 0.0
    %3844 = vmatpush1.msra.mxu0 0.0
    %3845 = vmatprep.subr.mxu0 0.0
    %3846 = vmatpush1.msra.mxu0 0.0
    %3847 = vmatprep.subr.mxu0 0.0
    %3848 = vmatpush1.msra.mxu0 0.0
    %3849 = vmatprep.subr.mxu0 0.0
    %3850 = vmatpush1.msra.mxu0 0.0
    %3851 = vmatprep.subr.mxu0 0.0
    %3852 = vmatpush1.msra.mxu0 0.0
    %3853 = vmatprep.subr.mxu0 0.0
    %3854 = vmatpush1.msra.mxu0 0.0
    %3855 = vmatprep.subr.mxu0 0.0
    %3856 = vmatpush1.msra.mxu0 0.0
    %3857 = vmatprep.subr.mxu0 0.0
    %3858 = vmatpush1.msra.mxu0 0.0
    %3859 = vmatprep.subr.mxu0 0.0
    %3860 = vmatpush1.msra.mxu0 0.0
    %3861 = vmatprep.subr.mxu0 0.0
    %3862 = vmatpush1.msra.mxu0 0.0
    %3863 = vmatprep.subr.mxu0 0.0
    %3864 = vmatpush1.msra.mxu0 0.0
    %3865 = vmatprep.subr.mxu0 0.0
    %3866 = vmatpush1.msra.mxu0 0.0
    %3867 = vmatprep.subr.mxu0 0.0
    %3868 = vmatpush1.msra.mxu0 0.0
    %3869 = vmatprep.mubr.f32.mxu0 0.0
    %v3870 = vand.u32 %v2926, 4294901760
    %v3871 = vsub.f32 %v2926, %v3870
    %v3872 = vand.u32 %v3871, 4294901760
    %v3873 = vsub.f32 %v3871, %v3872
    %v3874 = vand.u32 %v3873, 4294901760
    %3875 = vmatmul.mubr.f32.gmra.mrb[0].mxu0 %v3874
    %v3876 = vpop.f32.mrb[0].mxu0
    %v3877 = vadd.f32 %v3796, %v3876
    %v3878 = vpop.f32.mrb[0].mxu0
    %3879 = vmatprep.mubr.f32.mxu0 0.0
    %v3880 = vand.u32 %v2929, 4294901760
    %v3881 = vsub.f32 %v2929, %v3880
    %v3882 = vand.u32 %v3881, 4294901760
    %v3883 = vsub.f32 %v3881, %v3882
    %v3884 = vand.u32 %v3883, 4294901760
    %3885 = vmatmul.mubr.f32.gmra.mrb[0].mxu0 %v3884
    %v3886 = vpop.f32.mrb[0].mxu0
    %v3887 = vadd.f32 %v3796, %v3886
    %v3888 = vpop.f32.mrb[0].mxu0
    %3889 = vmatprep.mubr.f32.mxu0 0.0
    %v3890 = vand.u32 %v2932, 4294901760
    %v3891 = vsub.f32 %v2932, %v3890
    %v3892 = vand.u32 %v3891, 4294901760
    %v3893 = vsub.f32 %v3891, %v3892
    %v3894 = vand.u32 %v3893, 4294901760
    %3895 = vmatmul.mubr.f32.gmra.mrb[0].mxu0 %v3894
    %v3896 = vpop.f32.mrb[0].mxu0
    %v3897 = vadd.f32 %v3796, %v3896
    %v3898 = vpop.f32.mrb[0].mxu0
    %3899 = vmatprep.mubr.f32.mxu0 0.0
    %v3900 = vand.u32 %v2935, 4294901760
    %v3901 = vsub.f32 %v2935, %v3900
    %v3902 = vand.u32 %v3901, 4294901760
    %v3903 = vsub.f32 %v3901, %v3902
    %v3904 = vand.u32 %v3903, 4294901760
    %3905 = vmatmul.mubr.f32.gmra.mrb[0].mxu0 %v3904
    %v3906 = vpop.f32.mrb[0].mxu0
    %v3907 = vadd.f32 %v3796, %v3906
    %v3908 = vpop.f32.mrb[0].mxu0
    %3909 = vmatprep.mubr.f32.mxu0 0.0
    %v3910 = vand.u32 %v2938, 4294901760
    %v3911 = vsub.f32 %v2938, %v3910
    %v3912 = vand.u32 %v3911, 4294901760
    %v3913 = vsub.f32 %v3911, %v3912
    %v3914 = vand.u32 %v3913, 4294901760
    %3915 = vmatmul.mubr.f32.gmra.mrb[0].mxu0 %v3914
    %v3916 = vpop.f32.mrb[0].mxu0
    %v3917 = vadd.f32 %v3796, %v3916
    %v3918 = vpop.f32.mrb[0].mxu0
    %3919 = vmatprep.mubr.f32.mxu0 0.0
    %v3920 = vand.u32 %v2941, 4294901760
    %v3921 = vsub.f32 %v2941, %v3920
    %v3922 = vand.u32 %v3921, 4294901760
    %v3923 = vsub.f32 %v3921, %v3922
    %v3924 = vand.u32 %v3923, 4294901760
    %3925 = vmatmul.mubr.f32.gmra.mrb[0].mxu0 %v3924
    %v3926 = vpop.f32.mrb[0].mxu0
    %v3927 = vadd.f32 %v3796, %v3926
    %v3928 = vpop.f32.mrb[0].mxu0
    %3929 = vmatprep.mubr.f32.mxu0 0.0
    %v3930 = vand.u32 %v2944, 4294901760
    %v3931 = vsub.f32 %v2944, %v3930
    %v3932 = vand.u32 %v3931, 4294901760
    %v3933 = vsub.f32 %v3931, %v3932
    %v3934 = vand.u32 %v3933, 4294901760
    %3935 = vmatmul.mubr.f32.gmra.mrb[0].mxu0 %v3934
    %v3936 = vpop.f32.mrb[0].mxu0
    %v3937 = vadd.f32 %v3796, %v3936
    %v3938 = vpop.f32.mrb[0].mxu0
    %3939 = vmatprep.mubr.f32.mxu0 0.0
    %v3940 = vand.u32 %v2947, 4294901760
    %v3941 = vsub.f32 %v2947, %v3940
    %v3942 = vand.u32 %v3941, 4294901760
    %v3943 = vsub.f32 %v3941, %v3942
    %v3944 = vand.u32 %v3943, 4294901760
    %3945 = vmatmul.mubr.f32.gmra.mrb[0].mxu0 %v3944
    %v3946 = vpop.f32.mrb[0].mxu0
    %v3947 = vadd.f32 %v3796, %v3946
    %v3948 = vpop.f32.mrb[0].mxu0
    %3949 = vdwg.mxu0
    %3950 = vmatprep.subr.mxu0 0.0
    %v3951 = vand.u32 %v3787, 4294901760
    %v3952 = vsub.f32 %v3787, %v3951
    %v3953 = vand.u32 %v3952, 4294901760
    %v3954 = vsub.f32 %v3952, %v3953
    %v3955 = vand.u32 %v3954, 4294901760
    %3956 = vmatpush1.msra.mxu0 %v3955
    %3957 = vmatprep.subr.mxu0 0.0
    %v3958 = vand.u32 %v3788, 4294901760
    %v3959 = vsub.f32 %v3788, %v3958
    %v3960 = vand.u32 %v3959, 4294901760
    %v3961 = vsub.f32 %v3959, %v3960
    %v3962 = vand.u32 %v3961, 4294901760
    %3963 = vmatpush1.msra.mxu0 %v3962
    %3964 = vmatprep.subr.mxu0 0.0
    %v3965 = vand.u32 %v3789, 4294901760
    %v3966 = vsub.f32 %v3789, %v3965
    %v3967 = vand.u32 %v3966, 4294901760
    %v3968 = vsub.f32 %v3966, %v3967
    %v3969 = vand.u32 %v3968, 4294901760
    %3970 = vmatpush1.msra.mxu0 %v3969
    %3971 = vmatprep.subr.mxu0 0.0
    %v3972 = vand.u32 %v3790, 4294901760
    %v3973 = vsub.f32 %v3790, %v3972
    %v3974 = vand.u32 %v3973, 4294901760
    %v3975 = vsub.f32 %v3973, %v3974
    %v3976 = vand.u32 %v3975, 4294901760
    %3977 = vmatpush1.msra.mxu0 %v3976
    %3978 = vmatprep.subr.mxu0 0.0
    %v3979 = vand.u32 %v3791, 4294901760
    %v3980 = vsub.f32 %v3791, %v3979
    %v3981 = vand.u32 %v3980, 4294901760
    %v3982 = vsub.f32 %v3980, %v3981
    %v3983 = vand.u32 %v3982, 4294901760
    %3984 = vmatpush1.msra.mxu0 %v3983
    %3985 = vmatprep.subr.mxu0 0.0
    %v3986 = vand.u32 %v3792, 4294901760
    %v3987 = vsub.f32 %v3792, %v3986
    %v3988 = vand.u32 %v3987, 4294901760
    %v3989 = vsub.f32 %v3987, %v3988
    %v3990 = vand.u32 %v3989, 4294901760
    %3991 = vmatpush1.msra.mxu0 %v3990
    %3992 = vmatprep.subr.mxu0 0.0
    %v3993 = vand.u32 %v3793, 4294901760
    %v3994 = vsub.f32 %v3793, %v3993
    %v3995 = vand.u32 %v3994, 4294901760
    %v3996 = vsub.f32 %v3994, %v3995
    %v3997 = vand.u32 %v3996, 4294901760
    %3998 = vmatpush1.msra.mxu0 %v3997
    %3999 = vmatprep.subr.mxu0 0.0
    %v4000 = vand.u32 %v3794, 4294901760
    %v4001 = vsub.f32 %v3794, %v4000
    %v4002 = vand.u32 %v4001, 4294901760
    %v4003 = vsub.f32 %v4001, %v4002
    %v4004 = vand.u32 %v4003, 4294901760
    %4005 = vmatpush1.msra.mxu0 %v4004
    %4006 = vmatprep.subr.mxu0 0.0
    %4007 = vmatpush1.msra.mxu0 0.0
    %4008 = vmatprep.subr.mxu0 0.0
    %4009 = vmatpush1.msra.mxu0 0.0
    %4010 = vmatprep.subr.mxu0 0.0
    %4011 = vmatpush1.msra.mxu0 0.0
    %4012 = vmatprep.subr.mxu0 0.0
    %4013 = vmatpush1.msra.mxu0 0.0
    %4014 = vmatprep.subr.mxu0 0.0
    %4015 = vmatpush1.msra.mxu0 0.0
    %4016 = vmatprep.subr.mxu0 0.0
    %4017 = vmatpush1.msra.mxu0 0.0
    %4018 = vmatprep.subr.mxu0 0.0
    %4019 = vmatpush1.msra.mxu0 0.0
    %4020 = vmatprep.subr.mxu0 0.0
    %4021 = vmatpush1.msra.mxu0 0.0
    %4022 = vmatprep.subr.mxu0 0.0
    %4023 = vmatpush1.msra.mxu0 0.0
    %4024 = vmatprep.subr.mxu0 0.0
    %4025 = vmatpush1.msra.mxu0 0.0
    %4026 = vmatprep.subr.mxu0 0.0
    %4027 = vmatpush1.msra.mxu0 0.0
    %4028 = vmatprep.subr.mxu0 0.0
    %4029 = vmatpush1.msra.mxu0 0.0
    %4030 = vmatprep.subr.mxu0 0.0
    %4031 = vmatpush1.msra.mxu0 0.0
    %4032 = vmatprep.subr.mxu0 0.0
    %4033 = vmatpush1.msra.mxu0 0.0
    %4034 = vmatprep.subr.mxu0 0.0
    %4035 = vmatpush1.msra.mxu0 0.0
    %4036 = vmatprep.subr.mxu0 0.0
    %4037 = vmatpush1.msra.mxu0 0.0
    %4038 = vmatprep.subr.mxu0 0.0
    %4039 = vmatpush1.msra.mxu0 0.0
    %4040 = vmatprep.subr.mxu0 0.0
    %4041 = vmatpush1.msra.mxu0 0.0
    %4042 = vmatprep.subr.mxu0 0.0
    %4043 = vmatpush1.msra.mxu0 0.0
    %4044 = vmatprep.subr.mxu0 0.0
    %4045 = vmatpush1.msra.mxu0 0.0
    %4046 = vmatprep.subr.mxu0 0.0
    %4047 = vmatpush1.msra.mxu0 0.0
    %4048 = vmatprep.subr.mxu0 0.0
    %4049 = vmatpush1.msra.mxu0 0.0
    %4050 = vmatprep.subr.mxu0 0.0
    %4051 = vmatpush1.msra.mxu0 0.0
    %4052 = vmatprep.subr.mxu0 0.0
    %4053 = vmatpush1.msra.mxu0 0.0
    %4054 = vmatprep.mubr.f32.mxu0 0.0
    %v4055 = vand.u32 %v2926, 4294901760
    %4056 = vmatmul.mubr.f32.gmra.mrb[0].mxu0 %v4055
    %v4057 = vpop.f32.mrb[0].mxu0
    %v4058 = vadd.f32 %v3877, %v4057
    %v4059 = vpop.f32.mrb[0].mxu0
    %4060 = vmatprep.mubr.f32.mxu0 0.0
    %v4061 = vand.u32 %v2929, 4294901760
    %4062 = vmatmul.mubr.f32.gmra.mrb[0].mxu0 %v4061
    %v4063 = vpop.f32.mrb[0].mxu0
    %v4064 = vadd.f32 %v3887, %v4063
    %v4065 = vpop.f32.mrb[0].mxu0
    %4066 = vmatprep.mubr.f32.mxu0 0.0
    %v4067 = vand.u32 %v2932, 4294901760
    %4068 = vmatmul.mubr.f32.gmra.mrb[0].mxu0 %v4067
    %v4069 = vpop.f32.mrb[0].mxu0
    %v4070 = vadd.f32 %v3897, %v4069
    %v4071 = vpop.f32.mrb[0].mxu0
    %4072 = vmatprep.mubr.f32.mxu0 0.0
    %v4073 = vand.u32 %v2935, 4294901760
    %4074 = vmatmul.mubr.f32.gmra.mrb[0].mxu0 %v4073
    %v4075 = vpop.f32.mrb[0].mxu0
    %v4076 = vadd.f32 %v3907, %v4075
    %v4077 = vpop.f32.mrb[0].mxu0
    %4078 = vmatprep.mubr.f32.mxu0 0.0
    %v4079 = vand.u32 %v2938, 4294901760
    %4080 = vmatmul.mubr.f32.gmra.mrb[0].mxu0 %v4079
    %v4081 = vpop.f32.mrb[0].mxu0
    %v4082 = vadd.f32 %v3917, %v4081
    %v4083 = vpop.f32.mrb[0].mxu0
    %4084 = vmatprep.mubr.f32.mxu0 0.0
    %v4085 = vand.u32 %v2941, 4294901760
    %4086 = vmatmul.mubr.f32.gmra.mrb[0].mxu0 %v4085
    %v4087 = vpop.f32.mrb[0].mxu0
    %v4088 = vadd.f32 %v3927, %v4087
    %v4089 = vpop.f32.mrb[0].mxu0
    %4090 = vmatprep.mubr.f32.mxu0 0.0
    %v4091 = vand.u32 %v2944, 4294901760
    %4092 = vmatmul.mubr.f32.gmra.mrb[0].mxu0 %v4091
    %v4093 = vpop.f32.mrb[0].mxu0
    %v4094 = vadd.f32 %v3937, %v4093
    %v4095 = vpop.f32.mrb[0].mxu0
    %4096 = vmatprep.mubr.f32.mxu0 0.0
    %v4097 = vand.u32 %v2947, 4294901760
    %4098 = vmatmul.mubr.f32.gmra.mrb[0].mxu0 %v4097
    %v4099 = vpop.f32.mrb[0].mxu0
    %v4100 = vadd.f32 %v3947, %v4099
    %v4101 = vpop.f32.mrb[0].mxu0
    %4102 = vdwg.mxu0
    %4103 = vmatprep.subr.mxu0 0.0
    %v4104 = vand.u32 %v3787, 4294901760
    %v4105 = vsub.f32 %v3787, %v4104
    %4106 = vmatpush1.msra.mxu0 %v4105
    %4107 = vmatprep.subr.mxu0 0.0
    %v4108 = vand.u32 %v3788, 4294901760
    %v4109 = vsub.f32 %v3788, %v4108
    %4110 = vmatpush1.msra.mxu0 %v4109
    %4111 = vmatprep.subr.mxu0 0.0
    %v4112 = vand.u32 %v3789, 4294901760
    %v4113 = vsub.f32 %v3789, %v4112
    %4114 = vmatpush1.msra.mxu0 %v4113
    %4115 = vmatprep.subr.mxu0 0.0
    %v4116 = vand.u32 %v3790, 4294901760
    %v4117 = vsub.f32 %v3790, %v4116
    %4118 = vmatpush1.msra.mxu0 %v4117
    %4119 = vmatprep.subr.mxu0 0.0
    %v4120 = vand.u32 %v3791, 4294901760
    %v4121 = vsub.f32 %v3791, %v4120
    %4122 = vmatpush1.msra.mxu0 %v4121
    %4123 = vmatprep.subr.mxu0 0.0
    %v4124 = vand.u32 %v3792, 4294901760
    %v4125 = vsub.f32 %v3792, %v4124
    %4126 = vmatpush1.msra.mxu0 %v4125
    %4127 = vmatprep.subr.mxu0 0.0
    %v4128 = vand.u32 %v3793, 4294901760
    %v4129 = vsub.f32 %v3793, %v4128
    %4130 = vmatpush1.msra.mxu0 %v4129
    %4131 = vmatprep.subr.mxu0 0.0
    %v4132 = vand.u32 %v3794, 4294901760
    %v4133 = vsub.f32 %v3794, %v4132
    %4134 = vmatpush1.msra.mxu0 %v4133
    %4135 = vmatprep.subr.mxu0 0.0
    %4136 = vmatpush1.msra.mxu0 0.0
    %4137 = vmatprep.subr.mxu0 0.0
    %4138 = vmatpush1.msra.mxu0 0.0
    %4139 = vmatprep.subr.mxu0 0.0
    %4140 = vmatpush1.msra.mxu0 0.0
    %4141 = vmatprep.subr.mxu0 0.0
    %4142 = vmatpush1.msra.mxu0 0.0
    %4143 = vmatprep.subr.mxu0 0.0
    %4144 = vmatpush1.msra.mxu0 0.0
    %4145 = vmatprep.subr.mxu0 0.0
    %4146 = vmatpush1.msra.mxu0 0.0
    %4147 = vmatprep.subr.mxu0 0.0
    %4148 = vmatpush1.msra.mxu0 0.0
    %4149 = vmatprep.subr.mxu0 0.0
    %4150 = vmatpush1.msra.mxu0 0.0
    %4151 = vmatprep.subr.mxu0 0.0
    %4152 = vmatpush1.msra.mxu0 0.0
    %4153 = vmatprep.subr.mxu0 0.0
    %4154 = vmatpush1.msra.mxu0 0.0
    %4155 = vmatprep.subr.mxu0 0.0
    %4156 = vmatpush1.msra.mxu0 0.0
    %4157 = vmatprep.subr.mxu0 0.0
    %4158 = vmatpush1.msra.mxu0 0.0
    %4159 = vmatprep.subr.mxu0 0.0
    %4160 = vmatpush1.msra.mxu0 0.0
    %4161 = vmatprep.subr.mxu0 0.0
    %4162 = vmatpush1.msra.mxu0 0.0
    %4163 = vmatprep.subr.mxu0 0.0
    %4164 = vmatpush1.msra.mxu0 0.0
    %4165 = vmatprep.subr.mxu0 0.0
    %4166 = vmatpush1.msra.mxu0 0.0
    %4167 = vmatprep.subr.mxu0 0.0
    %4168 = vmatpush1.msra.mxu0 0.0
    %4169 = vmatprep.subr.mxu0 0.0
    %4170 = vmatpush1.msra.mxu0 0.0
    %4171 = vmatprep.subr.mxu0 0.0
    %4172 = vmatpush1.msra.mxu0 0.0
    %4173 = vmatprep.subr.mxu0 0.0
    %4174 = vmatpush1.msra.mxu0 0.0
    %4175 = vmatprep.subr.mxu0 0.0
    %4176 = vmatpush1.msra.mxu0 0.0
    %4177 = vmatprep.subr.mxu0 0.0
    %4178 = vmatpush1.msra.mxu0 0.0
    %4179 = vmatprep.subr.mxu0 0.0
    %4180 = vmatpush1.msra.mxu0 0.0
    %4181 = vmatprep.subr.mxu0 0.0
    %4182 = vmatpush1.msra.mxu0 0.0
    %4183 = vmatprep.mubr.f32.mxu0 0.0
    %v4184 = vand.u32 %v2926, 4294901760
    %v4185 = vsub.f32 %v2926, %v4184
    %4186 = vmatmul.mubr.f32.gmra.mrb[0].mxu0 %v4185
    %v4187 = vpop.f32.mrb[0].mxu0
    %v4188 = vadd.f32 %v4058, %v4187
    %v4189 = vpop.f32.mrb[0].mxu0
    %4190 = vmatprep.mubr.f32.mxu0 0.0
    %v4191 = vand.u32 %v2929, 4294901760
    %v4192 = vsub.f32 %v2929, %v4191
    %4193 = vmatmul.mubr.f32.gmra.mrb[0].mxu0 %v4192
    %v4194 = vpop.f32.mrb[0].mxu0
    %v4195 = vadd.f32 %v4064, %v4194
    %v4196 = vpop.f32.mrb[0].mxu0
    %4197 = vmatprep.mubr.f32.mxu0 0.0
    %v4198 = vand.u32 %v2932, 4294901760
    %v4199 = vsub.f32 %v2932, %v4198
    %4200 = vmatmul.mubr.f32.gmra.mrb[0].mxu0 %v4199
    %v4201 = vpop.f32.mrb[0].mxu0
    %v4202 = vadd.f32 %v4070, %v4201
    %v4203 = vpop.f32.mrb[0].mxu0
    %4204 = vmatprep.mubr.f32.mxu0 0.0
    %v4205 = vand.u32 %v2935, 4294901760
    %v4206 = vsub.f32 %v2935, %v4205
    %4207 = vmatmul.mubr.f32.gmra.mrb[0].mxu0 %v4206
    %v4208 = vpop.f32.mrb[0].mxu0
    %v4209 = vadd.f32 %v4076, %v4208
    %v4210 = vpop.f32.mrb[0].mxu0
    %4211 = vmatprep.mubr.f32.mxu0 0.0
    %v4212 = vand.u32 %v2938, 4294901760
    %v4213 = vsub.f32 %v2938, %v4212
    %4214 = vmatmul.mubr.f32.gmra.mrb[0].mxu0 %v4213
    %v4215 = vpop.f32.mrb[0].mxu0
    %v4216 = vadd.f32 %v4082, %v4215
    %v4217 = vpop.f32.mrb[0].mxu0
    %4218 = vmatprep.mubr.f32.mxu0 0.0
    %v4219 = vand.u32 %v2941, 4294901760
    %v4220 = vsub.f32 %v2941, %v4219
    %4221 = vmatmul.mubr.f32.gmra.mrb[0].mxu0 %v4220
    %v4222 = vpop.f32.mrb[0].mxu0
    %v4223 = vadd.f32 %v4088, %v4222
    %v4224 = vpop.f32.mrb[0].mxu0
    %4225 = vmatprep.mubr.f32.mxu0 0.0
    %v4226 = vand.u32 %v2944, 4294901760
    %v4227 = vsub.f32 %v2944, %v4226
    %4228 = vmatmul.mubr.f32.gmra.mrb[0].mxu0 %v4227
    %v4229 = vpop.f32.mrb[0].mxu0
    %v4230 = vadd.f32 %v4094, %v4229
    %v4231 = vpop.f32.mrb[0].mxu0
    %4232 = vmatprep.mubr.f32.mxu0 0.0
    %v4233 = vand.u32 %v2947, 4294901760
    %v4234 = vsub.f32 %v2947, %v4233
    %4235 = vmatmul.mubr.f32.gmra.mrb[0].mxu0 %v4234
    %v4236 = vpop.f32.mrb[0].mxu0
    %v4237 = vadd.f32 %v4100, %v4236
    %v4238 = vpop.f32.mrb[0].mxu0
    %4239 = vdwg.mxu0
    %4240 = vmatprep.subr.mxu0 0.0
    %v4241 = vand.u32 %v3787, 4294901760
    %4242 = vmatpush1.msra.mxu0 %v4241
    %4243 = vmatprep.subr.mxu0 0.0
    %v4244 = vand.u32 %v3788, 4294901760
    %4245 = vmatpush1.msra.mxu0 %v4244
    %4246 = vmatprep.subr.mxu0 0.0
    %v4247 = vand.u32 %v3789, 4294901760
    %4248 = vmatpush1.msra.mxu0 %v4247
    %4249 = vmatprep.subr.mxu0 0.0
    %v4250 = vand.u32 %v3790, 4294901760
    %4251 = vmatpush1.msra.mxu0 %v4250
    %4252 = vmatprep.subr.mxu0 0.0
    %v4253 = vand.u32 %v3791, 4294901760
    %4254 = vmatpush1.msra.mxu0 %v4253
    %4255 = vmatprep.subr.mxu0 0.0
    %v4256 = vand.u32 %v3792, 4294901760
    %4257 = vmatpush1.msra.mxu0 %v4256
    %4258 = vmatprep.subr.mxu0 0.0
    %v4259 = vand.u32 %v3793, 4294901760
    %4260 = vmatpush1.msra.mxu0 %v4259
    %4261 = vmatprep.subr.mxu0 0.0
    %v4262 = vand.u32 %v3794, 4294901760
    %4263 = vmatpush1.msra.mxu0 %v4262
    %4264 = vmatprep.subr.mxu0 0.0
    %4265 = vmatpush1.msra.mxu0 0.0
    %4266 = vmatprep.subr.mxu0 0.0
    %4267 = vmatpush1.msra.mxu0 0.0
    %4268 = vmatprep.subr.mxu0 0.0
    %4269 = vmatpush1.msra.mxu0 0.0
    %4270 = vmatprep.subr.mxu0 0.0
    %4271 = vmatpush1.msra.mxu0 0.0
    %4272 = vmatprep.subr.mxu0 0.0
    %4273 = vmatpush1.msra.mxu0 0.0
    %4274 = vmatprep.subr.mxu0 0.0
    %4275 = vmatpush1.msra.mxu0 0.0
    %4276 = vmatprep.subr.mxu0 0.0
    %4277 = vmatpush1.msra.mxu0 0.0
    %4278 = vmatprep.subr.mxu0 0.0
    %4279 = vmatpush1.msra.mxu0 0.0
    %4280 = vmatprep.subr.mxu0 0.0
    %4281 = vmatpush1.msra.mxu0 0.0
    %4282 = vmatprep.subr.mxu0 0.0
    %4283 = vmatpush1.msra.mxu0 0.0
    %4284 = vmatprep.subr.mxu0 0.0
    %4285 = vmatpush1.msra.mxu0 0.0
    %4286 = vmatprep.subr.mxu0 0.0
    %4287 = vmatpush1.msra.mxu0 0.0
    %4288 = vmatprep.subr.mxu0 0.0
    %4289 = vmatpush1.msra.mxu0 0.0
    %4290 = vmatprep.subr.mxu0 0.0
    %4291 = vmatpush1.msra.mxu0 0.0
    %4292 = vmatprep.subr.mxu0 0.0
    %4293 = vmatpush1.msra.mxu0 0.0
    %4294 = vmatprep.subr.mxu0 0.0
    %4295 = vmatpush1.msra.mxu0 0.0
    %4296 = vmatprep.subr.mxu0 0.0
    %4297 = vmatpush1.msra.mxu0 0.0
    %4298 = vmatprep.subr.mxu0 0.0
    %4299 = vmatpush1.msra.mxu0 0.0
    %4300 = vmatprep.subr.mxu0 0.0
    %4301 = vmatpush1.msra.mxu0 0.0
    %4302 = vmatprep.subr.mxu0 0.0
    %4303 = vmatpush1.msra.mxu0 0.0
    %4304 = vmatprep.subr.mxu0 0.0
    %4305 = vmatpush1.msra.mxu0 0.0
    %4306 = vmatprep.subr.mxu0 0.0
    %4307 = vmatpush1.msra.mxu0 0.0
    %4308 = vmatprep.subr.mxu0 0.0
    %4309 = vmatpush1.msra.mxu0 0.0
    %4310 = vmatprep.subr.mxu0 0.0
    %4311 = vmatpush1.msra.mxu0 0.0
    %4312 = vmatprep.mubr.f32.mxu0 0.0
    %v4313 = vand.u32 %v2926, 4294901760
    %v4314 = vsub.f32 %v2926, %v4313
    %v4315 = vand.u32 %v4314, 4294901760
    %4316 = vmatmul.mubr.f32.gmra.mrb[0].mxu0 %v4315
    %v4317 = vpop.f32.mrb[0].mxu0
    %v4318 = vadd.f32 %v4188, %v4317
    %v4319 = vpop.f32.mrb[0].mxu0
    %4320 = vmatprep.mubr.f32.mxu0 0.0
    %v4321 = vand.u32 %v2929, 4294901760
    %v4322 = vsub.f32 %v2929, %v4321
    %v4323 = vand.u32 %v4322, 4294901760
    %4324 = vmatmul.mubr.f32.gmra.mrb[0].mxu0 %v4323
    %v4325 = vpop.f32.mrb[0].mxu0
    %v4326 = vadd.f32 %v4195, %v4325
    %v4327 = vpop.f32.mrb[0].mxu0
    %4328 = vmatprep.mubr.f32.mxu0 0.0
    %v4329 = vand.u32 %v2932, 4294901760
    %v4330 = vsub.f32 %v2932, %v4329
    %v4331 = vand.u32 %v4330, 4294901760
    %4332 = vmatmul.mubr.f32.gmra.mrb[0].mxu0 %v4331
    %v4333 = vpop.f32.mrb[0].mxu0
    %v4334 = vadd.f32 %v4202, %v4333
    %v4335 = vpop.f32.mrb[0].mxu0
    %4336 = vmatprep.mubr.f32.mxu0 0.0
    %v4337 = vand.u32 %v2935, 4294901760
    %v4338 = vsub.f32 %v2935, %v4337
    %v4339 = vand.u32 %v4338, 4294901760
    %4340 = vmatmul.mubr.f32.gmra.mrb[0].mxu0 %v4339
    %v4341 = vpop.f32.mrb[0].mxu0
    %v4342 = vadd.f32 %v4209, %v4341
    %v4343 = vpop.f32.mrb[0].mxu0
    %4344 = vmatprep.mubr.f32.mxu0 0.0
    %v4345 = vand.u32 %v2938, 4294901760
    %v4346 = vsub.f32 %v2938, %v4345
    %v4347 = vand.u32 %v4346, 4294901760
    %4348 = vmatmul.mubr.f32.gmra.mrb[0].mxu0 %v4347
    %v4349 = vpop.f32.mrb[0].mxu0
    %v4350 = vadd.f32 %v4216, %v4349
    %v4351 = vpop.f32.mrb[0].mxu0
    %4352 = vmatprep.mubr.f32.mxu0 0.0
    %v4353 = vand.u32 %v2941, 4294901760
    %v4354 = vsub.f32 %v2941, %v4353
    %v4355 = vand.u32 %v4354, 4294901760
    %4356 = vmatmul.mubr.f32.gmra.mrb[0].mxu0 %v4355
    %v4357 = vpop.f32.mrb[0].mxu0
    %v4358 = vadd.f32 %v4223, %v4357
    %v4359 = vpop.f32.mrb[0].mxu0
    %4360 = vmatprep.mubr.f32.mxu0 0.0
    %v4361 = vand.u32 %v2944, 4294901760
    %v4362 = vsub.f32 %v2944, %v4361
    %v4363 = vand.u32 %v4362, 4294901760
    %4364 = vmatmul.mubr.f32.gmra.mrb[0].mxu0 %v4363
    %v4365 = vpop.f32.mrb[0].mxu0
    %v4366 = vadd.f32 %v4230, %v4365
    %v4367 = vpop.f32.mrb[0].mxu0
    %4368 = vmatprep.mubr.f32.mxu0 0.0
    %v4369 = vand.u32 %v2947, 4294901760
    %v4370 = vsub.f32 %v2947, %v4369
    %v4371 = vand.u32 %v4370, 4294901760
    %4372 = vmatmul.mubr.f32.gmra.mrb[0].mxu0 %v4371
    %v4373 = vpop.f32.mrb[0].mxu0
    %v4374 = vadd.f32 %v4237, %v4373
    %v4375 = vpop.f32.mrb[0].mxu0
    %4376 = vdwg.mxu0
    %4377 = vmatprep.subr.mxu0 0.0
    %v4378 = vand.u32 %v3787, 4294901760
    %v4379 = vsub.f32 %v3787, %v4378
    %v4380 = vand.u32 %v4379, 4294901760
    %4381 = vmatpush1.msra.mxu0 %v4380
    %4382 = vmatprep.subr.mxu0 0.0
    %v4383 = vand.u32 %v3788, 4294901760
    %v4384 = vsub.f32 %v3788, %v4383
    %v4385 = vand.u32 %v4384, 4294901760
    %4386 = vmatpush1.msra.mxu0 %v4385
    %4387 = vmatprep.subr.mxu0 0.0
    %v4388 = vand.u32 %v3789, 4294901760
    %v4389 = vsub.f32 %v3789, %v4388
    %v4390 = vand.u32 %v4389, 4294901760
    %4391 = vmatpush1.msra.mxu0 %v4390
    %4392 = vmatprep.subr.mxu0 0.0
    %v4393 = vand.u32 %v3790, 4294901760
    %v4394 = vsub.f32 %v3790, %v4393
    %v4395 = vand.u32 %v4394, 4294901760
    %4396 = vmatpush1.msra.mxu0 %v4395
    %4397 = vmatprep.subr.mxu0 0.0
    %v4398 = vand.u32 %v3791, 4294901760
    %v4399 = vsub.f32 %v3791, %v4398
    %v4400 = vand.u32 %v4399, 4294901760
    %4401 = vmatpush1.msra.mxu0 %v4400
    %4402 = vmatprep.subr.mxu0 0.0
    %v4403 = vand.u32 %v3792, 4294901760
    %v4404 = vsub.f32 %v3792, %v4403
    %v4405 = vand.u32 %v4404, 4294901760
    %4406 = vmatpush1.msra.mxu0 %v4405
    %4407 = vmatprep.subr.mxu0 0.0
    %v4408 = vand.u32 %v3793, 4294901760
    %v4409 = vsub.f32 %v3793, %v4408
    %v4410 = vand.u32 %v4409, 4294901760
    %4411 = vmatpush1.msra.mxu0 %v4410
    %4412 = vmatprep.subr.mxu0 0.0
    %v4413 = vand.u32 %v3794, 4294901760
    %v4414 = vsub.f32 %v3794, %v4413
    %v4415 = vand.u32 %v4414, 4294901760
    %4416 = vmatpush1.msra.mxu0 %v4415
    %4417 = vmatprep.subr.mxu0 0.0
    %4418 = vmatpush1.msra.mxu0 0.0
    %4419 = vmatprep.subr.mxu0 0.0
    %4420 = vmatpush1.msra.mxu0 0.0
    %4421 = vmatprep.subr.mxu0 0.0
    %4422 = vmatpush1.msra.mxu0 0.0
    %4423 = vmatprep.subr.mxu0 0.0
    %4424 = vmatpush1.msra.mxu0 0.0
    %4425 = vmatprep.subr.mxu0 0.0
    %4426 = vmatpush1.msra.mxu0 0.0
    %4427 = vmatprep.subr.mxu0 0.0
    %4428 = vmatpush1.msra.mxu0 0.0
    %4429 = vmatprep.subr.mxu0 0.0
    %4430 = vmatpush1.msra.mxu0 0.0
    %4431 = vmatprep.subr.mxu0 0.0
    %4432 = vmatpush1.msra.mxu0 0.0
    %4433 = vmatprep.subr.mxu0 0.0
    %4434 = vmatpush1.msra.mxu0 0.0
    %4435 = vmatprep.subr.mxu0 0.0
    %4436 = vmatpush1.msra.mxu0 0.0
    %4437 = vmatprep.subr.mxu0 0.0
    %4438 = vmatpush1.msra.mxu0 0.0
    %4439 = vmatprep.subr.mxu0 0.0
    %4440 = vmatpush1.msra.mxu0 0.0
    %4441 = vmatprep.subr.mxu0 0.0
    %4442 = vmatpush1.msra.mxu0 0.0
    %4443 = vmatprep.subr.mxu0 0.0
    %4444 = vmatpush1.msra.mxu0 0.0
    %4445 = vmatprep.subr.mxu0 0.0
    %4446 = vmatpush1.msra.mxu0 0.0
    %4447 = vmatprep.subr.mxu0 0.0
    %4448 = vmatpush1.msra.mxu0 0.0
    %4449 = vmatprep.subr.mxu0 0.0
    %4450 = vmatpush1.msra.mxu0 0.0
    %4451 = vmatprep.subr.mxu0 0.0
    %4452 = vmatpush1.msra.mxu0 0.0
    %4453 = vmatprep.subr.mxu0 0.0
    %4454 = vmatpush1.msra.mxu0 0.0
    %4455 = vmatprep.subr.mxu0 0.0
    %4456 = vmatpush1.msra.mxu0 0.0
    %4457 = vmatprep.subr.mxu0 0.0
    %4458 = vmatpush1.msra.mxu0 0.0
    %4459 = vmatprep.subr.mxu0 0.0
    %4460 = vmatpush1.msra.mxu0 0.0
    %4461 = vmatprep.subr.mxu0 0.0
    %4462 = vmatpush1.msra.mxu0 0.0
    %4463 = vmatprep.subr.mxu0 0.0
    %4464 = vmatpush1.msra.mxu0 0.0
    %4465 = vmatprep.mubr.f32.mxu0 0.0
    %v4466 = vand.u32 %v2926, 4294901760
    %4467 = vmatmul.mubr.f32.gmra.mrb[0].mxu0 %v4466
    %v4468 = vpop.f32.mrb[0].mxu0
    %v4469 = vadd.f32 %v4318, %v4468
    %v4470 = vpop.f32.mrb[0].mxu0
    %4471 = vmatprep.mubr.f32.mxu0 0.0
    %v4472 = vand.u32 %v2929, 4294901760
    %4473 = vmatmul.mubr.f32.gmra.mrb[0].mxu0 %v4472
    %v4474 = vpop.f32.mrb[0].mxu0
    %v4475 = vadd.f32 %v4326, %v4474
    %v4476 = vpop.f32.mrb[0].mxu0
    %4477 = vmatprep.mubr.f32.mxu0 0.0
    %v4478 = vand.u32 %v2932, 4294901760
    %4479 = vmatmul.mubr.f32.gmra.mrb[0].mxu0 %v4478
    %v4480 = vpop.f32.mrb[0].mxu0
    %v4481 = vadd.f32 %v4334, %v4480
    %v4482 = vpop.f32.mrb[0].mxu0
    %4483 = vmatprep.mubr.f32.mxu0 0.0
    %v4484 = vand.u32 %v2935, 4294901760
    %4485 = vmatmul.mubr.f32.gmra.mrb[0].mxu0 %v4484
    %v4486 = vpop.f32.mrb[0].mxu0
    %v4487 = vadd.f32 %v4342, %v4486
    %v4488 = vpop.f32.mrb[0].mxu0
    %4489 = vmatprep.mubr.f32.mxu0 0.0
    %v4490 = vand.u32 %v2938, 4294901760
    %4491 = vmatmul.mubr.f32.gmra.mrb[0].mxu0 %v4490
    %v4492 = vpop.f32.mrb[0].mxu0
    %v4493 = vadd.f32 %v4350, %v4492
    %v4494 = vpop.f32.mrb[0].mxu0
    %4495 = vmatprep.mubr.f32.mxu0 0.0
    %v4496 = vand.u32 %v2941, 4294901760
    %4497 = vmatmul.mubr.f32.gmra.mrb[0].mxu0 %v4496
    %v4498 = vpop.f32.mrb[0].mxu0
    %v4499 = vadd.f32 %v4358, %v4498
    %v4500 = vpop.f32.mrb[0].mxu0
    %4501 = vmatprep.mubr.f32.mxu0 0.0
    %v4502 = vand.u32 %v2944, 4294901760
    %4503 = vmatmul.mubr.f32.gmra.mrb[0].mxu0 %v4502
    %v4504 = vpop.f32.mrb[0].mxu0
    %v4505 = vadd.f32 %v4366, %v4504
    %v4506 = vpop.f32.mrb[0].mxu0
    %4507 = vmatprep.mubr.f32.mxu0 0.0
    %v4508 = vand.u32 %v2947, 4294901760
    %4509 = vmatmul.mubr.f32.gmra.mrb[0].mxu0 %v4508
    %v4510 = vpop.f32.mrb[0].mxu0
    %v4511 = vadd.f32 %v4374, %v4510
    %v4512 = vpop.f32.mrb[0].mxu0
    %4513 = vdwg.mxu0
    %4514 = vmatprep.subr.mxu0 0.0
    %v4515 = vand.u32 %v3787, 4294901760
    %4516 = vmatpush1.msra.mxu0 %v4515
    %4517 = vmatprep.subr.mxu0 0.0
    %v4518 = vand.u32 %v3788, 4294901760
    %4519 = vmatpush1.msra.mxu0 %v4518
    %4520 = vmatprep.subr.mxu0 0.0
    %v4521 = vand.u32 %v3789, 4294901760
    %4522 = vmatpush1.msra.mxu0 %v4521
    %4523 = vmatprep.subr.mxu0 0.0
    %v4524 = vand.u32 %v3790, 4294901760
    %4525 = vmatpush1.msra.mxu0 %v4524
    %4526 = vmatprep.subr.mxu0 0.0
    %v4527 = vand.u32 %v3791, 4294901760
    %4528 = vmatpush1.msra.mxu0 %v4527
    %4529 = vmatprep.subr.mxu0 0.0
    %v4530 = vand.u32 %v3792, 4294901760
    %4531 = vmatpush1.msra.mxu0 %v4530
    %4532 = vmatprep.subr.mxu0 0.0
    %v4533 = vand.u32 %v3793, 4294901760
    %4534 = vmatpush1.msra.mxu0 %v4533
    %4535 = vmatprep.subr.mxu0 0.0
    %v4536 = vand.u32 %v3794, 4294901760
    %4537 = vmatpush1.msra.mxu0 %v4536
    %4538 = vmatprep.subr.mxu0 0.0
    %4539 = vmatpush1.msra.mxu0 0.0
    %4540 = vmatprep.subr.mxu0 0.0
    %4541 = vmatpush1.msra.mxu0 0.0
    %4542 = vmatprep.subr.mxu0 0.0
    %4543 = vmatpush1.msra.mxu0 0.0
    %4544 = vmatprep.subr.mxu0 0.0
    %4545 = vmatpush1.msra.mxu0 0.0
    %4546 = vmatprep.subr.mxu0 0.0
    %4547 = vmatpush1.msra.mxu0 0.0
    %4548 = vmatprep.subr.mxu0 0.0
    %4549 = vmatpush1.msra.mxu0 0.0
    %4550 = vmatprep.subr.mxu0 0.0
    %4551 = vmatpush1.msra.mxu0 0.0
    %4552 = vmatprep.subr.mxu0 0.0
    %4553 = vmatpush1.msra.mxu0 0.0
    %4554 = vmatprep.subr.mxu0 0.0
    %4555 = vmatpush1.msra.mxu0 0.0
    %4556 = vmatprep.subr.mxu0 0.0
    %4557 = vmatpush1.msra.mxu0 0.0
    %4558 = vmatprep.subr.mxu0 0.0
    %4559 = vmatpush1.msra.mxu0 0.0
    %4560 = vmatprep.subr.mxu0 0.0
    %4561 = vmatpush1.msra.mxu0 0.0
    %4562 = vmatprep.subr.mxu0 0.0
    %4563 = vmatpush1.msra.mxu0 0.0
    %4564 = vmatprep.subr.mxu0 0.0
    %4565 = vmatpush1.msra.mxu0 0.0
    %4566 = vmatprep.subr.mxu0 0.0
    %4567 = vmatpush1.msra.mxu0 0.0
    %4568 = vmatprep.subr.mxu0 0.0
    %4569 = vmatpush1.msra.mxu0 0.0
    %4570 = vmatprep.subr.mxu0 0.0
    %4571 = vmatpush1.msra.mxu0 0.0
    %4572 = vmatprep.subr.mxu0 0.0
    %4573 = vmatpush1.msra.mxu0 0.0
    %4574 = vmatprep.subr.mxu0 0.0
    %4575 = vmatpush1.msra.mxu0 0.0
    %4576 = vmatprep.subr.mxu0 0.0
    %4577 = vmatpush1.msra.mxu0 0.0
    %4578 = vmatprep.subr.mxu0 0.0
    %4579 = vmatpush1.msra.mxu0 0.0
    %4580 = vmatprep.subr.mxu0 0.0
    %4581 = vmatpush1.msra.mxu0 0.0
    %4582 = vmatprep.subr.mxu0 0.0
    %4583 = vmatpush1.msra.mxu0 0.0
    %4584 = vmatprep.subr.mxu0 0.0
    %4585 = vmatpush1.msra.mxu0 0.0
    %4586 = vmatprep.mubr.f32.mxu0 0.0
    %v4587 = vand.u32 %v2926, 4294901760
    %4588 = vmatmul.mubr.f32.gmra.mrb[0].mxu0 %v4587
    %v4589 = vpop.f32.mrb[0].mxu0
    %v4590 = vadd.f32 %v4469, %v4589
    %v4591 = vpop.f32.mrb[0].mxu0
    %4592 = vmatprep.mubr.f32.mxu0 0.0
    %v4593 = vand.u32 %v2929, 4294901760
    %4594 = vmatmul.mubr.f32.gmra.mrb[0].mxu0 %v4593
    %v4595 = vpop.f32.mrb[0].mxu0
    %v4596 = vadd.f32 %v4475, %v4595
    %v4597 = vpop.f32.mrb[0].mxu0
    %4598 = vmatprep.mubr.f32.mxu0 0.0
    %v4599 = vand.u32 %v2932, 4294901760
    %4600 = vmatmul.mubr.f32.gmra.mrb[0].mxu0 %v4599
    %v4601 = vpop.f32.mrb[0].mxu0
    %v4602 = vadd.f32 %v4481, %v4601
    %v4603 = vpop.f32.mrb[0].mxu0
    %4604 = vmatprep.mubr.f32.mxu0 0.0
    %v4605 = vand.u32 %v2935, 4294901760
    %4606 = vmatmul.mubr.f32.gmra.mrb[0].mxu0 %v4605
    %v4607 = vpop.f32.mrb[0].mxu0
    %v4608 = vadd.f32 %v4487, %v4607
    %v4609 = vpop.f32.mrb[0].mxu0
    %4610 = vmatprep.mubr.f32.mxu0 0.0
    %v4611 = vand.u32 %v2938, 4294901760
    %4612 = vmatmul.mubr.f32.gmra.mrb[0].mxu0 %v4611
    %v4613 = vpop.f32.mrb[0].mxu0
    %v4614 = vadd.f32 %v4493, %v4613
    %v4615 = vpop.f32.mrb[0].mxu0
    %4616 = vmatprep.mubr.f32.mxu0 0.0
    %v4617 = vand.u32 %v2941, 4294901760
    %4618 = vmatmul.mubr.f32.gmra.mrb[0].mxu0 %v4617
    %v4619 = vpop.f32.mrb[0].mxu0
    %v4620 = vadd.f32 %v4499, %v4619
    %v4621 = vpop.f32.mrb[0].mxu0
    %4622 = vmatprep.mubr.f32.mxu0 0.0
    %v4623 = vand.u32 %v2944, 4294901760
    %4624 = vmatmul.mubr.f32.gmra.mrb[0].mxu0 %v4623
    %v4625 = vpop.f32.mrb[0].mxu0
    %v4626 = vadd.f32 %v4505, %v4625
    %v4627 = vpop.f32.mrb[0].mxu0
    %4628 = vmatprep.mubr.f32.mxu0 0.0
    %v4629 = vand.u32 %v2947, 4294901760
    %4630 = vmatmul.mubr.f32.gmra.mrb[0].mxu0 %v4629
    %v4631 = vpop.f32.mrb[0].mxu0
    %v4632 = vadd.f32 %v4511, %v4631
    %v4633 = vpop.f32.mrb[0].mxu0
    %4634 = vdwg.mxu0
    %v4635 = vrcp.pop %v2898
    %v4636 = vrcp.pop %v2899
    %v4637 = vrcp.pop %v2900
    %v4638 = vrcp.pop %v2901
    %v4639 = vrcp.pop %v2902
    %v4640 = vrcp.pop %v2903
    %v4641 = vrcp.pop %v2904
    %v4642 = vrcp.pop %v2905
    %v4643 = vmul.f32 %v3742, %v4635
    %v4644 = vmul.f32 %v3748, %v4636
    %v4645 = vmul.f32 %v3754, %v4637
    %v4646 = vmul.f32 %v3760, %v4638
    %v4647 = vmul.f32 %v3766, %v4639
    %v4648 = vmul.f32 %v3772, %v4640
    %v4649 = vmul.f32 %v3778, %v4641
    %v4650 = vmul.f32 %v3784, %v4642
    %v4652 = vsel %vm1100, %v4643, 0
    %v4655 = vsel %vm1100, %v4644, 0
    %v4658 = vsel %vm1100, %v4645, 0
    %v4661 = vsel %vm1100, %v4646, 0
    %v4664 = vsel %vm1100, %v4647, 0
    %v4667 = vsel %vm1100, %v4648, 0
    %v4670 = vsel %vm1100, %v4649, 0
    %v4673 = vsel %vm1100, %v4650, 0
    %4675 = vmatprep.subr.mxu0 0.0
    %v4676 = vand.u32 %v1127, 4294901760
    %4677 = vmatpush1.msra.mxu0 %v4676
    %4678 = vmatprep.subr.mxu0 0.0
    %4679 = vmatpush1.msra.mxu0 0.0
    %4680 = vmatprep.subr.mxu0 0.0
    %4681 = vmatpush1.msra.mxu0 0.0
    %4682 = vmatprep.subr.mxu0 0.0
    %4683 = vmatpush1.msra.mxu0 0.0
    %4684 = vmatprep.subr.mxu0 0.0
    %4685 = vmatpush1.msra.mxu0 0.0
    %4686 = vmatprep.subr.mxu0 0.0
    %4687 = vmatpush1.msra.mxu0 0.0
    %4688 = vmatprep.subr.mxu0 0.0
    %4689 = vmatpush1.msra.mxu0 0.0
    %4690 = vmatprep.subr.mxu0 0.0
    %4691 = vmatpush1.msra.mxu0 0.0
    %4692 = vmatprep.subr.mxu0 0.0
    %4693 = vmatpush1.msra.mxu0 0.0
    %4694 = vmatprep.subr.mxu0 0.0
    %4695 = vmatpush1.msra.mxu0 0.0
    %4696 = vmatprep.subr.mxu0 0.0
    %4697 = vmatpush1.msra.mxu0 0.0
    %4698 = vmatprep.subr.mxu0 0.0
    %4699 = vmatpush1.msra.mxu0 0.0
    %4700 = vmatprep.subr.mxu0 0.0
    %4701 = vmatpush1.msra.mxu0 0.0
    %4702 = vmatprep.subr.mxu0 0.0
    %4703 = vmatpush1.msra.mxu0 0.0
    %4704 = vmatprep.subr.mxu0 0.0
    %4705 = vmatpush1.msra.mxu0 0.0
    %4706 = vmatprep.subr.mxu0 0.0
    %4707 = vmatpush1.msra.mxu0 0.0
    %4708 = vmatprep.subr.mxu0 0.0
    %4709 = vmatpush1.msra.mxu0 0.0
    %4710 = vmatprep.subr.mxu0 0.0
    %4711 = vmatpush1.msra.mxu0 0.0
    %4712 = vmatprep.subr.mxu0 0.0
    %4713 = vmatpush1.msra.mxu0 0.0
    %4714 = vmatprep.subr.mxu0 0.0
    %4715 = vmatpush1.msra.mxu0 0.0
    %4716 = vmatprep.subr.mxu0 0.0
    %4717 = vmatpush1.msra.mxu0 0.0
    %4718 = vmatprep.subr.mxu0 0.0
    %4719 = vmatpush1.msra.mxu0 0.0
    %4720 = vmatprep.subr.mxu0 0.0
    %4721 = vmatpush1.msra.mxu0 0.0
    %4722 = vmatprep.subr.mxu0 0.0
    %4723 = vmatpush1.msra.mxu0 0.0
    %4724 = vmatprep.subr.mxu0 0.0
    %4725 = vmatpush1.msra.mxu0 0.0
    %4726 = vmatprep.subr.mxu0 0.0
    %4727 = vmatpush1.msra.mxu0 0.0
    %4728 = vmatprep.subr.mxu0 0.0
    %4729 = vmatpush1.msra.mxu0 0.0
    %4730 = vmatprep.subr.mxu0 0.0
    %4731 = vmatpush1.msra.mxu0 0.0
    %4732 = vmatprep.subr.mxu0 0.0
    %4733 = vmatpush1.msra.mxu0 0.0
    %4734 = vmatprep.subr.mxu0 0.0
    %4735 = vmatpush1.msra.mxu0 0.0
    %4736 = vmatprep.subr.mxu0 0.0
    %4737 = vmatpush1.msra.mxu0 0.0
    %4738 = vmatprep.subr.mxu0 0.0
    %4739 = vmatpush1.msra.mxu0 0.0
    %4740 = vmatprep.mubr.f32.mxu0 0.0
    %v4741 = vand.u32 %v4652, 4294901760
    %v4742 = vsub.f32 %v4652, %v4741
    %v4743 = vand.u32 %v4742, 4294901760
    %v4744 = vsub.f32 %v4742, %v4743
    %v4745 = vand.u32 %v4744, 4294901760
    %4746 = vmatmul.mubr.f32.gmra.mrb[0].mxu0 %v4745
    %v4747 = vpop.f32.mrb[0].mxu0
    %v4748 = vadd.f32 0.0, %v4747
    %v4749 = vpop.f32.mrb[0].mxu0
    %4750 = vmatprep.mubr.f32.mxu0 0.0
    %v4751 = vand.u32 %v4655, 4294901760
    %v4752 = vsub.f32 %v4655, %v4751
    %v4753 = vand.u32 %v4752, 4294901760
    %v4754 = vsub.f32 %v4752, %v4753
    %v4755 = vand.u32 %v4754, 4294901760
    %4756 = vmatmul.mubr.f32.gmra.mrb[0].mxu0 %v4755
    %v4757 = vpop.f32.mrb[0].mxu0
    %v4758 = vadd.f32 0.0, %v4757
    %v4759 = vpop.f32.mrb[0].mxu0
    %4760 = vmatprep.mubr.f32.mxu0 0.0
    %v4761 = vand.u32 %v4658, 4294901760
    %v4762 = vsub.f32 %v4658, %v4761
    %v4763 = vand.u32 %v4762, 4294901760
    %v4764 = vsub.f32 %v4762, %v4763
    %v4765 = vand.u32 %v4764, 4294901760
    %4766 = vmatmul.mubr.f32.gmra.mrb[0].mxu0 %v4765
    %v4767 = vpop.f32.mrb[0].mxu0
    %v4768 = vadd.f32 0.0, %v4767
    %v4769 = vpop.f32.mrb[0].mxu0
    %4770 = vmatprep.mubr.f32.mxu0 0.0
    %v4771 = vand.u32 %v4661, 4294901760
    %v4772 = vsub.f32 %v4661, %v4771
    %v4773 = vand.u32 %v4772, 4294901760
    %v4774 = vsub.f32 %v4772, %v4773
    %v4775 = vand.u32 %v4774, 4294901760
    %4776 = vmatmul.mubr.f32.gmra.mrb[0].mxu0 %v4775
    %v4777 = vpop.f32.mrb[0].mxu0
    %v4778 = vadd.f32 0.0, %v4777
    %v4779 = vpop.f32.mrb[0].mxu0
    %4780 = vmatprep.mubr.f32.mxu0 0.0
    %v4781 = vand.u32 %v4664, 4294901760
    %v4782 = vsub.f32 %v4664, %v4781
    %v4783 = vand.u32 %v4782, 4294901760
    %v4784 = vsub.f32 %v4782, %v4783
    %v4785 = vand.u32 %v4784, 4294901760
    %4786 = vmatmul.mubr.f32.gmra.mrb[0].mxu0 %v4785
    %v4787 = vpop.f32.mrb[0].mxu0
    %v4788 = vadd.f32 0.0, %v4787
    %v4789 = vpop.f32.mrb[0].mxu0
    %4790 = vmatprep.mubr.f32.mxu0 0.0
    %v4791 = vand.u32 %v4667, 4294901760
    %v4792 = vsub.f32 %v4667, %v4791
    %v4793 = vand.u32 %v4792, 4294901760
    %v4794 = vsub.f32 %v4792, %v4793
    %v4795 = vand.u32 %v4794, 4294901760
    %4796 = vmatmul.mubr.f32.gmra.mrb[0].mxu0 %v4795
    %v4797 = vpop.f32.mrb[0].mxu0
    %v4798 = vadd.f32 0.0, %v4797
    %v4799 = vpop.f32.mrb[0].mxu0
    %4800 = vmatprep.mubr.f32.mxu0 0.0
    %v4801 = vand.u32 %v4670, 4294901760
    %v4802 = vsub.f32 %v4670, %v4801
    %v4803 = vand.u32 %v4802, 4294901760
    %v4804 = vsub.f32 %v4802, %v4803
    %v4805 = vand.u32 %v4804, 4294901760
    %4806 = vmatmul.mubr.f32.gmra.mrb[0].mxu0 %v4805
    %v4807 = vpop.f32.mrb[0].mxu0
    %v4808 = vadd.f32 0.0, %v4807
    %v4809 = vpop.f32.mrb[0].mxu0
    %4810 = vmatprep.mubr.f32.mxu0 0.0
    %v4811 = vand.u32 %v4673, 4294901760
    %v4812 = vsub.f32 %v4673, %v4811
    %v4813 = vand.u32 %v4812, 4294901760
    %v4814 = vsub.f32 %v4812, %v4813
    %v4815 = vand.u32 %v4814, 4294901760
    %4816 = vmatmul.mubr.f32.gmra.mrb[0].mxu0 %v4815
    %v4817 = vpop.f32.mrb[0].mxu0
    %v4818 = vadd.f32 0.0, %v4817
    %v4819 = vpop.f32.mrb[0].mxu0
    %4820 = vdwg.mxu0
    %4821 = vmatprep.subr.mxu0 0.0
    %v4822 = vand.u32 %v1127, 4294901760
    %v4823 = vsub.f32 %v1127, %v4822
    %v4824 = vand.u32 %v4823, 4294901760
    %v4825 = vsub.f32 %v4823, %v4824
    %v4826 = vand.u32 %v4825, 4294901760
    %4827 = vmatpush1.msra.mxu0 %v4826
    %4828 = vmatprep.subr.mxu0 0.0
    %4829 = vmatpush1.msra.mxu0 0.0
    %4830 = vmatprep.subr.mxu0 0.0
    %4831 = vmatpush1.msra.mxu0 0.0
    %4832 = vmatprep.subr.mxu0 0.0
    %4833 = vmatpush1.msra.mxu0 0.0
    %4834 = vmatprep.subr.mxu0 0.0
    %4835 = vmatpush1.msra.mxu0 0.0
    %4836 = vmatprep.subr.mxu0 0.0
    %4837 = vmatpush1.msra.mxu0 0.0
    %4838 = vmatprep.subr.mxu0 0.0
    %4839 = vmatpush1.msra.mxu0 0.0
    %4840 = vmatprep.subr.mxu0 0.0
    %4841 = vmatpush1.msra.mxu0 0.0
    %4842 = vmatprep.subr.mxu0 0.0
    %4843 = vmatpush1.msra.mxu0 0.0
    %4844 = vmatprep.subr.mxu0 0.0
    %4845 = vmatpush1.msra.mxu0 0.0
    %4846 = vmatprep.subr.mxu0 0.0
    %4847 = vmatpush1.msra.mxu0 0.0
    %4848 = vmatprep.subr.mxu0 0.0
    %4849 = vmatpush1.msra.mxu0 0.0
    %4850 = vmatprep.subr.mxu0 0.0
    %4851 = vmatpush1.msra.mxu0 0.0
    %4852 = vmatprep.subr.mxu0 0.0
    %4853 = vmatpush1.msra.mxu0 0.0
    %4854 = vmatprep.subr.mxu0 0.0
    %4855 = vmatpush1.msra.mxu0 0.0
    %4856 = vmatprep.subr.mxu0 0.0
    %4857 = vmatpush1.msra.mxu0 0.0
    %4858 = vmatprep.subr.mxu0 0.0
    %4859 = vmatpush1.msra.mxu0 0.0
    %4860 = vmatprep.subr.mxu0 0.0
    %4861 = vmatpush1.msra.mxu0 0.0
    %4862 = vmatprep.subr.mxu0 0.0
    %4863 = vmatpush1.msra.mxu0 0.0
    %4864 = vmatprep.subr.mxu0 0.0
    %4865 = vmatpush1.msra.mxu0 0.0
    %4866 = vmatprep.subr.mxu0 0.0
    %4867 = vmatpush1.msra.mxu0 0.0
    %4868 = vmatprep.subr.mxu0 0.0
    %4869 = vmatpush1.msra.mxu0 0.0
    %4870 = vmatprep.subr.mxu0 0.0
    %4871 = vmatpush1.msra.mxu0 0.0
    %4872 = vmatprep.subr.mxu0 0.0
    %4873 = vmatpush1.msra.mxu0 0.0
    %4874 = vmatprep.subr.mxu0 0.0
    %4875 = vmatpush1.msra.mxu0 0.0
    %4876 = vmatprep.subr.mxu0 0.0
    %4877 = vmatpush1.msra.mxu0 0.0
    %4878 = vmatprep.subr.mxu0 0.0
    %4879 = vmatpush1.msra.mxu0 0.0
    %4880 = vmatprep.subr.mxu0 0.0
    %4881 = vmatpush1.msra.mxu0 0.0
    %4882 = vmatprep.subr.mxu0 0.0
    %4883 = vmatpush1.msra.mxu0 0.0
    %4884 = vmatprep.subr.mxu0 0.0
    %4885 = vmatpush1.msra.mxu0 0.0
    %4886 = vmatprep.subr.mxu0 0.0
    %4887 = vmatpush1.msra.mxu0 0.0
    %4888 = vmatprep.subr.mxu0 0.0
    %4889 = vmatpush1.msra.mxu0 0.0
    %4890 = vmatprep.mubr.f32.mxu0 0.0
    %v4891 = vand.u32 %v4652, 4294901760
    %4892 = vmatmul.mubr.f32.gmra.mrb[0].mxu0 %v4891
    %v4893 = vpop.f32.mrb[0].mxu0
    %v4894 = vadd.f32 %v4748, %v4893
    %v4895 = vpop.f32.mrb[0].mxu0
    %4896 = vmatprep.mubr.f32.mxu0 0.0
    %v4897 = vand.u32 %v4655, 4294901760
    %4898 = vmatmul.mubr.f32.gmra.mrb[0].mxu0 %v4897
    %v4899 = vpop.f32.mrb[0].mxu0
    %v4900 = vadd.f32 %v4758, %v4899
    %v4901 = vpop.f32.mrb[0].mxu0
    %4902 = vmatprep.mubr.f32.mxu0 0.0
    %v4903 = vand.u32 %v4658, 4294901760
    %4904 = vmatmul.mubr.f32.gmra.mrb[0].mxu0 %v4903
    %v4905 = vpop.f32.mrb[0].mxu0
    %v4906 = vadd.f32 %v4768, %v4905
    %v4907 = vpop.f32.mrb[0].mxu0
    %4908 = vmatprep.mubr.f32.mxu0 0.0
    %v4909 = vand.u32 %v4661, 4294901760
    %4910 = vmatmul.mubr.f32.gmra.mrb[0].mxu0 %v4909
    %v4911 = vpop.f32.mrb[0].mxu0
    %v4912 = vadd.f32 %v4778, %v4911
    %v4913 = vpop.f32.mrb[0].mxu0
    %4914 = vmatprep.mubr.f32.mxu0 0.0
    %v4915 = vand.u32 %v4664, 4294901760
    %4916 = vmatmul.mubr.f32.gmra.mrb[0].mxu0 %v4915
    %v4917 = vpop.f32.mrb[0].mxu0
    %v4918 = vadd.f32 %v4788, %v4917
    %v4919 = vpop.f32.mrb[0].mxu0
    %4920 = vmatprep.mubr.f32.mxu0 0.0
    %v4921 = vand.u32 %v4667, 4294901760
    %4922 = vmatmul.mubr.f32.gmra.mrb[0].mxu0 %v4921
    %v4923 = vpop.f32.mrb[0].mxu0
    %v4924 = vadd.f32 %v4798, %v4923
    %v4925 = vpop.f32.mrb[0].mxu0
    %4926 = vmatprep.mubr.f32.mxu0 0.0
    %v4927 = vand.u32 %v4670, 4294901760
    %4928 = vmatmul.mubr.f32.gmra.mrb[0].mxu0 %v4927
    %v4929 = vpop.f32.mrb[0].mxu0
    %v4930 = vadd.f32 %v4808, %v4929
    %v4931 = vpop.f32.mrb[0].mxu0
    %4932 = vmatprep.mubr.f32.mxu0 0.0
    %v4933 = vand.u32 %v4673, 4294901760
    %4934 = vmatmul.mubr.f32.gmra.mrb[0].mxu0 %v4933
    %v4935 = vpop.f32.mrb[0].mxu0
    %v4936 = vadd.f32 %v4818, %v4935
    %v4937 = vpop.f32.mrb[0].mxu0
    %4938 = vdwg.mxu0
    %4939 = vmatprep.subr.mxu0 0.0
    %v4940 = vand.u32 %v1127, 4294901760
    %v4941 = vsub.f32 %v1127, %v4940
    %4942 = vmatpush1.msra.mxu0 %v4941
    %4943 = vmatprep.subr.mxu0 0.0
    %4944 = vmatpush1.msra.mxu0 0.0
    %4945 = vmatprep.subr.mxu0 0.0
    %4946 = vmatpush1.msra.mxu0 0.0
    %4947 = vmatprep.subr.mxu0 0.0
    %4948 = vmatpush1.msra.mxu0 0.0
    %4949 = vmatprep.subr.mxu0 0.0
    %4950 = vmatpush1.msra.mxu0 0.0
    %4951 = vmatprep.subr.mxu0 0.0
    %4952 = vmatpush1.msra.mxu0 0.0
    %4953 = vmatprep.subr.mxu0 0.0
    %4954 = vmatpush1.msra.mxu0 0.0
    %4955 = vmatprep.subr.mxu0 0.0
    %4956 = vmatpush1.msra.mxu0 0.0
    %4957 = vmatprep.subr.mxu0 0.0
    %4958 = vmatpush1.msra.mxu0 0.0
    %4959 = vmatprep.subr.mxu0 0.0
    %4960 = vmatpush1.msra.mxu0 0.0
    %4961 = vmatprep.subr.mxu0 0.0
    %4962 = vmatpush1.msra.mxu0 0.0
    %4963 = vmatprep.subr.mxu0 0.0
    %4964 = vmatpush1.msra.mxu0 0.0
    %4965 = vmatprep.subr.mxu0 0.0
    %4966 = vmatpush1.msra.mxu0 0.0
    %4967 = vmatprep.subr.mxu0 0.0
    %4968 = vmatpush1.msra.mxu0 0.0
    %4969 = vmatprep.subr.mxu0 0.0
    %4970 = vmatpush1.msra.mxu0 0.0
    %4971 = vmatprep.subr.mxu0 0.0
    %4972 = vmatpush1.msra.mxu0 0.0
    %4973 = vmatprep.subr.mxu0 0.0
    %4974 = vmatpush1.msra.mxu0 0.0
    %4975 = vmatprep.subr.mxu0 0.0
    %4976 = vmatpush1.msra.mxu0 0.0
    %4977 = vmatprep.subr.mxu0 0.0
    %4978 = vmatpush1.msra.mxu0 0.0
    %4979 = vmatprep.subr.mxu0 0.0
    %4980 = vmatpush1.msra.mxu0 0.0
    %4981 = vmatprep.subr.mxu0 0.0
    %4982 = vmatpush1.msra.mxu0 0.0
    %4983 = vmatprep.subr.mxu0 0.0
    %4984 = vmatpush1.msra.mxu0 0.0
    %4985 = vmatprep.subr.mxu0 0.0
    %4986 = vmatpush1.msra.mxu0 0.0
    %4987 = vmatprep.subr.mxu0 0.0
    %4988 = vmatpush1.msra.mxu0 0.0
    %4989 = vmatprep.subr.mxu0 0.0
    %4990 = vmatpush1.msra.mxu0 0.0
    %4991 = vmatprep.subr.mxu0 0.0
    %4992 = vmatpush1.msra.mxu0 0.0
    %4993 = vmatprep.subr.mxu0 0.0
    %4994 = vmatpush1.msra.mxu0 0.0
    %4995 = vmatprep.subr.mxu0 0.0
    %4996 = vmatpush1.msra.mxu0 0.0
    %4997 = vmatprep.subr.mxu0 0.0
    %4998 = vmatpush1.msra.mxu0 0.0
    %4999 = vmatprep.subr.mxu0 0.0
    %5000 = vmatpush1.msra.mxu0 0.0
    %5001 = vmatprep.subr.mxu0 0.0
    %5002 = vmatpush1.msra.mxu0 0.0
    %5003 = vmatprep.subr.mxu0 0.0
    %5004 = vmatpush1.msra.mxu0 0.0
    %5005 = vmatprep.mubr.f32.mxu0 0.0
    %v5006 = vand.u32 %v4652, 4294901760
    %v5007 = vsub.f32 %v4652, %v5006
    %5008 = vmatmul.mubr.f32.gmra.mrb[0].mxu0 %v5007
    %v5009 = vpop.f32.mrb[0].mxu0
    %v5010 = vadd.f32 %v4894, %v5009
    %v5011 = vpop.f32.mrb[0].mxu0
    %5012 = vmatprep.mubr.f32.mxu0 0.0
    %v5013 = vand.u32 %v4655, 4294901760
    %v5014 = vsub.f32 %v4655, %v5013
    %5015 = vmatmul.mubr.f32.gmra.mrb[0].mxu0 %v5014
    %v5016 = vpop.f32.mrb[0].mxu0
    %v5017 = vadd.f32 %v4900, %v5016
    %v5018 = vpop.f32.mrb[0].mxu0
    %5019 = vmatprep.mubr.f32.mxu0 0.0
    %v5020 = vand.u32 %v4658, 4294901760
    %v5021 = vsub.f32 %v4658, %v5020
    %5022 = vmatmul.mubr.f32.gmra.mrb[0].mxu0 %v5021
    %v5023 = vpop.f32.mrb[0].mxu0
    %v5024 = vadd.f32 %v4906, %v5023
    %v5025 = vpop.f32.mrb[0].mxu0
    %5026 = vmatprep.mubr.f32.mxu0 0.0
    %v5027 = vand.u32 %v4661, 4294901760
    %v5028 = vsub.f32 %v4661, %v5027
    %5029 = vmatmul.mubr.f32.gmra.mrb[0].mxu0 %v5028
    %v5030 = vpop.f32.mrb[0].mxu0
    %v5031 = vadd.f32 %v4912, %v5030
    %v5032 = vpop.f32.mrb[0].mxu0
    %5033 = vmatprep.mubr.f32.mxu0 0.0
    %v5034 = vand.u32 %v4664, 4294901760
    %v5035 = vsub.f32 %v4664, %v5034
    %5036 = vmatmul.mubr.f32.gmra.mrb[0].mxu0 %v5035
    %v5037 = vpop.f32.mrb[0].mxu0
    %v5038 = vadd.f32 %v4918, %v5037
    %v5039 = vpop.f32.mrb[0].mxu0
    %5040 = vmatprep.mubr.f32.mxu0 0.0
    %v5041 = vand.u32 %v4667, 4294901760
    %v5042 = vsub.f32 %v4667, %v5041
    %5043 = vmatmul.mubr.f32.gmra.mrb[0].mxu0 %v5042
    %v5044 = vpop.f32.mrb[0].mxu0
    %v5045 = vadd.f32 %v4924, %v5044
    %v5046 = vpop.f32.mrb[0].mxu0
    %5047 = vmatprep.mubr.f32.mxu0 0.0
    %v5048 = vand.u32 %v4670, 4294901760
    %v5049 = vsub.f32 %v4670, %v5048
    %5050 = vmatmul.mubr.f32.gmra.mrb[0].mxu0 %v5049
    %v5051 = vpop.f32.mrb[0].mxu0
    %v5052 = vadd.f32 %v4930, %v5051
    %v5053 = vpop.f32.mrb[0].mxu0
    %5054 = vmatprep.mubr.f32.mxu0 0.0
    %v5055 = vand.u32 %v4673, 4294901760
    %v5056 = vsub.f32 %v4673, %v5055
    %5057 = vmatmul.mubr.f32.gmra.mrb[0].mxu0 %v5056
    %v5058 = vpop.f32.mrb[0].mxu0
    %v5059 = vadd.f32 %v4936, %v5058
    %v5060 = vpop.f32.mrb[0].mxu0
    %5061 = vdwg.mxu0
    %5062 = vmatprep.subr.mxu0 0.0
    %v5063 = vand.u32 %v1127, 4294901760
    %5064 = vmatpush1.msra.mxu0 %v5063
    %5065 = vmatprep.subr.mxu0 0.0
    %5066 = vmatpush1.msra.mxu0 0.0
    %5067 = vmatprep.subr.mxu0 0.0
    %5068 = vmatpush1.msra.mxu0 0.0
    %5069 = vmatprep.subr.mxu0 0.0
    %5070 = vmatpush1.msra.mxu0 0.0
    %5071 = vmatprep.subr.mxu0 0.0
    %5072 = vmatpush1.msra.mxu0 0.0
    %5073 = vmatprep.subr.mxu0 0.0
    %5074 = vmatpush1.msra.mxu0 0.0
    %5075 = vmatprep.subr.mxu0 0.0
    %5076 = vmatpush1.msra.mxu0 0.0
    %5077 = vmatprep.subr.mxu0 0.0
    %5078 = vmatpush1.msra.mxu0 0.0
    %5079 = vmatprep.subr.mxu0 0.0
    %5080 = vmatpush1.msra.mxu0 0.0
    %5081 = vmatprep.subr.mxu0 0.0
    %5082 = vmatpush1.msra.mxu0 0.0
    %5083 = vmatprep.subr.mxu0 0.0
    %5084 = vmatpush1.msra.mxu0 0.0
    %5085 = vmatprep.subr.mxu0 0.0
    %5086 = vmatpush1.msra.mxu0 0.0
    %5087 = vmatprep.subr.mxu0 0.0
    %5088 = vmatpush1.msra.mxu0 0.0
    %5089 = vmatprep.subr.mxu0 0.0
    %5090 = vmatpush1.msra.mxu0 0.0
    %5091 = vmatprep.subr.mxu0 0.0
    %5092 = vmatpush1.msra.mxu0 0.0
    %5093 = vmatprep.subr.mxu0 0.0
    %5094 = vmatpush1.msra.mxu0 0.0
    %5095 = vmatprep.subr.mxu0 0.0
    %5096 = vmatpush1.msra.mxu0 0.0
    %5097 = vmatprep.subr.mxu0 0.0
    %5098 = vmatpush1.msra.mxu0 0.0
    %5099 = vmatprep.subr.mxu0 0.0
    %5100 = vmatpush1.msra.mxu0 0.0
    %5101 = vmatprep.subr.mxu0 0.0
    %5102 = vmatpush1.msra.mxu0 0.0
    %5103 = vmatprep.subr.mxu0 0.0
    %5104 = vmatpush1.msra.mxu0 0.0
    %5105 = vmatprep.subr.mxu0 0.0
    %5106 = vmatpush1.msra.mxu0 0.0
    %5107 = vmatprep.subr.mxu0 0.0
    %5108 = vmatpush1.msra.mxu0 0.0
    %5109 = vmatprep.subr.mxu0 0.0
    %5110 = vmatpush1.msra.mxu0 0.0
    %5111 = vmatprep.subr.mxu0 0.0
    %5112 = vmatpush1.msra.mxu0 0.0
    %5113 = vmatprep.subr.mxu0 0.0
    %5114 = vmatpush1.msra.mxu0 0.0
    %5115 = vmatprep.subr.mxu0 0.0
    %5116 = vmatpush1.msra.mxu0 0.0
    %5117 = vmatprep.subr.mxu0 0.0
    %5118 = vmatpush1.msra.mxu0 0.0
    %5119 = vmatprep.subr.mxu0 0.0
    %5120 = vmatpush1.msra.mxu0 0.0
    %5121 = vmatprep.subr.mxu0 0.0
    %5122 = vmatpush1.msra.mxu0 0.0
    %5123 = vmatprep.subr.mxu0 0.0
    %5124 = vmatpush1.msra.mxu0 0.0
    %5125 = vmatprep.subr.mxu0 0.0
    %5126 = vmatpush1.msra.mxu0 0.0
    %5127 = vmatprep.mubr.f32.mxu0 0.0
    %v5128 = vand.u32 %v4652, 4294901760
    %v5129 = vsub.f32 %v4652, %v5128
    %v5130 = vand.u32 %v5129, 4294901760
    %5131 = vmatmul.mubr.f32.gmra.mrb[0].mxu0 %v5130
    %v5132 = vpop.f32.mrb[0].mxu0
    %v5133 = vadd.f32 %v5010, %v5132
    %v5134 = vpop.f32.mrb[0].mxu0
    %5135 = vmatprep.mubr.f32.mxu0 0.0
    %v5136 = vand.u32 %v4655, 4294901760
    %v5137 = vsub.f32 %v4655, %v5136
    %v5138 = vand.u32 %v5137, 4294901760
    %5139 = vmatmul.mubr.f32.gmra.mrb[0].mxu0 %v5138
    %v5140 = vpop.f32.mrb[0].mxu0
    %v5141 = vadd.f32 %v5017, %v5140
    %v5142 = vpop.f32.mrb[0].mxu0
    %5143 = vmatprep.mubr.f32.mxu0 0.0
    %v5144 = vand.u32 %v4658, 4294901760
    %v5145 = vsub.f32 %v4658, %v5144
    %v5146 = vand.u32 %v5145, 4294901760
    %5147 = vmatmul.mubr.f32.gmra.mrb[0].mxu0 %v5146
    %v5148 = vpop.f32.mrb[0].mxu0
    %v5149 = vadd.f32 %v5024, %v5148
    %v5150 = vpop.f32.mrb[0].mxu0
    %5151 = vmatprep.mubr.f32.mxu0 0.0
    %v5152 = vand.u32 %v4661, 4294901760
    %v5153 = vsub.f32 %v4661, %v5152
    %v5154 = vand.u32 %v5153, 4294901760
    %5155 = vmatmul.mubr.f32.gmra.mrb[0].mxu0 %v5154
    %v5156 = vpop.f32.mrb[0].mxu0
    %v5157 = vadd.f32 %v5031, %v5156
    %v5158 = vpop.f32.mrb[0].mxu0
    %5159 = vmatprep.mubr.f32.mxu0 0.0
    %v5160 = vand.u32 %v4664, 4294901760
    %v5161 = vsub.f32 %v4664, %v5160
    %v5162 = vand.u32 %v5161, 4294901760
    %5163 = vmatmul.mubr.f32.gmra.mrb[0].mxu0 %v5162
    %v5164 = vpop.f32.mrb[0].mxu0
    %v5165 = vadd.f32 %v5038, %v5164
    %v5166 = vpop.f32.mrb[0].mxu0
    %5167 = vmatprep.mubr.f32.mxu0 0.0
    %v5168 = vand.u32 %v4667, 4294901760
    %v5169 = vsub.f32 %v4667, %v5168
    %v5170 = vand.u32 %v5169, 4294901760
    %5171 = vmatmul.mubr.f32.gmra.mrb[0].mxu0 %v5170
    %v5172 = vpop.f32.mrb[0].mxu0
    %v5173 = vadd.f32 %v5045, %v5172
    %v5174 = vpop.f32.mrb[0].mxu0
    %5175 = vmatprep.mubr.f32.mxu0 0.0
    %v5176 = vand.u32 %v4670, 4294901760
    %v5177 = vsub.f32 %v4670, %v5176
    %v5178 = vand.u32 %v5177, 4294901760
    %5179 = vmatmul.mubr.f32.gmra.mrb[0].mxu0 %v5178
    %v5180 = vpop.f32.mrb[0].mxu0
    %v5181 = vadd.f32 %v5052, %v5180
    %v5182 = vpop.f32.mrb[0].mxu0
    %5183 = vmatprep.mubr.f32.mxu0 0.0
    %v5184 = vand.u32 %v4673, 4294901760
    %v5185 = vsub.f32 %v4673, %v5184
    %v5186 = vand.u32 %v5185, 4294901760
    %5187 = vmatmul.mubr.f32.gmra.mrb[0].mxu0 %v5186
    %v5188 = vpop.f32.mrb[0].mxu0
    %v5189 = vadd.f32 %v5059, %v5188
    %v5190 = vpop.f32.mrb[0].mxu0
    %5191 = vdwg.mxu0
    %5192 = vmatprep.subr.mxu0 0.0
    %v5193 = vand.u32 %v1127, 4294901760
    %v5194 = vsub.f32 %v1127, %v5193
    %v5195 = vand.u32 %v5194, 4294901760
    %5196 = vmatpush1.msra.mxu0 %v5195
    %5197 = vmatprep.subr.mxu0 0.0
    %5198 = vmatpush1.msra.mxu0 0.0
    %5199 = vmatprep.subr.mxu0 0.0
    %5200 = vmatpush1.msra.mxu0 0.0
    %5201 = vmatprep.subr.mxu0 0.0
    %5202 = vmatpush1.msra.mxu0 0.0
    %5203 = vmatprep.subr.mxu0 0.0
    %5204 = vmatpush1.msra.mxu0 0.0
    %5205 = vmatprep.subr.mxu0 0.0
    %5206 = vmatpush1.msra.mxu0 0.0
    %5207 = vmatprep.subr.mxu0 0.0
    %5208 = vmatpush1.msra.mxu0 0.0
    %5209 = vmatprep.subr.mxu0 0.0
    %5210 = vmatpush1.msra.mxu0 0.0
    %5211 = vmatprep.subr.mxu0 0.0
    %5212 = vmatpush1.msra.mxu0 0.0
    %5213 = vmatprep.subr.mxu0 0.0
    %5214 = vmatpush1.msra.mxu0 0.0
    %5215 = vmatprep.subr.mxu0 0.0
    %5216 = vmatpush1.msra.mxu0 0.0
    %5217 = vmatprep.subr.mxu0 0.0
    %5218 = vmatpush1.msra.mxu0 0.0
    %5219 = vmatprep.subr.mxu0 0.0
    %5220 = vmatpush1.msra.mxu0 0.0
    %5221 = vmatprep.subr.mxu0 0.0
    %5222 = vmatpush1.msra.mxu0 0.0
    %5223 = vmatprep.subr.mxu0 0.0
    %5224 = vmatpush1.msra.mxu0 0.0
    %5225 = vmatprep.subr.mxu0 0.0
    %5226 = vmatpush1.msra.mxu0 0.0
    %5227 = vmatprep.subr.mxu0 0.0
    %5228 = vmatpush1.msra.mxu0 0.0
    %5229 = vmatprep.subr.mxu0 0.0
    %5230 = vmatpush1.msra.mxu0 0.0
    %5231 = vmatprep.subr.mxu0 0.0
    %5232 = vmatpush1.msra.mxu0 0.0
    %5233 = vmatprep.subr.mxu0 0.0
    %5234 = vmatpush1.msra.mxu0 0.0
    %5235 = vmatprep.subr.mxu0 0.0
    %5236 = vmatpush1.msra.mxu0 0.0
    %5237 = vmatprep.subr.mxu0 0.0
    %5238 = vmatpush1.msra.mxu0 0.0
    %5239 = vmatprep.subr.mxu0 0.0
    %5240 = vmatpush1.msra.mxu0 0.0
    %5241 = vmatprep.subr.mxu0 0.0
    %5242 = vmatpush1.msra.mxu0 0.0
    %5243 = vmatprep.subr.mxu0 0.0
    %5244 = vmatpush1.msra.mxu0 0.0
    %5245 = vmatprep.subr.mxu0 0.0
    %5246 = vmatpush1.msra.mxu0 0.0
    %5247 = vmatprep.subr.mxu0 0.0
    %5248 = vmatpush1.msra.mxu0 0.0
    %5249 = vmatprep.subr.mxu0 0.0
    %5250 = vmatpush1.msra.mxu0 0.0
    %5251 = vmatprep.subr.mxu0 0.0
    %5252 = vmatpush1.msra.mxu0 0.0
    %5253 = vmatprep.subr.mxu0 0.0
    %5254 = vmatpush1.msra.mxu0 0.0
    %5255 = vmatprep.subr.mxu0 0.0
    %5256 = vmatpush1.msra.mxu0 0.0
    %5257 = vmatprep.subr.mxu0 0.0
    %5258 = vmatpush1.msra.mxu0 0.0
    %5259 = vmatprep.mubr.f32.mxu0 0.0
    %v5260 = vand.u32 %v4652, 4294901760
    %5261 = vmatmul.mubr.f32.gmra.mrb[0].mxu0 %v5260
    %v5262 = vpop.f32.mrb[0].mxu0
    %v5263 = vadd.f32 %v5133, %v5262
    %v5264 = vpop.f32.mrb[0].mxu0
    %5265 = vmatprep.mubr.f32.mxu0 0.0
    %v5266 = vand.u32 %v4655, 4294901760
    %5267 = vmatmul.mubr.f32.gmra.mrb[0].mxu0 %v5266
    %v5268 = vpop.f32.mrb[0].mxu0
    %v5269 = vadd.f32 %v5141, %v5268
    %v5270 = vpop.f32.mrb[0].mxu0
    %5271 = vmatprep.mubr.f32.mxu0 0.0
    %v5272 = vand.u32 %v4658, 4294901760
    %5273 = vmatmul.mubr.f32.gmra.mrb[0].mxu0 %v5272
    %v5274 = vpop.f32.mrb[0].mxu0
    %v5275 = vadd.f32 %v5149, %v5274
    %v5276 = vpop.f32.mrb[0].mxu0
    %5277 = vmatprep.mubr.f32.mxu0 0.0
    %v5278 = vand.u32 %v4661, 4294901760
    %5279 = vmatmul.mubr.f32.gmra.mrb[0].mxu0 %v5278
    %v5280 = vpop.f32.mrb[0].mxu0
    %v5281 = vadd.f32 %v5157, %v5280
    %v5282 = vpop.f32.mrb[0].mxu0
    %5283 = vmatprep.mubr.f32.mxu0 0.0
    %v5284 = vand.u32 %v4664, 4294901760
    %5285 = vmatmul.mubr.f32.gmra.mrb[0].mxu0 %v5284
    %v5286 = vpop.f32.mrb[0].mxu0
    %v5287 = vadd.f32 %v5165, %v5286
    %v5288 = vpop.f32.mrb[0].mxu0
    %5289 = vmatprep.mubr.f32.mxu0 0.0
    %v5290 = vand.u32 %v4667, 4294901760
    %5291 = vmatmul.mubr.f32.gmra.mrb[0].mxu0 %v5290
    %v5292 = vpop.f32.mrb[0].mxu0
    %v5293 = vadd.f32 %v5173, %v5292
    %v5294 = vpop.f32.mrb[0].mxu0
    %5295 = vmatprep.mubr.f32.mxu0 0.0
    %v5296 = vand.u32 %v4670, 4294901760
    %5297 = vmatmul.mubr.f32.gmra.mrb[0].mxu0 %v5296
    %v5298 = vpop.f32.mrb[0].mxu0
    %v5299 = vadd.f32 %v5181, %v5298
    %v5300 = vpop.f32.mrb[0].mxu0
    %5301 = vmatprep.mubr.f32.mxu0 0.0
    %v5302 = vand.u32 %v4673, 4294901760
    %5303 = vmatmul.mubr.f32.gmra.mrb[0].mxu0 %v5302
    %v5304 = vpop.f32.mrb[0].mxu0
    %v5305 = vadd.f32 %v5189, %v5304
    %v5306 = vpop.f32.mrb[0].mxu0
    %5307 = vdwg.mxu0
    %5308 = vmatprep.subr.mxu0 0.0
    %v5309 = vand.u32 %v1127, 4294901760
    %5310 = vmatpush1.msra.mxu0 %v5309
    %5311 = vmatprep.subr.mxu0 0.0
    %5312 = vmatpush1.msra.mxu0 0.0
    %5313 = vmatprep.subr.mxu0 0.0
    %5314 = vmatpush1.msra.mxu0 0.0
    %5315 = vmatprep.subr.mxu0 0.0
    %5316 = vmatpush1.msra.mxu0 0.0
    %5317 = vmatprep.subr.mxu0 0.0
    %5318 = vmatpush1.msra.mxu0 0.0
    %5319 = vmatprep.subr.mxu0 0.0
    %5320 = vmatpush1.msra.mxu0 0.0
    %5321 = vmatprep.subr.mxu0 0.0
    %5322 = vmatpush1.msra.mxu0 0.0
    %5323 = vmatprep.subr.mxu0 0.0
    %5324 = vmatpush1.msra.mxu0 0.0
    %5325 = vmatprep.subr.mxu0 0.0
    %5326 = vmatpush1.msra.mxu0 0.0
    %5327 = vmatprep.subr.mxu0 0.0
    %5328 = vmatpush1.msra.mxu0 0.0
    %5329 = vmatprep.subr.mxu0 0.0
    %5330 = vmatpush1.msra.mxu0 0.0
    %5331 = vmatprep.subr.mxu0 0.0
    %5332 = vmatpush1.msra.mxu0 0.0
    %5333 = vmatprep.subr.mxu0 0.0
    %5334 = vmatpush1.msra.mxu0 0.0
    %5335 = vmatprep.subr.mxu0 0.0
    %5336 = vmatpush1.msra.mxu0 0.0
    %5337 = vmatprep.subr.mxu0 0.0
    %5338 = vmatpush1.msra.mxu0 0.0
    %5339 = vmatprep.subr.mxu0 0.0
    %5340 = vmatpush1.msra.mxu0 0.0
    %5341 = vmatprep.subr.mxu0 0.0
    %5342 = vmatpush1.msra.mxu0 0.0
    %5343 = vmatprep.subr.mxu0 0.0
    %5344 = vmatpush1.msra.mxu0 0.0
    %5345 = vmatprep.subr.mxu0 0.0
    %5346 = vmatpush1.msra.mxu0 0.0
    %5347 = vmatprep.subr.mxu0 0.0
    %5348 = vmatpush1.msra.mxu0 0.0
    %5349 = vmatprep.subr.mxu0 0.0
    %5350 = vmatpush1.msra.mxu0 0.0
    %5351 = vmatprep.subr.mxu0 0.0
    %5352 = vmatpush1.msra.mxu0 0.0
    %5353 = vmatprep.subr.mxu0 0.0
    %5354 = vmatpush1.msra.mxu0 0.0
    %5355 = vmatprep.subr.mxu0 0.0
    %5356 = vmatpush1.msra.mxu0 0.0
    %5357 = vmatprep.subr.mxu0 0.0
    %5358 = vmatpush1.msra.mxu0 0.0
    %5359 = vmatprep.subr.mxu0 0.0
    %5360 = vmatpush1.msra.mxu0 0.0
    %5361 = vmatprep.subr.mxu0 0.0
    %5362 = vmatpush1.msra.mxu0 0.0
    %5363 = vmatprep.subr.mxu0 0.0
    %5364 = vmatpush1.msra.mxu0 0.0
    %5365 = vmatprep.subr.mxu0 0.0
    %5366 = vmatpush1.msra.mxu0 0.0
    %5367 = vmatprep.subr.mxu0 0.0
    %5368 = vmatpush1.msra.mxu0 0.0
    %5369 = vmatprep.subr.mxu0 0.0
    %5370 = vmatpush1.msra.mxu0 0.0
    %5371 = vmatprep.subr.mxu0 0.0
    %5372 = vmatpush1.msra.mxu0 0.0
    %5373 = vmatprep.mubr.f32.mxu0 0.0
    %v5374 = vand.u32 %v4652, 4294901760
    %5375 = vmatmul.mubr.f32.gmra.mrb[0].mxu0 %v5374
    %v5376 = vpop.f32.mrb[0].mxu0
    %v5377 = vadd.f32 %v5263, %v5376
    %v5378 = vpop.f32.mrb[0].mxu0
    %5379 = vmatprep.mubr.f32.mxu0 0.0
    %v5380 = vand.u32 %v4655, 4294901760
    %5381 = vmatmul.mubr.f32.gmra.mrb[0].mxu0 %v5380
    %v5382 = vpop.f32.mrb[0].mxu0
    %v5383 = vadd.f32 %v5269, %v5382
    %v5384 = vpop.f32.mrb[0].mxu0
    %5385 = vmatprep.mubr.f32.mxu0 0.0
    %v5386 = vand.u32 %v4658, 4294901760
    %5387 = vmatmul.mubr.f32.gmra.mrb[0].mxu0 %v5386
    %v5388 = vpop.f32.mrb[0].mxu0
    %v5389 = vadd.f32 %v5275, %v5388
    %v5390 = vpop.f32.mrb[0].mxu0
    %5391 = vmatprep.mubr.f32.mxu0 0.0
    %v5392 = vand.u32 %v4661, 4294901760
    %5393 = vmatmul.mubr.f32.gmra.mrb[0].mxu0 %v5392
    %v5394 = vpop.f32.mrb[0].mxu0
    %v5395 = vadd.f32 %v5281, %v5394
    %v5396 = vpop.f32.mrb[0].mxu0
    %5397 = vmatprep.mubr.f32.mxu0 0.0
    %v5398 = vand.u32 %v4664, 4294901760
    %5399 = vmatmul.mubr.f32.gmra.mrb[0].mxu0 %v5398
    %v5400 = vpop.f32.mrb[0].mxu0
    %v5401 = vadd.f32 %v5287, %v5400
    %v5402 = vpop.f32.mrb[0].mxu0
    %5403 = vmatprep.mubr.f32.mxu0 0.0
    %v5404 = vand.u32 %v4667, 4294901760
    %5405 = vmatmul.mubr.f32.gmra.mrb[0].mxu0 %v5404
    %v5406 = vpop.f32.mrb[0].mxu0
    %v5407 = vadd.f32 %v5293, %v5406
    %v5408 = vpop.f32.mrb[0].mxu0
    %5409 = vmatprep.mubr.f32.mxu0 0.0
    %v5410 = vand.u32 %v4670, 4294901760
    %5411 = vmatmul.mubr.f32.gmra.mrb[0].mxu0 %v5410
    %v5412 = vpop.f32.mrb[0].mxu0
    %v5413 = vadd.f32 %v5299, %v5412
    %v5414 = vpop.f32.mrb[0].mxu0
    %5415 = vmatprep.mubr.f32.mxu0 0.0
    %v5416 = vand.u32 %v4673, 4294901760
    %5417 = vmatmul.mubr.f32.gmra.mrb[0].mxu0 %v5416
    %v5418 = vpop.f32.mrb[0].mxu0
    %v5419 = vadd.f32 %v5305, %v5418
    %v5420 = vpop.f32.mrb[0].mxu0
    %5421 = vdwg.mxu0
    %v5423 = vsel %vm1100, %v4590, 0
    %v5426 = vsel %vm1100, %v4596, 0
    %v5429 = vsel %vm1100, %v4602, 0
    %v5432 = vsel %vm1100, %v4608, 0
    %v5435 = vsel %vm1100, %v4614, 0
    %v5438 = vsel %vm1100, %v4620, 0
    %v5441 = vsel %vm1100, %v4626, 0
    %v5444 = vsel %vm1100, %v4632, 0
    %5446 = vmatprep.subr.mxu0 0.0
    %v5447 = vand.u32 %v1127, 4294901760
    %5448 = vmatpush1.msra.mxu0 %v5447
    %5449 = vmatprep.subr.mxu0 0.0
    %5450 = vmatpush1.msra.mxu0 0.0
    %5451 = vmatprep.subr.mxu0 0.0
    %5452 = vmatpush1.msra.mxu0 0.0
    %5453 = vmatprep.subr.mxu0 0.0
    %5454 = vmatpush1.msra.mxu0 0.0
    %5455 = vmatprep.subr.mxu0 0.0
    %5456 = vmatpush1.msra.mxu0 0.0
    %5457 = vmatprep.subr.mxu0 0.0
    %5458 = vmatpush1.msra.mxu0 0.0
    %5459 = vmatprep.subr.mxu0 0.0
    %5460 = vmatpush1.msra.mxu0 0.0
    %5461 = vmatprep.subr.mxu0 0.0
    %5462 = vmatpush1.msra.mxu0 0.0
    %5463 = vmatprep.subr.mxu0 0.0
    %5464 = vmatpush1.msra.mxu0 0.0
    %5465 = vmatprep.subr.mxu0 0.0
    %5466 = vmatpush1.msra.mxu0 0.0
    %5467 = vmatprep.subr.mxu0 0.0
    %5468 = vmatpush1.msra.mxu0 0.0
    %5469 = vmatprep.subr.mxu0 0.0
    %5470 = vmatpush1.msra.mxu0 0.0
    %5471 = vmatprep.subr.mxu0 0.0
    %5472 = vmatpush1.msra.mxu0 0.0
    %5473 = vmatprep.subr.mxu0 0.0
    %5474 = vmatpush1.msra.mxu0 0.0
    %5475 = vmatprep.subr.mxu0 0.0
    %5476 = vmatpush1.msra.mxu0 0.0
    %5477 = vmatprep.subr.mxu0 0.0
    %5478 = vmatpush1.msra.mxu0 0.0
    %5479 = vmatprep.subr.mxu0 0.0
    %5480 = vmatpush1.msra.mxu0 0.0
    %5481 = vmatprep.subr.mxu0 0.0
    %5482 = vmatpush1.msra.mxu0 0.0
    %5483 = vmatprep.subr.mxu0 0.0
    %5484 = vmatpush1.msra.mxu0 0.0
    %5485 = vmatprep.subr.mxu0 0.0
    %5486 = vmatpush1.msra.mxu0 0.0
    %5487 = vmatprep.subr.mxu0 0.0
    %5488 = vmatpush1.msra.mxu0 0.0
    %5489 = vmatprep.subr.mxu0 0.0
    %5490 = vmatpush1.msra.mxu0 0.0
    %5491 = vmatprep.subr.mxu0 0.0
    %5492 = vmatpush1.msra.mxu0 0.0
    %5493 = vmatprep.subr.mxu0 0.0
    %5494 = vmatpush1.msra.mxu0 0.0
    %5495 = vmatprep.subr.mxu0 0.0
    %5496 = vmatpush1.msra.mxu0 0.0
    %5497 = vmatprep.subr.mxu0 0.0
    %5498 = vmatpush1.msra.mxu0 0.0
    %5499 = vmatprep.subr.mxu0 0.0
    %5500 = vmatpush1.msra.mxu0 0.0
    %5501 = vmatprep.subr.mxu0 0.0
    %5502 = vmatpush1.msra.mxu0 0.0
    %5503 = vmatprep.subr.mxu0 0.0
    %5504 = vmatpush1.msra.mxu0 0.0
    %5505 = vmatprep.subr.mxu0 0.0
    %5506 = vmatpush1.msra.mxu0 0.0
    %5507 = vmatprep.subr.mxu0 0.0
    %5508 = vmatpush1.msra.mxu0 0.0
    %5509 = vmatprep.subr.mxu0 0.0
    %5510 = vmatpush1.msra.mxu0 0.0
    %5511 = vmatprep.mubr.f32.mxu0 0.0
    %v5512 = vand.u32 %v5423, 4294901760
    %v5513 = vsub.f32 %v5423, %v5512
    %v5514 = vand.u32 %v5513, 4294901760
    %v5515 = vsub.f32 %v5513, %v5514
    %v5516 = vand.u32 %v5515, 4294901760
    %5517 = vmatmul.mubr.f32.gmra.mrb[0].mxu0 %v5516
    %v5518 = vpop.f32.mrb[0].mxu0
    %v5519 = vadd.f32 0.0, %v5518
    %v5520 = vpop.f32.mrb[0].mxu0
    %5521 = vmatprep.mubr.f32.mxu0 0.0
    %v5522 = vand.u32 %v5426, 4294901760
    %v5523 = vsub.f32 %v5426, %v5522
    %v5524 = vand.u32 %v5523, 4294901760
    %v5525 = vsub.f32 %v5523, %v5524
    %v5526 = vand.u32 %v5525, 4294901760
    %5527 = vmatmul.mubr.f32.gmra.mrb[0].mxu0 %v5526
    %v5528 = vpop.f32.mrb[0].mxu0
    %v5529 = vadd.f32 0.0, %v5528
    %v5530 = vpop.f32.mrb[0].mxu0
    %5531 = vmatprep.mubr.f32.mxu0 0.0
    %v5532 = vand.u32 %v5429, 4294901760
    %v5533 = vsub.f32 %v5429, %v5532
    %v5534 = vand.u32 %v5533, 4294901760
    %v5535 = vsub.f32 %v5533, %v5534
    %v5536 = vand.u32 %v5535, 4294901760
    %5537 = vmatmul.mubr.f32.gmra.mrb[0].mxu0 %v5536
    %v5538 = vpop.f32.mrb[0].mxu0
    %v5539 = vadd.f32 0.0, %v5538
    %v5540 = vpop.f32.mrb[0].mxu0
    %5541 = vmatprep.mubr.f32.mxu0 0.0
    %v5542 = vand.u32 %v5432, 4294901760
    %v5543 = vsub.f32 %v5432, %v5542
    %v5544 = vand.u32 %v5543, 4294901760
    %v5545 = vsub.f32 %v5543, %v5544
    %v5546 = vand.u32 %v5545, 4294901760
    %5547 = vmatmul.mubr.f32.gmra.mrb[0].mxu0 %v5546
    %v5548 = vpop.f32.mrb[0].mxu0
    %v5549 = vadd.f32 0.0, %v5548
    %v5550 = vpop.f32.mrb[0].mxu0
    %5551 = vmatprep.mubr.f32.mxu0 0.0
    %v5552 = vand.u32 %v5435, 4294901760
    %v5553 = vsub.f32 %v5435, %v5552
    %v5554 = vand.u32 %v5553, 4294901760
    %v5555 = vsub.f32 %v5553, %v5554
    %v5556 = vand.u32 %v5555, 4294901760
    %5557 = vmatmul.mubr.f32.gmra.mrb[0].mxu0 %v5556
    %v5558 = vpop.f32.mrb[0].mxu0
    %v5559 = vadd.f32 0.0, %v5558
    %v5560 = vpop.f32.mrb[0].mxu0
    %5561 = vmatprep.mubr.f32.mxu0 0.0
    %v5562 = vand.u32 %v5438, 4294901760
    %v5563 = vsub.f32 %v5438, %v5562
    %v5564 = vand.u32 %v5563, 4294901760
    %v5565 = vsub.f32 %v5563, %v5564
    %v5566 = vand.u32 %v5565, 4294901760
    %5567 = vmatmul.mubr.f32.gmra.mrb[0].mxu0 %v5566
    %v5568 = vpop.f32.mrb[0].mxu0
    %v5569 = vadd.f32 0.0, %v5568
    %v5570 = vpop.f32.mrb[0].mxu0
    %5571 = vmatprep.mubr.f32.mxu0 0.0
    %v5572 = vand.u32 %v5441, 4294901760
    %v5573 = vsub.f32 %v5441, %v5572
    %v5574 = vand.u32 %v5573, 4294901760
    %v5575 = vsub.f32 %v5573, %v5574
    %v5576 = vand.u32 %v5575, 4294901760
    %5577 = vmatmul.mubr.f32.gmra.mrb[0].mxu0 %v5576
    %v5578 = vpop.f32.mrb[0].mxu0
    %v5579 = vadd.f32 0.0, %v5578
    %v5580 = vpop.f32.mrb[0].mxu0
    %5581 = vmatprep.mubr.f32.mxu0 0.0
    %v5582 = vand.u32 %v5444, 4294901760
    %v5583 = vsub.f32 %v5444, %v5582
    %v5584 = vand.u32 %v5583, 4294901760
    %v5585 = vsub.f32 %v5583, %v5584
    %v5586 = vand.u32 %v5585, 4294901760
    %5587 = vmatmul.mubr.f32.gmra.mrb[0].mxu0 %v5586
    %v5588 = vpop.f32.mrb[0].mxu0
    %v5589 = vadd.f32 0.0, %v5588
    %v5590 = vpop.f32.mrb[0].mxu0
    %5591 = vdwg.mxu0
    %5592 = vmatprep.subr.mxu0 0.0
    %v5593 = vand.u32 %v1127, 4294901760
    %v5594 = vsub.f32 %v1127, %v5593
    %v5595 = vand.u32 %v5594, 4294901760
    %v5596 = vsub.f32 %v5594, %v5595
    %v5597 = vand.u32 %v5596, 4294901760
    %5598 = vmatpush1.msra.mxu0 %v5597
    %5599 = vmatprep.subr.mxu0 0.0
    %5600 = vmatpush1.msra.mxu0 0.0
    %5601 = vmatprep.subr.mxu0 0.0
    %5602 = vmatpush1.msra.mxu0 0.0
    %5603 = vmatprep.subr.mxu0 0.0
    %5604 = vmatpush1.msra.mxu0 0.0
    %5605 = vmatprep.subr.mxu0 0.0
    %5606 = vmatpush1.msra.mxu0 0.0
    %5607 = vmatprep.subr.mxu0 0.0
    %5608 = vmatpush1.msra.mxu0 0.0
    %5609 = vmatprep.subr.mxu0 0.0
    %5610 = vmatpush1.msra.mxu0 0.0
    %5611 = vmatprep.subr.mxu0 0.0
    %5612 = vmatpush1.msra.mxu0 0.0
    %5613 = vmatprep.subr.mxu0 0.0
    %5614 = vmatpush1.msra.mxu0 0.0
    %5615 = vmatprep.subr.mxu0 0.0
    %5616 = vmatpush1.msra.mxu0 0.0
    %5617 = vmatprep.subr.mxu0 0.0
    %5618 = vmatpush1.msra.mxu0 0.0
    %5619 = vmatprep.subr.mxu0 0.0
    %5620 = vmatpush1.msra.mxu0 0.0
    %5621 = vmatprep.subr.mxu0 0.0
    %5622 = vmatpush1.msra.mxu0 0.0
    %5623 = vmatprep.subr.mxu0 0.0
    %5624 = vmatpush1.msra.mxu0 0.0
    %5625 = vmatprep.subr.mxu0 0.0
    %5626 = vmatpush1.msra.mxu0 0.0
    %5627 = vmatprep.subr.mxu0 0.0
    %5628 = vmatpush1.msra.mxu0 0.0
    %5629 = vmatprep.subr.mxu0 0.0
    %5630 = vmatpush1.msra.mxu0 0.0
    %5631 = vmatprep.subr.mxu0 0.0
    %5632 = vmatpush1.msra.mxu0 0.0
    %5633 = vmatprep.subr.mxu0 0.0
    %5634 = vmatpush1.msra.mxu0 0.0
    %5635 = vmatprep.subr.mxu0 0.0
    %5636 = vmatpush1.msra.mxu0 0.0
    %5637 = vmatprep.subr.mxu0 0.0
    %5638 = vmatpush1.msra.mxu0 0.0
    %5639 = vmatprep.subr.mxu0 0.0
    %5640 = vmatpush1.msra.mxu0 0.0
    %5641 = vmatprep.subr.mxu0 0.0
    %5642 = vmatpush1.msra.mxu0 0.0
    %5643 = vmatprep.subr.mxu0 0.0
    %5644 = vmatpush1.msra.mxu0 0.0
    %5645 = vmatprep.subr.mxu0 0.0
    %5646 = vmatpush1.msra.mxu0 0.0
    %5647 = vmatprep.subr.mxu0 0.0
    %5648 = vmatpush1.msra.mxu0 0.0
    %5649 = vmatprep.subr.mxu0 0.0
    %5650 = vmatpush1.msra.mxu0 0.0
    %5651 = vmatprep.subr.mxu0 0.0
    %5652 = vmatpush1.msra.mxu0 0.0
    %5653 = vmatprep.subr.mxu0 0.0
    %5654 = vmatpush1.msra.mxu0 0.0
    %5655 = vmatprep.subr.mxu0 0.0
    %5656 = vmatpush1.msra.mxu0 0.0
    %5657 = vmatprep.subr.mxu0 0.0
    %5658 = vmatpush1.msra.mxu0 0.0
    %5659 = vmatprep.subr.mxu0 0.0
    %5660 = vmatpush1.msra.mxu0 0.0
    %5661 = vmatprep.mubr.f32.mxu0 0.0
    %v5662 = vand.u32 %v5423, 4294901760
    %5663 = vmatmul.mubr.f32.gmra.mrb[0].mxu0 %v5662
    %v5664 = vpop.f32.mrb[0].mxu0
    %v5665 = vadd.f32 %v5519, %v5664
    %v5666 = vpop.f32.mrb[0].mxu0
    %5667 = vmatprep.mubr.f32.mxu0 0.0
    %v5668 = vand.u32 %v5426, 4294901760
    %5669 = vmatmul.mubr.f32.gmra.mrb[0].mxu0 %v5668
    %v5670 = vpop.f32.mrb[0].mxu0
    %v5671 = vadd.f32 %v5529, %v5670
    %v5672 = vpop.f32.mrb[0].mxu0
    %5673 = vmatprep.mubr.f32.mxu0 0.0
    %v5674 = vand.u32 %v5429, 4294901760
    %5675 = vmatmul.mubr.f32.gmra.mrb[0].mxu0 %v5674
    %v5676 = vpop.f32.mrb[0].mxu0
    %v5677 = vadd.f32 %v5539, %v5676
    %v5678 = vpop.f32.mrb[0].mxu0
    %5679 = vmatprep.mubr.f32.mxu0 0.0
    %v5680 = vand.u32 %v5432, 4294901760
    %5681 = vmatmul.mubr.f32.gmra.mrb[0].mxu0 %v5680
    %v5682 = vpop.f32.mrb[0].mxu0
    %v5683 = vadd.f32 %v5549, %v5682
    %v5684 = vpop.f32.mrb[0].mxu0
    %5685 = vmatprep.mubr.f32.mxu0 0.0
    %v5686 = vand.u32 %v5435, 4294901760
    %5687 = vmatmul.mubr.f32.gmra.mrb[0].mxu0 %v5686
    %v5688 = vpop.f32.mrb[0].mxu0
    %v5689 = vadd.f32 %v5559, %v5688
    %v5690 = vpop.f32.mrb[0].mxu0
    %5691 = vmatprep.mubr.f32.mxu0 0.0
    %v5692 = vand.u32 %v5438, 4294901760
    %5693 = vmatmul.mubr.f32.gmra.mrb[0].mxu0 %v5692
    %v5694 = vpop.f32.mrb[0].mxu0
    %v5695 = vadd.f32 %v5569, %v5694
    %v5696 = vpop.f32.mrb[0].mxu0
    %5697 = vmatprep.mubr.f32.mxu0 0.0
    %v5698 = vand.u32 %v5441, 4294901760
    %5699 = vmatmul.mubr.f32.gmra.mrb[0].mxu0 %v5698
    %v5700 = vpop.f32.mrb[0].mxu0
    %v5701 = vadd.f32 %v5579, %v5700
    %v5702 = vpop.f32.mrb[0].mxu0
    %5703 = vmatprep.mubr.f32.mxu0 0.0
    %v5704 = vand.u32 %v5444, 4294901760
    %5705 = vmatmul.mubr.f32.gmra.mrb[0].mxu0 %v5704
    %v5706 = vpop.f32.mrb[0].mxu0
    %v5707 = vadd.f32 %v5589, %v5706
    %v5708 = vpop.f32.mrb[0].mxu0
    %5709 = vdwg.mxu0
    %5710 = vmatprep.subr.mxu0 0.0
    %v5711 = vand.u32 %v1127, 4294901760
    %v5712 = vsub.f32 %v1127, %v5711
    %5713 = vmatpush1.msra.mxu0 %v5712
    %5714 = vmatprep.subr.mxu0 0.0
    %5715 = vmatpush1.msra.mxu0 0.0
    %5716 = vmatprep.subr.mxu0 0.0
    %5717 = vmatpush1.msra.mxu0 0.0
    %5718 = vmatprep.subr.mxu0 0.0
    %5719 = vmatpush1.msra.mxu0 0.0
    %5720 = vmatprep.subr.mxu0 0.0
    %5721 = vmatpush1.msra.mxu0 0.0
    %5722 = vmatprep.subr.mxu0 0.0
    %5723 = vmatpush1.msra.mxu0 0.0
    %5724 = vmatprep.subr.mxu0 0.0
    %5725 = vmatpush1.msra.mxu0 0.0
    %5726 = vmatprep.subr.mxu0 0.0
    %5727 = vmatpush1.msra.mxu0 0.0
    %5728 = vmatprep.subr.mxu0 0.0
    %5729 = vmatpush1.msra.mxu0 0.0
    %5730 = vmatprep.subr.mxu0 0.0
    %5731 = vmatpush1.msra.mxu0 0.0
    %5732 = vmatprep.subr.mxu0 0.0
    %5733 = vmatpush1.msra.mxu0 0.0
    %5734 = vmatprep.subr.mxu0 0.0
    %5735 = vmatpush1.msra.mxu0 0.0
    %5736 = vmatprep.subr.mxu0 0.0
    %5737 = vmatpush1.msra.mxu0 0.0
    %5738 = vmatprep.subr.mxu0 0.0
    %5739 = vmatpush1.msra.mxu0 0.0
    %5740 = vmatprep.subr.mxu0 0.0
    %5741 = vmatpush1.msra.mxu0 0.0
    %5742 = vmatprep.subr.mxu0 0.0
    %5743 = vmatpush1.msra.mxu0 0.0
    %5744 = vmatprep.subr.mxu0 0.0
    %5745 = vmatpush1.msra.mxu0 0.0
    %5746 = vmatprep.subr.mxu0 0.0
    %5747 = vmatpush1.msra.mxu0 0.0
    %5748 = vmatprep.subr.mxu0 0.0
    %5749 = vmatpush1.msra.mxu0 0.0
    %5750 = vmatprep.subr.mxu0 0.0
    %5751 = vmatpush1.msra.mxu0 0.0
    %5752 = vmatprep.subr.mxu0 0.0
    %5753 = vmatpush1.msra.mxu0 0.0
    %5754 = vmatprep.subr.mxu0 0.0
    %5755 = vmatpush1.msra.mxu0 0.0
    %5756 = vmatprep.subr.mxu0 0.0
    %5757 = vmatpush1.msra.mxu0 0.0
    %5758 = vmatprep.subr.mxu0 0.0
    %5759 = vmatpush1.msra.mxu0 0.0
    %5760 = vmatprep.subr.mxu0 0.0
    %5761 = vmatpush1.msra.mxu0 0.0
    %5762 = vmatprep.subr.mxu0 0.0
    %5763 = vmatpush1.msra.mxu0 0.0
    %5764 = vmatprep.subr.mxu0 0.0
    %5765 = vmatpush1.msra.mxu0 0.0
    %5766 = vmatprep.subr.mxu0 0.0
    %5767 = vmatpush1.msra.mxu0 0.0
    %5768 = vmatprep.subr.mxu0 0.0
    %5769 = vmatpush1.msra.mxu0 0.0
    %5770 = vmatprep.subr.mxu0 0.0
    %5771 = vmatpush1.msra.mxu0 0.0
    %5772 = vmatprep.subr.mxu0 0.0
    %5773 = vmatpush1.msra.mxu0 0.0
    %5774 = vmatprep.subr.mxu0 0.0
    %5775 = vmatpush1.msra.mxu0 0.0
    %5776 = vmatprep.mubr.f32.mxu0 0.0
    %v5777 = vand.u32 %v5423, 4294901760
    %v5778 = vsub.f32 %v5423, %v5777
    %5779 = vmatmul.mubr.f32.gmra.mrb[0].mxu0 %v5778
    %v5780 = vpop.f32.mrb[0].mxu0
    %v5781 = vadd.f32 %v5665, %v5780
    %v5782 = vpop.f32.mrb[0].mxu0
    %5783 = vmatprep.mubr.f32.mxu0 0.0
    %v5784 = vand.u32 %v5426, 4294901760
    %v5785 = vsub.f32 %v5426, %v5784
    %5786 = vmatmul.mubr.f32.gmra.mrb[0].mxu0 %v5785
    %v5787 = vpop.f32.mrb[0].mxu0
    %v5788 = vadd.f32 %v5671, %v5787
    %v5789 = vpop.f32.mrb[0].mxu0
    %5790 = vmatprep.mubr.f32.mxu0 0.0
    %v5791 = vand.u32 %v5429, 4294901760
    %v5792 = vsub.f32 %v5429, %v5791
    %5793 = vmatmul.mubr.f32.gmra.mrb[0].mxu0 %v5792
    %v5794 = vpop.f32.mrb[0].mxu0
    %v5795 = vadd.f32 %v5677, %v5794
    %v5796 = vpop.f32.mrb[0].mxu0
    %5797 = vmatprep.mubr.f32.mxu0 0.0
    %v5798 = vand.u32 %v5432, 4294901760
    %v5799 = vsub.f32 %v5432, %v5798
    %5800 = vmatmul.mubr.f32.gmra.mrb[0].mxu0 %v5799
    %v5801 = vpop.f32.mrb[0].mxu0
    %v5802 = vadd.f32 %v5683, %v5801
    %v5803 = vpop.f32.mrb[0].mxu0
    %5804 = vmatprep.mubr.f32.mxu0 0.0
    %v5805 = vand.u32 %v5435, 4294901760
    %v5806 = vsub.f32 %v5435, %v5805
    %5807 = vmatmul.mubr.f32.gmra.mrb[0].mxu0 %v5806
    %v5808 = vpop.f32.mrb[0].mxu0
    %v5809 = vadd.f32 %v5689, %v5808
    %v5810 = vpop.f32.mrb[0].mxu0
    %5811 = vmatprep.mubr.f32.mxu0 0.0
    %v5812 = vand.u32 %v5438, 4294901760
    %v5813 = vsub.f32 %v5438, %v5812
    %5814 = vmatmul.mubr.f32.gmra.mrb[0].mxu0 %v5813
    %v5815 = vpop.f32.mrb[0].mxu0
    %v5816 = vadd.f32 %v5695, %v5815
    %v5817 = vpop.f32.mrb[0].mxu0
    %5818 = vmatprep.mubr.f32.mxu0 0.0
    %v5819 = vand.u32 %v5441, 4294901760
    %v5820 = vsub.f32 %v5441, %v5819
    %5821 = vmatmul.mubr.f32.gmra.mrb[0].mxu0 %v5820
    %v5822 = vpop.f32.mrb[0].mxu0
    %v5823 = vadd.f32 %v5701, %v5822
    %v5824 = vpop.f32.mrb[0].mxu0
    %5825 = vmatprep.mubr.f32.mxu0 0.0
    %v5826 = vand.u32 %v5444, 4294901760
    %v5827 = vsub.f32 %v5444, %v5826
    %5828 = vmatmul.mubr.f32.gmra.mrb[0].mxu0 %v5827
    %v5829 = vpop.f32.mrb[0].mxu0
    %v5830 = vadd.f32 %v5707, %v5829
    %v5831 = vpop.f32.mrb[0].mxu0
    %5832 = vdwg.mxu0
    %5833 = vmatprep.subr.mxu0 0.0
    %v5834 = vand.u32 %v1127, 4294901760
    %5835 = vmatpush1.msra.mxu0 %v5834
    %5836 = vmatprep.subr.mxu0 0.0
    %5837 = vmatpush1.msra.mxu0 0.0
    %5838 = vmatprep.subr.mxu0 0.0
    %5839 = vmatpush1.msra.mxu0 0.0
    %5840 = vmatprep.subr.mxu0 0.0
    %5841 = vmatpush1.msra.mxu0 0.0
    %5842 = vmatprep.subr.mxu0 0.0
    %5843 = vmatpush1.msra.mxu0 0.0
    %5844 = vmatprep.subr.mxu0 0.0
    %5845 = vmatpush1.msra.mxu0 0.0
    %5846 = vmatprep.subr.mxu0 0.0
    %5847 = vmatpush1.msra.mxu0 0.0
    %5848 = vmatprep.subr.mxu0 0.0
    %5849 = vmatpush1.msra.mxu0 0.0
    %5850 = vmatprep.subr.mxu0 0.0
    %5851 = vmatpush1.msra.mxu0 0.0
    %5852 = vmatprep.subr.mxu0 0.0
    %5853 = vmatpush1.msra.mxu0 0.0
    %5854 = vmatprep.subr.mxu0 0.0
    %5855 = vmatpush1.msra.mxu0 0.0
    %5856 = vmatprep.subr.mxu0 0.0
    %5857 = vmatpush1.msra.mxu0 0.0
    %5858 = vmatprep.subr.mxu0 0.0
    %5859 = vmatpush1.msra.mxu0 0.0
    %5860 = vmatprep.subr.mxu0 0.0
    %5861 = vmatpush1.msra.mxu0 0.0
    %5862 = vmatprep.subr.mxu0 0.0
    %5863 = vmatpush1.msra.mxu0 0.0
    %5864 = vmatprep.subr.mxu0 0.0
    %5865 = vmatpush1.msra.mxu0 0.0
    %5866 = vmatprep.subr.mxu0 0.0
    %5867 = vmatpush1.msra.mxu0 0.0
    %5868 = vmatprep.subr.mxu0 0.0
    %5869 = vmatpush1.msra.mxu0 0.0
    %5870 = vmatprep.subr.mxu0 0.0
    %5871 = vmatpush1.msra.mxu0 0.0
    %5872 = vmatprep.subr.mxu0 0.0
    %5873 = vmatpush1.msra.mxu0 0.0
    %5874 = vmatprep.subr.mxu0 0.0
    %5875 = vmatpush1.msra.mxu0 0.0
    %5876 = vmatprep.subr.mxu0 0.0
    %5877 = vmatpush1.msra.mxu0 0.0
    %5878 = vmatprep.subr.mxu0 0.0
    %5879 = vmatpush1.msra.mxu0 0.0
    %5880 = vmatprep.subr.mxu0 0.0
    %5881 = vmatpush1.msra.mxu0 0.0
    %5882 = vmatprep.subr.mxu0 0.0
    %5883 = vmatpush1.msra.mxu0 0.0
    %5884 = vmatprep.subr.mxu0 0.0
    %5885 = vmatpush1.msra.mxu0 0.0
    %5886 = vmatprep.subr.mxu0 0.0
    %5887 = vmatpush1.msra.mxu0 0.0
    %5888 = vmatprep.subr.mxu0 0.0
    %5889 = vmatpush1.msra.mxu0 0.0
    %5890 = vmatprep.subr.mxu0 0.0
    %5891 = vmatpush1.msra.mxu0 0.0
    %5892 = vmatprep.subr.mxu0 0.0
    %5893 = vmatpush1.msra.mxu0 0.0
    %5894 = vmatprep.subr.mxu0 0.0
    %5895 = vmatpush1.msra.mxu0 0.0
    %5896 = vmatprep.subr.mxu0 0.0
    %5897 = vmatpush1.msra.mxu0 0.0
    %5898 = vmatprep.mubr.f32.mxu0 0.0
    %v5899 = vand.u32 %v5423, 4294901760
    %v5900 = vsub.f32 %v5423, %v5899
    %v5901 = vand.u32 %v5900, 4294901760
    %5902 = vmatmul.mubr.f32.gmra.mrb[0].mxu0 %v5901
    %v5903 = vpop.f32.mrb[0].mxu0
    %v5904 = vadd.f32 %v5781, %v5903
    %v5905 = vpop.f32.mrb[0].mxu0
    %5906 = vmatprep.mubr.f32.mxu0 0.0
    %v5907 = vand.u32 %v5426, 4294901760
    %v5908 = vsub.f32 %v5426, %v5907
    %v5909 = vand.u32 %v5908, 4294901760
    %5910 = vmatmul.mubr.f32.gmra.mrb[0].mxu0 %v5909
    %v5911 = vpop.f32.mrb[0].mxu0
    %v5912 = vadd.f32 %v5788, %v5911
    %v5913 = vpop.f32.mrb[0].mxu0
    %5914 = vmatprep.mubr.f32.mxu0 0.0
    %v5915 = vand.u32 %v5429, 4294901760
    %v5916 = vsub.f32 %v5429, %v5915
    %v5917 = vand.u32 %v5916, 4294901760
    %5918 = vmatmul.mubr.f32.gmra.mrb[0].mxu0 %v5917
    %v5919 = vpop.f32.mrb[0].mxu0
    %v5920 = vadd.f32 %v5795, %v5919
    %v5921 = vpop.f32.mrb[0].mxu0
    %5922 = vmatprep.mubr.f32.mxu0 0.0
    %v5923 = vand.u32 %v5432, 4294901760
    %v5924 = vsub.f32 %v5432, %v5923
    %v5925 = vand.u32 %v5924, 4294901760
    %5926 = vmatmul.mubr.f32.gmra.mrb[0].mxu0 %v5925
    %v5927 = vpop.f32.mrb[0].mxu0
    %v5928 = vadd.f32 %v5802, %v5927
    %v5929 = vpop.f32.mrb[0].mxu0
    %5930 = vmatprep.mubr.f32.mxu0 0.0
    %v5931 = vand.u32 %v5435, 4294901760
    %v5932 = vsub.f32 %v5435, %v5931
    %v5933 = vand.u32 %v5932, 4294901760
    %5934 = vmatmul.mubr.f32.gmra.mrb[0].mxu0 %v5933
    %v5935 = vpop.f32.mrb[0].mxu0
    %v5936 = vadd.f32 %v5809, %v5935
    %v5937 = vpop.f32.mrb[0].mxu0
    %5938 = vmatprep.mubr.f32.mxu0 0.0
    %v5939 = vand.u32 %v5438, 4294901760
    %v5940 = vsub.f32 %v5438, %v5939
    %v5941 = vand.u32 %v5940, 4294901760
    %5942 = vmatmul.mubr.f32.gmra.mrb[0].mxu0 %v5941
    %v5943 = vpop.f32.mrb[0].mxu0
    %v5944 = vadd.f32 %v5816, %v5943
    %v5945 = vpop.f32.mrb[0].mxu0
    %5946 = vmatprep.mubr.f32.mxu0 0.0
    %v5947 = vand.u32 %v5441, 4294901760
    %v5948 = vsub.f32 %v5441, %v5947
    %v5949 = vand.u32 %v5948, 4294901760
    %5950 = vmatmul.mubr.f32.gmra.mrb[0].mxu0 %v5949
    %v5951 = vpop.f32.mrb[0].mxu0
    %v5952 = vadd.f32 %v5823, %v5951
    %v5953 = vpop.f32.mrb[0].mxu0
    %5954 = vmatprep.mubr.f32.mxu0 0.0
    %v5955 = vand.u32 %v5444, 4294901760
    %v5956 = vsub.f32 %v5444, %v5955
    %v5957 = vand.u32 %v5956, 4294901760
    %5958 = vmatmul.mubr.f32.gmra.mrb[0].mxu0 %v5957
    %v5959 = vpop.f32.mrb[0].mxu0
    %v5960 = vadd.f32 %v5830, %v5959
    %v5961 = vpop.f32.mrb[0].mxu0
    %5962 = vdwg.mxu0
    %5963 = vmatprep.subr.mxu0 0.0
    %v5964 = vand.u32 %v1127, 4294901760
    %v5965 = vsub.f32 %v1127, %v5964
    %v5966 = vand.u32 %v5965, 4294901760
    %5967 = vmatpush1.msra.mxu0 %v5966
    %5968 = vmatprep.subr.mxu0 0.0
    %5969 = vmatpush1.msra.mxu0 0.0
    %5970 = vmatprep.subr.mxu0 0.0
    %5971 = vmatpush1.msra.mxu0 0.0
    %5972 = vmatprep.subr.mxu0 0.0
    %5973 = vmatpush1.msra.mxu0 0.0
    %5974 = vmatprep.subr.mxu0 0.0
    %5975 = vmatpush1.msra.mxu0 0.0
    %5976 = vmatprep.subr.mxu0 0.0
    %5977 = vmatpush1.msra.mxu0 0.0
    %5978 = vmatprep.subr.mxu0 0.0
    %5979 = vmatpush1.msra.mxu0 0.0
    %5980 = vmatprep.subr.mxu0 0.0
    %5981 = vmatpush1.msra.mxu0 0.0
    %5982 = vmatprep.subr.mxu0 0.0
    %5983 = vmatpush1.msra.mxu0 0.0
    %5984 = vmatprep.subr.mxu0 0.0
    %5985 = vmatpush1.msra.mxu0 0.0
    %5986 = vmatprep.subr.mxu0 0.0
    %5987 = vmatpush1.msra.mxu0 0.0
    %5988 = vmatprep.subr.mxu0 0.0
    %5989 = vmatpush1.msra.mxu0 0.0
    %5990 = vmatprep.subr.mxu0 0.0
    %5991 = vmatpush1.msra.mxu0 0.0
    %5992 = vmatprep.subr.mxu0 0.0
    %5993 = vmatpush1.msra.mxu0 0.0
    %5994 = vmatprep.subr.mxu0 0.0
    %5995 = vmatpush1.msra.mxu0 0.0
    %5996 = vmatprep.subr.mxu0 0.0
    %5997 = vmatpush1.msra.mxu0 0.0
    %5998 = vmatprep.subr.mxu0 0.0
    %5999 = vmatpush1.msra.mxu0 0.0
    %6000 = vmatprep.subr.mxu0 0.0
    %6001 = vmatpush1.msra.mxu0 0.0
    %6002 = vmatprep.subr.mxu0 0.0
    %6003 = vmatpush1.msra.mxu0 0.0
    %6004 = vmatprep.subr.mxu0 0.0
    %6005 = vmatpush1.msra.mxu0 0.0
    %6006 = vmatprep.subr.mxu0 0.0
    %6007 = vmatpush1.msra.mxu0 0.0
    %6008 = vmatprep.subr.mxu0 0.0
    %6009 = vmatpush1.msra.mxu0 0.0
    %6010 = vmatprep.subr.mxu0 0.0
    %6011 = vmatpush1.msra.mxu0 0.0
    %6012 = vmatprep.subr.mxu0 0.0
    %6013 = vmatpush1.msra.mxu0 0.0
    %6014 = vmatprep.subr.mxu0 0.0
    %6015 = vmatpush1.msra.mxu0 0.0
    %6016 = vmatprep.subr.mxu0 0.0
    %6017 = vmatpush1.msra.mxu0 0.0
    %6018 = vmatprep.subr.mxu0 0.0
    %6019 = vmatpush1.msra.mxu0 0.0
    %6020 = vmatprep.subr.mxu0 0.0
    %6021 = vmatpush1.msra.mxu0 0.0
    %6022 = vmatprep.subr.mxu0 0.0
    %6023 = vmatpush1.msra.mxu0 0.0
    %6024 = vmatprep.subr.mxu0 0.0
    %6025 = vmatpush1.msra.mxu0 0.0
    %6026 = vmatprep.subr.mxu0 0.0
    %6027 = vmatpush1.msra.mxu0 0.0
    %6028 = vmatprep.subr.mxu0 0.0
    %6029 = vmatpush1.msra.mxu0 0.0
    %6030 = vmatprep.mubr.f32.mxu0 0.0
    %v6031 = vand.u32 %v5423, 4294901760
    %6032 = vmatmul.mubr.f32.gmra.mrb[0].mxu0 %v6031
    %v6033 = vpop.f32.mrb[0].mxu0
    %v6034 = vadd.f32 %v5904, %v6033
    %v6035 = vpop.f32.mrb[0].mxu0
    %6036 = vmatprep.mubr.f32.mxu0 0.0
    %v6037 = vand.u32 %v5426, 4294901760
    %6038 = vmatmul.mubr.f32.gmra.mrb[0].mxu0 %v6037
    %v6039 = vpop.f32.mrb[0].mxu0
    %v6040 = vadd.f32 %v5912, %v6039
    %v6041 = vpop.f32.mrb[0].mxu0
    %6042 = vmatprep.mubr.f32.mxu0 0.0
    %v6043 = vand.u32 %v5429, 4294901760
    %6044 = vmatmul.mubr.f32.gmra.mrb[0].mxu0 %v6043
    %v6045 = vpop.f32.mrb[0].mxu0
    %v6046 = vadd.f32 %v5920, %v6045
    %v6047 = vpop.f32.mrb[0].mxu0
    %6048 = vmatprep.mubr.f32.mxu0 0.0
    %v6049 = vand.u32 %v5432, 4294901760
    %6050 = vmatmul.mubr.f32.gmra.mrb[0].mxu0 %v6049
    %v6051 = vpop.f32.mrb[0].mxu0
    %v6052 = vadd.f32 %v5928, %v6051
    %v6053 = vpop.f32.mrb[0].mxu0
    %6054 = vmatprep.mubr.f32.mxu0 0.0
    %v6055 = vand.u32 %v5435, 4294901760
    %6056 = vmatmul.mubr.f32.gmra.mrb[0].mxu0 %v6055
    %v6057 = vpop.f32.mrb[0].mxu0
    %v6058 = vadd.f32 %v5936, %v6057
    %v6059 = vpop.f32.mrb[0].mxu0
    %6060 = vmatprep.mubr.f32.mxu0 0.0
    %v6061 = vand.u32 %v5438, 4294901760
    %6062 = vmatmul.mubr.f32.gmra.mrb[0].mxu0 %v6061
    %v6063 = vpop.f32.mrb[0].mxu0
    %v6064 = vadd.f32 %v5944, %v6063
    %v6065 = vpop.f32.mrb[0].mxu0
    %6066 = vmatprep.mubr.f32.mxu0 0.0
    %v6067 = vand.u32 %v5441, 4294901760
    %6068 = vmatmul.mubr.f32.gmra.mrb[0].mxu0 %v6067
    %v6069 = vpop.f32.mrb[0].mxu0
    %v6070 = vadd.f32 %v5952, %v6069
    %v6071 = vpop.f32.mrb[0].mxu0
    %6072 = vmatprep.mubr.f32.mxu0 0.0
    %v6073 = vand.u32 %v5444, 4294901760
    %6074 = vmatmul.mubr.f32.gmra.mrb[0].mxu0 %v6073
    %v6075 = vpop.f32.mrb[0].mxu0
    %v6076 = vadd.f32 %v5960, %v6075
    %v6077 = vpop.f32.mrb[0].mxu0
    %6078 = vdwg.mxu0
    %6079 = vmatprep.subr.mxu0 0.0
    %v6080 = vand.u32 %v1127, 4294901760
    %6081 = vmatpush1.msra.mxu0 %v6080
    %6082 = vmatprep.subr.mxu0 0.0
    %6083 = vmatpush1.msra.mxu0 0.0
    %6084 = vmatprep.subr.mxu0 0.0
    %6085 = vmatpush1.msra.mxu0 0.0
    %6086 = vmatprep.subr.mxu0 0.0
    %6087 = vmatpush1.msra.mxu0 0.0
    %6088 = vmatprep.subr.mxu0 0.0
    %6089 = vmatpush1.msra.mxu0 0.0
    %6090 = vmatprep.subr.mxu0 0.0
    %6091 = vmatpush1.msra.mxu0 0.0
    %6092 = vmatprep.subr.mxu0 0.0
    %6093 = vmatpush1.msra.mxu0 0.0
    %6094 = vmatprep.subr.mxu0 0.0
    %6095 = vmatpush1.msra.mxu0 0.0
    %6096 = vmatprep.subr.mxu0 0.0
    %6097 = vmatpush1.msra.mxu0 0.0
    %6098 = vmatprep.subr.mxu0 0.0
    %6099 = vmatpush1.msra.mxu0 0.0
    %6100 = vmatprep.subr.mxu0 0.0
    %6101 = vmatpush1.msra.mxu0 0.0
    %6102 = vmatprep.subr.mxu0 0.0
    %6103 = vmatpush1.msra.mxu0 0.0
    %6104 = vmatprep.subr.mxu0 0.0
    %6105 = vmatpush1.msra.mxu0 0.0
    %6106 = vmatprep.subr.mxu0 0.0
    %6107 = vmatpush1.msra.mxu0 0.0
    %6108 = vmatprep.subr.mxu0 0.0
    %6109 = vmatpush1.msra.mxu0 0.0
    %6110 = vmatprep.subr.mxu0 0.0
    %6111 = vmatpush1.msra.mxu0 0.0
    %6112 = vmatprep.subr.mxu0 0.0
    %6113 = vmatpush1.msra.mxu0 0.0
    %6114 = vmatprep.subr.mxu0 0.0
    %6115 = vmatpush1.msra.mxu0 0.0
    %6116 = vmatprep.subr.mxu0 0.0
    %6117 = vmatpush1.msra.mxu0 0.0
    %6118 = vmatprep.subr.mxu0 0.0
    %6119 = vmatpush1.msra.mxu0 0.0
    %6120 = vmatprep.subr.mxu0 0.0
    %6121 = vmatpush1.msra.mxu0 0.0
    %6122 = vmatprep.subr.mxu0 0.0
    %6123 = vmatpush1.msra.mxu0 0.0
    %6124 = vmatprep.subr.mxu0 0.0
    %6125 = vmatpush1.msra.mxu0 0.0
    %6126 = vmatprep.subr.mxu0 0.0
    %6127 = vmatpush1.msra.mxu0 0.0
    %6128 = vmatprep.subr.mxu0 0.0
    %6129 = vmatpush1.msra.mxu0 0.0
    %6130 = vmatprep.subr.mxu0 0.0
    %6131 = vmatpush1.msra.mxu0 0.0
    %6132 = vmatprep.subr.mxu0 0.0
    %6133 = vmatpush1.msra.mxu0 0.0
    %6134 = vmatprep.subr.mxu0 0.0
    %6135 = vmatpush1.msra.mxu0 0.0
    %6136 = vmatprep.subr.mxu0 0.0
    %6137 = vmatpush1.msra.mxu0 0.0
    %6138 = vmatprep.subr.mxu0 0.0
    %6139 = vmatpush1.msra.mxu0 0.0
    %6140 = vmatprep.subr.mxu0 0.0
    %6141 = vmatpush1.msra.mxu0 0.0
    %6142 = vmatprep.subr.mxu0 0.0
    %6143 = vmatpush1.msra.mxu0 0.0
    %6144 = vmatprep.mubr.f32.mxu0 0.0
    %v6145 = vand.u32 %v5423, 4294901760
    %6146 = vmatmul.mubr.f32.gmra.mrb[0].mxu0 %v6145
    %v6147 = vpop.f32.mrb[0].mxu0
    %v6148 = vadd.f32 %v6034, %v6147
    %v6149 = vpop.f32.mrb[0].mxu0
    %6150 = vmatprep.mubr.f32.mxu0 0.0
    %v6151 = vand.u32 %v5426, 4294901760
    %6152 = vmatmul.mubr.f32.gmra.mrb[0].mxu0 %v6151
    %v6153 = vpop.f32.mrb[0].mxu0
    %v6154 = vadd.f32 %v6040, %v6153
    %v6155 = vpop.f32.mrb[0].mxu0
    %6156 = vmatprep.mubr.f32.mxu0 0.0
    %v6157 = vand.u32 %v5429, 4294901760
    %6158 = vmatmul.mubr.f32.gmra.mrb[0].mxu0 %v6157
    %v6159 = vpop.f32.mrb[0].mxu0
    %v6160 = vadd.f32 %v6046, %v6159
    %v6161 = vpop.f32.mrb[0].mxu0
    %6162 = vmatprep.mubr.f32.mxu0 0.0
    %v6163 = vand.u32 %v5432, 4294901760
    %6164 = vmatmul.mubr.f32.gmra.mrb[0].mxu0 %v6163
    %v6165 = vpop.f32.mrb[0].mxu0
    %v6166 = vadd.f32 %v6052, %v6165
    %v6167 = vpop.f32.mrb[0].mxu0
    %6168 = vmatprep.mubr.f32.mxu0 0.0
    %v6169 = vand.u32 %v5435, 4294901760
    %6170 = vmatmul.mubr.f32.gmra.mrb[0].mxu0 %v6169
    %v6171 = vpop.f32.mrb[0].mxu0
    %v6172 = vadd.f32 %v6058, %v6171
    %v6173 = vpop.f32.mrb[0].mxu0
    %6174 = vmatprep.mubr.f32.mxu0 0.0
    %v6175 = vand.u32 %v5438, 4294901760
    %6176 = vmatmul.mubr.f32.gmra.mrb[0].mxu0 %v6175
    %v6177 = vpop.f32.mrb[0].mxu0
    %v6178 = vadd.f32 %v6064, %v6177
    %v6179 = vpop.f32.mrb[0].mxu0
    %6180 = vmatprep.mubr.f32.mxu0 0.0
    %v6181 = vand.u32 %v5441, 4294901760
    %6182 = vmatmul.mubr.f32.gmra.mrb[0].mxu0 %v6181
    %v6183 = vpop.f32.mrb[0].mxu0
    %v6184 = vadd.f32 %v6070, %v6183
    %v6185 = vpop.f32.mrb[0].mxu0
    %6186 = vmatprep.mubr.f32.mxu0 0.0
    %v6187 = vand.u32 %v5444, 4294901760
    %6188 = vmatmul.mubr.f32.gmra.mrb[0].mxu0 %v6187
    %v6189 = vpop.f32.mrb[0].mxu0
    %v6190 = vadd.f32 %v6076, %v6189
    %v6191 = vpop.f32.mrb[0].mxu0
    %6192 = vdwg.mxu0
    %v6193 = vmul.f32 %v1876, %v5377
    %v6194 = vmul.f32 %v1877, %v5383
    %v6195 = vmul.f32 %v1878, %v5389
    %v6196 = vmul.f32 %v1879, %v5395
    %v6197 = vmul.f32 %v1880, %v5401
    %v6198 = vmul.f32 %v1881, %v5407
    %v6199 = vmul.f32 %v1882, %v5413
    %v6200 = vmul.f32 %v1883, %v5419
    %v6201 = vadd.f32 %v6193, %v6148
    %v6202 = vadd.f32 %v6194, %v6154
    %v6203 = vadd.f32 %v6195, %v6160
    %v6204 = vadd.f32 %v6196, %v6166
    %v6205 = vadd.f32 %v6197, %v6172
    %v6206 = vadd.f32 %v6198, %v6178
    %v6207 = vadd.f32 %v6199, %v6184
    %v6208 = vadd.f32 %v6200, %v6190
    %6209 = vst [vmem:[#allocation5] sm:$0xff] %v6201
    %6210 = vst [vmem:[#allocation5 + $0x8] sm:$0xff] %v6202
    %6211 = vst [vmem:[#allocation5 + $0x10] sm:$0xff] %v6203
    %6212 = vst [vmem:[#allocation5 + $0x18] sm:$0xff] %v6204
    %6213 = vst [vmem:[#allocation5 + $0x20] sm:$0xff] %v6205
    %6214 = vst [vmem:[#allocation5 + $0x28] sm:$0xff] %v6206
    %6215 = vst [vmem:[#allocation5 + $0x30] sm:$0xff] %v6207
    %6216 = vst [vmem:[#allocation5 + $0x38] sm:$0xff] %v6208
    // Predicated region
    $region26: #{tpu_custom_call.1} parent=1 // pred_check
      _
    $region27: #{tpu_custom_call.1} parent=1 // pred_check_branch
      %6218 = sbr.rel (0) target = $region29
    $region28: #{tpu_custom_call.1} parent=1 // pred_region
      %s6220 = ssub.s32 1024, 1024
      %6221 = vsyncadd [#allocation3], %s6220
      %s6222 = sshll.u32 [#allocation5], 4
      %s6223 = int_to_ptr.vmem [resolvable:$true] %s6222
      %6228 = dma.vmem_to_hbm [thread:$0]  %s6223, 1024, %s5, [#allocation3], 128, 128, 8
    $region29: #{tpu_custom_call.1} parent=1 // pred_fallthru
      _
    // Predicated region
    $region30: #{tpu_custom_call.1} parent=1 // pred_check
      _
    $region31: #{tpu_custom_call.1} parent=1 // pred_check_branch
      %6230 = sbr.rel (0) target = $region33
    $region32: #{tpu_custom_call.1} parent=1 // pred_region
      %6231 = dma.done [#allocation3], 1024
    $region33: #{tpu_custom_call.1} parent=1 // pred_fallthru
      _
    %6232 = vsyncpa [#allocation3], 1
    %6233 = vsyncpa [#allocation4], 1

</llo_original>
